<compile_context>
chip_gen: v7x
topology: tpu7x:2x2x1
jax: 0.10.0
libtpu: 0.0.40
codegen_flags: <defaults>
</compile_context>

<pallas_src>
import numpy as np
import jax
import jax.numpy as jnp
from jax import lax
from jax.experimental import pallas as pl
from jax.experimental.pallas import tpu as pltpu


# ------------------------------ Pallas kernel ------------------------------

def lstm_fused_kernel(x_ref, wx_ref, wh_ref, b_ref, h0_ref, c0_ref,
                      y_ref, hT_ref, cT_ref, xp_buf):
    """Fused stacked-LSTM forward (no grid; everything resident in VMEM).

      x_ref : (T, B, H)  f32   input sequence
      wx_ref: (L, H, 4H) bf16  input->gates weights, gates stacked [i|f|g|o]
      wh_ref: (L, H, 4H) bf16  hidden->gates weights
      b_ref : (L, 1, 4H) f32   gate biases
      h0/c0 : (B, H)     f32   initial state (layer 0)
      y_ref : (T, B, H)  f32   output sequence; also the inter-layer buffer
      hT/cT : (B, H)     f32   final state of the last layer
      xp_buf: (T, B, 4H) f32   hoisted per-layer input projection (scratch)
    """
    T, B, H = x_ref.shape
    L = wx_ref.shape[0]
    G = 4 * H

    # Layer 0 starts from (h0, c0); each subsequent layer starts from the
    # previous layer's FINAL (h, c), exactly like the PyTorch module.
    # (h, c) live as loop-carry values (vregs), not VMEM scratch.
    h = h0_ref[...].astype(jnp.float32)
    c = c0_ref[...].astype(jnp.float32)

    for l in range(L):  # static Python loop over layers
        # ---- hoisted input projection + bias: one big MXU matmul per layer.
        # bf16 operands, f32 accumulation; all gate math stays f32.
        if l == 0:
            seq = x_ref[...]
        else:
            seq = y_ref[...]                       # previous layer's hidden_seq
        # (T,B,H)->(T*B,H) is tile-contiguous ((B,H)=(8,128) slabs).
        seq2d = seq.astype(jnp.bfloat16).reshape(T * B, H)
        xp = jnp.dot(seq2d, wx_ref[l], preferred_element_type=jnp.float32)
        xp = xp + b_ref[l].astype(jnp.float32)     # bias folded once, not per step
        xp_buf[...] = xp.reshape(T, B, G)

        # Load Wh once per layer; reused (ideally MXU-latched) across all T steps.
        wh_l = wh_ref[l]                            # (H, 4H) bf16

        # ---- serial recurrence: only h @ Wh remains on the critical path ----
        def step(t, carry):
            h, c = carry
            gates = xp_buf[t] + jnp.dot(h.astype(jnp.bfloat16), wh_l,
                                        preferred_element_type=jnp.float32)
            i_t = jax.nn.sigmoid(gates[:, 0 * H:1 * H])
            f_t = jax.nn.sigmoid(gates[:, 1 * H:2 * H])
            g_t = jnp.tanh(gates[:, 2 * H:3 * H])
            o_t = jax.nn.sigmoid(gates[:, 3 * H:4 * H])
            c_new = f_t * c + i_t * g_t
            h_new = o_t * jnp.tanh(c_new)
            y_ref[t] = h_new.astype(y_ref.dtype)    # this layer's hidden_seq[t]
            return (h_new, c_new)

        # Cap unroll so long sequences don't spill the 64-vreg file.
        h, c = lax.fori_loop(0, T, step, (h, c), unroll=min(T, 8))

    hT_ref[...] = h.astype(hT_ref.dtype)
    cT_ref[...] = c.astype(cT_ref.dtype)


def lstm_forward(x, params, init_states=None):
    """Stacked LSTM matching the PyTorch module's forward.

    params: list (one per layer) of (wx (H,4H), wh (H,4H), b (1,4H)), gate
    order [i, f, g, o] along the 4H axis.
    Returns (hidden_seq, (h_T, c_T)).
    """
    T, B, H = x.shape
    L = len(params)
    # Matmul operands in bf16 (f32 accumulation inside the kernel).
    wx = jnp.stack([p[0] for p in params]).astype(jnp.bfloat16)   # (L, H, 4H)
    wh = jnp.stack([p[1] for p in params]).astype(jnp.bfloat16)   # (L, H, 4H)
    b = jnp.stack([p[2] for p in params]).astype(jnp.float32)     # (L, 1, 4H)
    if init_states is None:
        h0 = jnp.zeros((B, H), x.dtype)
        c0 = jnp.zeros((B, H), x.dtype)
    else:
        h0, c0 = init_states

    # Resident VMEM footprint (gridless call -> no double-buffering factor).
    resident = (2 * T * B * H * 4            # x + y (f32)
                + 2 * L * H * 4 * H * 2      # wx + wh (bf16)
                + L * 4 * H * 4              # biases (f32)
                + 4 * B * H * 4              # h0, c0, hT, cT (f32)
                + T * B * 4 * H * 4)         # xp_buf scratch (f32)
    vmem_limit = min(2 * resident + (4 << 20), 100 << 20)

    vmem = lambda: pl.BlockSpec(memory_space=pltpu.MemorySpace.VMEM)
    y, hT, cT = pl.pallas_call(
        lstm_fused_kernel,
        out_shape=(
            jax.ShapeDtypeStruct((T, B, H), x.dtype),
            jax.ShapeDtypeStruct((B, H), x.dtype),
            jax.ShapeDtypeStruct((B, H), x.dtype),
        ),
        in_specs=[vmem() for _ in range(6)],
        out_specs=(vmem(), vmem(), vmem()),
        scratch_shapes=[
            pltpu.VMEM((T, B, 4 * H), jnp.float32),   # hoisted input projection
        ],
        compiler_params=pltpu.CompilerParams(vmem_limit_bytes=int(vmem_limit)),
    )(x, wx, wh, b, h0, c0)
    return y, (hT, cT)


# ---------------------- param packing (PyTorch layout) ----------------------

def pack_lstm_params(w_gates, b_gates):
    """Convert per-gate Linear(2H -> H) params (PyTorch layout, already
    (in, out)-transposed) to the kernel's stacked layout.

      w_gates: (4, 2H, H), gate order [i, f, g(c), o]
      b_gates: (4, H)
    Returns (wx (H,4H), wh (H,4H), b (1,4H)).
    """
    H = w_gates.shape[-1]
    wx = jnp.concatenate([w_gates[k, :H, :] for k in range(4)], axis=-1)    # x-part
    wh = jnp.concatenate([w_gates[k, H:, :] for k in range(4)], axis=-1)    # h-part
    b = jnp.concatenate([b_gates[k] for k in range(4)], axis=-1)[None, :]
    return wx, wh, b


# ------------------------------ pure-JAX reference -------------------------
# Literal transcription of the PyTorch forward: per-gate Linear applied to
# concat([x_t, h_t]), layers chained on the previous layer's final state.

def lstm_cell_ref(x, h0, c0, w_gates, b_gates):
    def step(carry, x_t):
        h, c = carry
        xh = jnp.concatenate([x_t, h], axis=-1)
        i = jax.nn.sigmoid(xh @ w_gates[0] + b_gates[0])
        f = jax.nn.sigmoid(xh @ w_gates[1] + b_gates[1])
        g = jnp.tanh(xh @ w_gates[2] + b_gates[2])
        o = jax.nn.sigmoid(xh @ w_gates[3] + b_gates[3])
        c = f * c + i * g
        h = o * jnp.tanh(c)
        return (h, c), h
    (h, c), ys = lax.scan(step, (h0, c0), x)
    return ys, h, c


def lstm_forward_ref(x, torch_params):
    T, B, H = x.shape
    h = jnp.zeros((B, H), x.dtype)
    c = jnp.zeros((B, H), x.dtype)
    for (w_gates, b_gates) in torch_params:
        x, h, c = lstm_cell_ref(x, h, c, w_gates, b_gates)
    return x, (h, c)


# ------------------------------ main ---------------------------------------

if __name__ == "__main__":
    T, B, H = 8, 8, 128      # src_len, batch, hidden_size (lane-aligned)
    NUM_LAYERS = 2

    key = jax.random.PRNGKey(0)
    key, kx = jax.random.split(key)
    x = jax.random.normal(kx, (T, B, H), dtype=jnp.float32)

    # nn.Linear(2H -> H)-style init: uniform(-1/sqrt(2H), 1/sqrt(2H)).
    bound = 1.0 / np.sqrt(2 * H)
    torch_params = []    # per layer: (w_gates (4, 2H, H), b_gates (4, H))
    kernel_params = []   # per layer: (wx (H, 4H), wh (H, 4H), b (1, 4H))
    for _ in range(NUM_LAYERS):
        key, kw, kb = jax.random.split(key, 3)
        w_gates = jax.random.uniform(kw, (4, 2 * H, H), jnp.float32, -bound, bound)
        b_gates = jax.random.uniform(kb, (4, H), jnp.float32, -bound, bound)
        torch_params.append((w_gates, b_gates))
        kernel_params.append(pack_lstm_params(w_gates, b_gates))

    fwd = jax.jit(lstm_forward)
    y, (h_t, c_t) = fwd(x, kernel_params)
    jax.block_until_ready((y, h_t, c_t))

    # Verify against the pure-JAX transcription of the PyTorch forward.
    # Tolerance is relaxed for (a) split-matmul reduction reassociation and
    # (b) bf16 matmul operands (f32 accumulation + f32 gate math).
    y_ref, (h_ref, c_ref) = lstm_forward_ref(x, torch_params)
    np.testing.assert_allclose(np.asarray(y), np.asarray(y_ref), atol=3e-2, rtol=3e-2)
    np.testing.assert_allclose(np.asarray(h_t), np.asarray(h_ref), atol=3e-2, rtol=3e-2)
    np.testing.assert_allclose(np.asarray(c_t), np.asarray(c_ref), atol=3e-2, rtol=3e-2)

    print("KERNEL_OK")
</pallas_src>

<mosaic_0001>
module attributes {stable_mosaic.version = 11 : i64} {
  func.func @lstm_fused_kernel(%arg0: memref<8x8x128xf32, #tpu.memory_space<vmem>>, %arg1: memref<2x128x512xbf16, #tpu.memory_space<vmem>>, %arg2: memref<2x128x512xbf16, #tpu.memory_space<vmem>>, %arg3: memref<2x1x512xf32, #tpu.memory_space<vmem>>, %arg4: memref<8x128xf32, #tpu.memory_space<vmem>>, %arg5: memref<8x128xf32, #tpu.memory_space<vmem>>, %arg6: memref<8x8x128xf32, #tpu.memory_space<vmem>>, %arg7: memref<8x128xf32, #tpu.memory_space<vmem>>, %arg8: memref<8x128xf32, #tpu.memory_space<vmem>>, %arg9: memref<8x8x512xf32, #tpu.memory_space<vmem>>) attributes {dimension_semantics = [], scalar_prefetch = 0 : i64, scratch_operands = 1 : i64, tpu.core_type = #tpu.core_type<tc>} {
    %c0 = arith.constant 0 : index
    %c0_0 = arith.constant 0 : index
    %0 = vector.load %arg4[%c0, %c0_0] : memref<8x128xf32, #tpu.memory_space<vmem>>, vector<8x128xf32>
    %c0_1 = arith.constant 0 : index
    %c0_2 = arith.constant 0 : index
    %1 = vector.load %arg5[%c0_1, %c0_2] : memref<8x128xf32, #tpu.memory_space<vmem>>, vector<8x128xf32>
    %c0_3 = arith.constant 0 : index
    %c0_4 = arith.constant 0 : index
    %c0_5 = arith.constant 0 : index
    %2 = vector.load %arg0[%c0_3, %c0_4, %c0_5] : memref<8x8x128xf32, #tpu.memory_space<vmem>>, vector<8x8x128xf32>
    %3 = arith.truncf %2 : vector<8x8x128xf32> to vector<8x8x128xbf16>
    %4 = vector.shape_cast %3 : vector<8x8x128xbf16> to vector<64x128xbf16>
    %c0_6 = arith.constant 0 : index
    %c0_7 = arith.constant 0 : index
    %c0_8 = arith.constant 0 : index
    %5 = vector.load %arg1[%c0_6, %c0_7, %c0_8] : memref<2x128x512xbf16, #tpu.memory_space<vmem>>, vector<1x128x512xbf16>
    %6 = vector.shape_cast %5 : vector<1x128x512xbf16> to vector<128x512xbf16>
    %cst = arith.constant dense<0.000000e+00> : vector<64x512xf32>
    %7 = tpu.matmul %4, %6, %cst {dimension_numbers = #tpu.dot_dimension_numbers<[1], [0], [0], [1], [0, 0, 1, 1], [], []>} : vector<64x128xbf16>, vector<128x512xbf16>, vector<64x512xf32> -> vector<64x512xf32>
    %c0_9 = arith.constant 0 : index
    %c0_10 = arith.constant 0 : index
    %c0_11 = arith.constant 0 : index
    %8 = vector.load %arg3[%c0_9, %c0_10, %c0_11] : memref<2x1x512xf32, #tpu.memory_space<vmem>>, vector<1x1x512xf32>
    %9 = vector.shape_cast %8 : vector<1x1x512xf32> to vector<1x512xf32>
    %10 = vector.broadcast %9 : vector<1x512xf32> to vector<64x512xf32>
    %11 = arith.addf %7, %10 : vector<64x512xf32>
    %12 = vector.shape_cast %11 : vector<64x512xf32> to vector<8x8x512xf32>
    %c0_12 = arith.constant 0 : index
    %c0_13 = arith.constant 0 : index
    %c0_14 = arith.constant 0 : index
    %13 = vector.load %arg9[%c0_12, %c0_13, %c0_14] : memref<8x8x512xf32, #tpu.memory_space<vmem>>, vector<8x8x512xf32>
    tpu.vector_store %arg9[%c0_12, %c0_13, %c0_14], %12 {strides = array<i32>} : memref<8x8x512xf32, #tpu.memory_space<vmem>>, vector<8x8x512xf32>,
    %c0_15 = arith.constant 0 : index
    %c0_16 = arith.constant 0 : index
    %c0_17 = arith.constant 0 : index
    %14 = vector.load %arg2[%c0_15, %c0_16, %c0_17] : memref<2x128x512xbf16, #tpu.memory_space<vmem>>, vector<1x128x512xbf16>
    %15 = vector.shape_cast %14 : vector<1x128x512xbf16> to vector<128x512xbf16>
    %c0_i32 = arith.constant 0 : i32
    %16 = arith.index_cast %c0_i32 : i32 to index
    %c0_18 = arith.constant 0 : index
    %c0_19 = arith.constant 0 : index
    %17 = vector.load %arg9[%16, %c0_18, %c0_19] : memref<8x8x512xf32, #tpu.memory_space<vmem>>, vector<1x8x512xf32>
    %18 = vector.shape_cast %17 : vector<1x8x512xf32> to vector<8x512xf32>
    %19 = arith.truncf %0 : vector<8x128xf32> to vector<8x128xbf16>
    %cst_20 = arith.constant dense<0.000000e+00> : vector<8x512xf32>
    %20 = tpu.matmul %19, %15, %cst_20 {dimension_numbers = #tpu.dot_dimension_numbers<[1], [0], [0], [1], [0, 0, 1, 1], [], []>} : vector<8x128xbf16>, vector<128x512xbf16>, vector<8x512xf32> -> vector<8x512xf32>
    %21 = arith.addf %18, %20 : vector<8x512xf32>
    %22 = vector.extract_strided_slice %21 {offsets = [0, 0], sizes = [8, 128], strides = [1, 1]} : vector<8x512xf32> to vector<8x128xf32>
    %23 = arith.negf %22 : vector<8x128xf32>
    %24 = math.exp %23 : vector<8x128xf32>
    %cst_21 = arith.constant 1.000000e+00 : f32
    %25 = vector.broadcast %cst_21 : f32 to vector<8x128xf32>
    %26 = arith.addf %25, %24 : vector<8x128xf32>
    %27 = arith.divf %25, %26 : vector<8x128xf32>
    %28 = vector.extract_strided_slice %21 {offsets = [0, 128], sizes = [8, 128], strides = [1, 1]} : vector<8x512xf32> to vector<8x128xf32>
    %29 = arith.negf %28 : vector<8x128xf32>
    %30 = math.exp %29 : vector<8x128xf32>
    %cst_22 = arith.constant 1.000000e+00 : f32
    %31 = vector.broadcast %cst_22 : f32 to vector<8x128xf32>
    %32 = arith.addf %31, %30 : vector<8x128xf32>
    %33 = arith.divf %31, %32 : vector<8x128xf32>
    %34 = vector.extract_strided_slice %21 {offsets = [0, 256], sizes = [8, 128], strides = [1, 1]} : vector<8x512xf32> to vector<8x128xf32>
    %35 = math.tanh %34 : vector<8x128xf32>
    %36 = vector.extract_strided_slice %21 {offsets = [0, 384], sizes = [8, 128], strides = [1, 1]} : vector<8x512xf32> to vector<8x128xf32>
    %37 = arith.negf %36 : vector<8x128xf32>
    %38 = math.exp %37 : vector<8x128xf32>
    %cst_23 = arith.constant 1.000000e+00 : f32
    %39 = vector.broadcast %cst_23 : f32 to vector<8x128xf32>
    %40 = arith.addf %39, %38 : vector<8x128xf32>
    %41 = arith.divf %39, %40 : vector<8x128xf32>
    %42 = arith.mulf %33, %1 : vector<8x128xf32>
    %43 = arith.mulf %27, %35 : vector<8x128xf32>
    %44 = arith.addf %42, %43 : vector<8x128xf32>
    %45 = math.tanh %44 : vector<8x128xf32>
    %46 = arith.mulf %41, %45 : vector<8x128xf32>
    %47 = arith.index_cast %c0_i32 : i32 to index
    %c0_24 = arith.constant 0 : index
    %c0_25 = arith.constant 0 : index
    %48 = vector.load %arg6[%47, %c0_24, %c0_25] : memref<8x8x128xf32, #tpu.memory_space<vmem>>, vector<1x8x128xf32>
    %49 = vector.shape_cast %48 : vector<1x8x128xf32> to vector<8x128xf32>
    %50 = vector.shape_cast %46 : vector<8x128xf32> to vector<1x8x128xf32>
    tpu.vector_store %arg6[%47, %c0_24, %c0_25], %50 {strides = array<i32>} : memref<8x8x128xf32, #tpu.memory_space<vmem>>, vector<1x8x128xf32>,
    %c1_i32 = arith.constant 1 : i32
    %51 = arith.index_cast %c1_i32 : i32 to index
    %c0_26 = arith.constant 0 : index
    %c0_27 = arith.constant 0 : index
    %52 = vector.load %arg9[%51, %c0_26, %c0_27] : memref<8x8x512xf32, #tpu.memory_space<vmem>>, vector<1x8x512xf32>
    %53 = vector.shape_cast %52 : vector<1x8x512xf32> to vector<8x512xf32>
    %54 = arith.truncf %46 : vector<8x128xf32> to vector<8x128xbf16>
    %cst_28 = arith.constant dense<0.000000e+00> : vector<8x512xf32>
    %55 = tpu.matmul %54, %15, %cst_28 {dimension_numbers = #tpu.dot_dimension_numbers<[1], [0], [0], [1], [0, 0, 1, 1], [], []>} : vector<8x128xbf16>, vector<128x512xbf16>, vector<8x512xf32> -> vector<8x512xf32>
    %56 = arith.addf %53, %55 : vector<8x512xf32>
    %57 = vector.extract_strided_slice %56 {offsets = [0, 0], sizes = [8, 128], strides = [1, 1]} : vector<8x512xf32> to vector<8x128xf32>
    %58 = arith.negf %57 : vector<8x128xf32>
    %59 = math.exp %58 : vector<8x128xf32>
    %cst_29 = arith.constant 1.000000e+00 : f32
    %60 = vector.broadcast %cst_29 : f32 to vector<8x128xf32>
    %61 = arith.addf %60, %59 : vector<8x128xf32>
    %62 = arith.divf %60, %61 : vector<8x128xf32>
    %63 = vector.extract_strided_slice %56 {offsets = [0, 128], sizes = [8, 128], strides = [1, 1]} : vector<8x512xf32> to vector<8x128xf32>
    %64 = arith.negf %63 : vector<8x128xf32>
    %65 = math.exp %64 : vector<8x128xf32>
    %cst_30 = arith.constant 1.000000e+00 : f32
    %66 = vector.broadcast %cst_30 : f32 to vector<8x128xf32>
    %67 = arith.addf %66, %65 : vector<8x128xf32>
    %68 = arith.divf %66, %67 : vector<8x128xf32>
    %69 = vector.extract_strided_slice %56 {offsets = [0, 256], sizes = [8, 128], strides = [1, 1]} : vector<8x512xf32> to vector<8x128xf32>
    %70 = math.tanh %69 : vector<8x128xf32>
    %71 = vector.extract_strided_slice %56 {offsets = [0, 384], sizes = [8, 128], strides = [1, 1]} : vector<8x512xf32> to vector<8x128xf32>
    %72 = arith.negf %71 : vector<8x128xf32>
    %73 = math.exp %72 : vector<8x128xf32>
    %cst_31 = arith.constant 1.000000e+00 : f32
    %74 = vector.broadcast %cst_31 : f32 to vector<8x128xf32>
    %75 = arith.addf %74, %73 : vector<8x128xf32>
    %76 = arith.divf %74, %75 : vector<8x128xf32>
    %77 = arith.mulf %68, %44 : vector<8x128xf32>
    %78 = arith.mulf %62, %70 : vector<8x128xf32>
    %79 = arith.addf %77, %78 : vector<8x128xf32>
    %80 = math.tanh %79 : vector<8x128xf32>
    %81 = arith.mulf %76, %80 : vector<8x128xf32>
    %82 = arith.index_cast %c1_i32 : i32 to index
    %c0_32 = arith.constant 0 : index
    %c0_33 = arith.constant 0 : index
    %83 = vector.load %arg6[%82, %c0_32, %c0_33] : memref<8x8x128xf32, #tpu.memory_space<vmem>>, vector<1x8x128xf32>
    %84 = vector.shape_cast %83 : vector<1x8x128xf32> to vector<8x128xf32>
    %85 = vector.shape_cast %81 : vector<8x128xf32> to vector<1x8x128xf32>
    tpu.vector_store %arg6[%82, %c0_32, %c0_33], %85 {strides = array<i32>} : memref<8x8x128xf32, #tpu.memory_space<vmem>>, vector<1x8x128xf32>,
    %c2_i32 = arith.constant 2 : i32
    %86 = arith.index_cast %c2_i32 : i32 to index
    %c0_34 = arith.constant 0 : index
    %c0_35 = arith.constant 0 : index
    %87 = vector.load %arg9[%86, %c0_34, %c0_35] : memref<8x8x512xf32, #tpu.memory_space<vmem>>, vector<1x8x512xf32>
    %88 = vector.shape_cast %87 : vector<1x8x512xf32> to vector<8x512xf32>
    %89 = arith.truncf %81 : vector<8x128xf32> to vector<8x128xbf16>
    %cst_36 = arith.constant dense<0.000000e+00> : vector<8x512xf32>
    %90 = tpu.matmul %89, %15, %cst_36 {dimension_numbers = #tpu.dot_dimension_numbers<[1], [0], [0], [1], [0, 0, 1, 1], [], []>} : vector<8x128xbf16>, vector<128x512xbf16>, vector<8x512xf32> -> vector<8x512xf32>
    %91 = arith.addf %88, %90 : vector<8x512xf32>
    %92 = vector.extract_strided_slice %91 {offsets = [0, 0], sizes = [8, 128], strides = [1, 1]} : vector<8x512xf32> to vector<8x128xf32>
    %93 = arith.negf %92 : vector<8x128xf32>
    %94 = math.exp %93 : vector<8x128xf32>
    %cst_37 = arith.constant 1.000000e+00 : f32
    %95 = vector.broadcast %cst_37 : f32 to vector<8x128xf32>
    %96 = arith.addf %95, %94 : vector<8x128xf32>
    %97 = arith.divf %95, %96 : vector<8x128xf32>
    %98 = vector.extract_strided_slice %91 {offsets = [0, 128], sizes = [8, 128], strides = [1, 1]} : vector<8x512xf32> to vector<8x128xf32>
    %99 = arith.negf %98 : vector<8x128xf32>
    %100 = math.exp %99 : vector<8x128xf32>
    %cst_38 = arith.constant 1.000000e+00 : f32
    %101 = vector.broadcast %cst_38 : f32 to vector<8x128xf32>
    %102 = arith.addf %101, %100 : vector<8x128xf32>
    %103 = arith.divf %101, %102 : vector<8x128xf32>
    %104 = vector.extract_strided_slice %91 {offsets = [0, 256], sizes = [8, 128], strides = [1, 1]} : vector<8x512xf32> to vector<8x128xf32>
    %105 = math.tanh %104 : vector<8x128xf32>
    %106 = vector.extract_strided_slice %91 {offsets = [0, 384], sizes = [8, 128], strides = [1, 1]} : vector<8x512xf32> to vector<8x128xf32>
    %107 = arith.negf %106 : vector<8x128xf32>
    %108 = math.exp %107 : vector<8x128xf32>
    %cst_39 = arith.constant 1.000000e+00 : f32
    %109 = vector.broadcast %cst_39 : f32 to vector<8x128xf32>
    %110 = arith.addf %109, %108 : vector<8x128xf32>
    %111 = arith.divf %109, %110 : vector<8x128xf32>
    %112 = arith.mulf %103, %79 : vector<8x128xf32>
    %113 = arith.mulf %97, %105 : vector<8x128xf32>
    %114 = arith.addf %112, %113 : vector<8x128xf32>
    %115 = math.tanh %114 : vector<8x128xf32>
    %116 = arith.mulf %111, %115 : vector<8x128xf32>
    %117 = arith.index_cast %c2_i32 : i32 to index
    %c0_40 = arith.constant 0 : index
    %c0_41 = arith.constant 0 : index
    %118 = vector.load %arg6[%117, %c0_40, %c0_41] : memref<8x8x128xf32, #tpu.memory_space<vmem>>, vector<1x8x128xf32>
    %119 = vector.shape_cast %118 : vector<1x8x128xf32> to vector<8x128xf32>
    %120 = vector.shape_cast %116 : vector<8x128xf32> to vector<1x8x128xf32>
    tpu.vector_store %arg6[%117, %c0_40, %c0_41], %120 {strides = array<i32>} : memref<8x8x128xf32, #tpu.memory_space<vmem>>, vector<1x8x128xf32>,
    %c3_i32 = arith.constant 3 : i32
    %121 = arith.index_cast %c3_i32 : i32 to index
    %c0_42 = arith.constant 0 : index
    %c0_43 = arith.constant 0 : index
    %122 = vector.load %arg9[%121, %c0_42, %c0_43] : memref<8x8x512xf32, #tpu.memory_space<vmem>>, vector<1x8x512xf32>
    %123 = vector.shape_cast %122 : vector<1x8x512xf32> to vector<8x512xf32>
    %124 = arith.truncf %116 : vector<8x128xf32> to vector<8x128xbf16>
    %cst_44 = arith.constant dense<0.000000e+00> : vector<8x512xf32>
    %125 = tpu.matmul %124, %15, %cst_44 {dimension_numbers = #tpu.dot_dimension_numbers<[1], [0], [0], [1], [0, 0, 1, 1], [], []>} : vector<8x128xbf16>, vector<128x512xbf16>, vector<8x512xf32> -> vector<8x512xf32>
    %126 = arith.addf %123, %125 : vector<8x512xf32>
    %127 = vector.extract_strided_slice %126 {offsets = [0, 0], sizes = [8, 128], strides = [1, 1]} : vector<8x512xf32> to vector<8x128xf32>
    %128 = arith.negf %127 : vector<8x128xf32>
    %129 = math.exp %128 : vector<8x128xf32>
    %cst_45 = arith.constant 1.000000e+00 : f32
    %130 = vector.broadcast %cst_45 : f32 to vector<8x128xf32>
    %131 = arith.addf %130, %129 : vector<8x128xf32>
    %132 = arith.divf %130, %131 : vector<8x128xf32>
    %133 = vector.extract_strided_slice %126 {offsets = [0, 128], sizes = [8, 128], strides = [1, 1]} : vector<8x512xf32> to vector<8x128xf32>
    %134 = arith.negf %133 : vector<8x128xf32>
    %135 = math.exp %134 : vector<8x128xf32>
    %cst_46 = arith.constant 1.000000e+00 : f32
    %136 = vector.broadcast %cst_46 : f32 to vector<8x128xf32>
    %137 = arith.addf %136, %135 : vector<8x128xf32>
    %138 = arith.divf %136, %137 : vector<8x128xf32>
    %139 = vector.extract_strided_slice %126 {offsets = [0, 256], sizes = [8, 128], strides = [1, 1]} : vector<8x512xf32> to vector<8x128xf32>
    %140 = math.tanh %139 : vector<8x128xf32>
    %141 = vector.extract_strided_slice %126 {offsets = [0, 384], sizes = [8, 128], strides = [1, 1]} : vector<8x512xf32> to vector<8x128xf32>
    %142 = arith.negf %141 : vector<8x128xf32>
    %143 = math.exp %142 : vector<8x128xf32>
    %cst_47 = arith.constant 1.000000e+00 : f32
    %144 = vector.broadcast %cst_47 : f32 to vector<8x128xf32>
    %145 = arith.addf %144, %143 : vector<8x128xf32>
    %146 = arith.divf %144, %145 : vector<8x128xf32>
    %147 = arith.mulf %138, %114 : vector<8x128xf32>
    %148 = arith.mulf %132, %140 : vector<8x128xf32>
    %149 = arith.addf %147, %148 : vector<8x128xf32>
    %150 = math.tanh %149 : vector<8x128xf32>
    %151 = arith.mulf %146, %150 : vector<8x128xf32>
    %152 = arith.index_cast %c3_i32 : i32 to index
    %c0_48 = arith.constant 0 : index
    %c0_49 = arith.constant 0 : index
    %153 = vector.load %arg6[%152, %c0_48, %c0_49] : memref<8x8x128xf32, #tpu.memory_space<vmem>>, vector<1x8x128xf32>
    %154 = vector.shape_cast %153 : vector<1x8x128xf32> to vector<8x128xf32>
    %155 = vector.shape_cast %151 : vector<8x128xf32> to vector<1x8x128xf32>
    tpu.vector_store %arg6[%152, %c0_48, %c0_49], %155 {strides = array<i32>} : memref<8x8x128xf32, #tpu.memory_space<vmem>>, vector<1x8x128xf32>,
    %c4_i32 = arith.constant 4 : i32
    %156 = arith.index_cast %c4_i32 : i32 to index
    %c0_50 = arith.constant 0 : index
    %c0_51 = arith.constant 0 : index
    %157 = vector.load %arg9[%156, %c0_50, %c0_51] : memref<8x8x512xf32, #tpu.memory_space<vmem>>, vector<1x8x512xf32>
    %158 = vector.shape_cast %157 : vector<1x8x512xf32> to vector<8x512xf32>
    %159 = arith.truncf %151 : vector<8x128xf32> to vector<8x128xbf16>
    %cst_52 = arith.constant dense<0.000000e+00> : vector<8x512xf32>
    %160 = tpu.matmul %159, %15, %cst_52 {dimension_numbers = #tpu.dot_dimension_numbers<[1], [0], [0], [1], [0, 0, 1, 1], [], []>} : vector<8x128xbf16>, vector<128x512xbf16>, vector<8x512xf32> -> vector<8x512xf32>
    %161 = arith.addf %158, %160 : vector<8x512xf32>
    %162 = vector.extract_strided_slice %161 {offsets = [0, 0], sizes = [8, 128], strides = [1, 1]} : vector<8x512xf32> to vector<8x128xf32>
    %163 = arith.negf %162 : vector<8x128xf32>
    %164 = math.exp %163 : vector<8x128xf32>
    %cst_53 = arith.constant 1.000000e+00 : f32
    %165 = vector.broadcast %cst_53 : f32 to vector<8x128xf32>
    %166 = arith.addf %165, %164 : vector<8x128xf32>
    %167 = arith.divf %165, %166 : vector<8x128xf32>
    %168 = vector.extract_strided_slice %161 {offsets = [0, 128], sizes = [8, 128], strides = [1, 1]} : vector<8x512xf32> to vector<8x128xf32>
    %169 = arith.negf %168 : vector<8x128xf32>
    %170 = math.exp %169 : vector<8x128xf32>
    %cst_54 = arith.constant 1.000000e+00 : f32
    %171 = vector.broadcast %cst_54 : f32 to vector<8x128xf32>
    %172 = arith.addf %171, %170 : vector<8x128xf32>
    %173 = arith.divf %171, %172 : vector<8x128xf32>
    %174 = vector.extract_strided_slice %161 {offsets = [0, 256], sizes = [8, 128], strides = [1, 1]} : vector<8x512xf32> to vector<8x128xf32>
    %175 = math.tanh %174 : vector<8x128xf32>
    %176 = vector.extract_strided_slice %161 {offsets = [0, 384], sizes = [8, 128], strides = [1, 1]} : vector<8x512xf32> to vector<8x128xf32>
    %177 = arith.negf %176 : vector<8x128xf32>
    %178 = math.exp %177 : vector<8x128xf32>
    %cst_55 = arith.constant 1.000000e+00 : f32
    %179 = vector.broadcast %cst_55 : f32 to vector<8x128xf32>
    %180 = arith.addf %179, %178 : vector<8x128xf32>
    %181 = arith.divf %179, %180 : vector<8x128xf32>
    %182 = arith.mulf %173, %149 : vector<8x128xf32>
    %183 = arith.mulf %167, %175 : vector<8x128xf32>
    %184 = arith.addf %182, %183 : vector<8x128xf32>
    %185 = math.tanh %184 : vector<8x128xf32>
    %186 = arith.mulf %181, %185 : vector<8x128xf32>
    %187 = arith.index_cast %c4_i32 : i32 to index
    %c0_56 = arith.constant 0 : index
    %c0_57 = arith.constant 0 : index
    %188 = vector.load %arg6[%187, %c0_56, %c0_57] : memref<8x8x128xf32, #tpu.memory_space<vmem>>, vector<1x8x128xf32>
    %189 = vector.shape_cast %188 : vector<1x8x128xf32> to vector<8x128xf32>
    %190 = vector.shape_cast %186 : vector<8x128xf32> to vector<1x8x128xf32>
    tpu.vector_store %arg6[%187, %c0_56, %c0_57], %190 {strides = array<i32>} : memref<8x8x128xf32, #tpu.memory_space<vmem>>, vector<1x8x128xf32>,
    %c5_i32 = arith.constant 5 : i32
    %191 = arith.index_cast %c5_i32 : i32 to index
    %c0_58 = arith.constant 0 : index
    %c0_59 = arith.constant 0 : index
    %192 = vector.load %arg9[%191, %c0_58, %c0_59] : memref<8x8x512xf32, #tpu.memory_space<vmem>>, vector<1x8x512xf32>
    %193 = vector.shape_cast %192 : vector<1x8x512xf32> to vector<8x512xf32>
    %194 = arith.truncf %186 : vector<8x128xf32> to vector<8x128xbf16>
    %cst_60 = arith.constant dense<0.000000e+00> : vector<8x512xf32>
    %195 = tpu.matmul %194, %15, %cst_60 {dimension_numbers = #tpu.dot_dimension_numbers<[1], [0], [0], [1], [0, 0, 1, 1], [], []>} : vector<8x128xbf16>, vector<128x512xbf16>, vector<8x512xf32> -> vector<8x512xf32>
    %196 = arith.addf %193, %195 : vector<8x512xf32>
    %197 = vector.extract_strided_slice %196 {offsets = [0, 0], sizes = [8, 128], strides = [1, 1]} : vector<8x512xf32> to vector<8x128xf32>
    %198 = arith.negf %197 : vector<8x128xf32>
    %199 = math.exp %198 : vector<8x128xf32>
    %cst_61 = arith.constant 1.000000e+00 : f32
    %200 = vector.broadcast %cst_61 : f32 to vector<8x128xf32>
    %201 = arith.addf %200, %199 : vector<8x128xf32>
    %202 = arith.divf %200, %201 : vector<8x128xf32>
    %203 = vector.extract_strided_slice %196 {offsets = [0, 128], sizes = [8, 128], strides = [1, 1]} : vector<8x512xf32> to vector<8x128xf32>
    %204 = arith.negf %203 : vector<8x128xf32>
    %205 = math.exp %204 : vector<8x128xf32>
    %cst_62 = arith.constant 1.000000e+00 : f32
    %206 = vector.broadcast %cst_62 : f32 to vector<8x128xf32>
    %207 = arith.addf %206, %205 : vector<8x128xf32>
    %208 = arith.divf %206, %207 : vector<8x128xf32>
    %209 = vector.extract_strided_slice %196 {offsets = [0, 256], sizes = [8, 128], strides = [1, 1]} : vector<8x512xf32> to vector<8x128xf32>
    %210 = math.tanh %209 : vector<8x128xf32>
    %211 = vector.extract_strided_slice %196 {offsets = [0, 384], sizes = [8, 128], strides = [1, 1]} : vector<8x512xf32> to vector<8x128xf32>
    %212 = arith.negf %211 : vector<8x128xf32>
    %213 = math.exp %212 : vector<8x128xf32>
    %cst_63 = arith.constant 1.000000e+00 : f32
    %214 = vector.broadcast %cst_63 : f32 to vector<8x128xf32>
    %215 = arith.addf %214, %213 : vector<8x128xf32>
    %216 = arith.divf %214, %215 : vector<8x128xf32>
    %217 = arith.mulf %208, %184 : vector<8x128xf32>
    %218 = arith.mulf %202, %210 : vector<8x128xf32>
    %219 = arith.addf %217, %218 : vector<8x128xf32>
    %220 = math.tanh %219 : vector<8x128xf32>
    %221 = arith.mulf %216, %220 : vector<8x128xf32>
    %222 = arith.index_cast %c5_i32 : i32 to index
    %c0_64 = arith.constant 0 : index
    %c0_65 = arith.constant 0 : index
    %223 = vector.load %arg6[%222, %c0_64, %c0_65] : memref<8x8x128xf32, #tpu.memory_space<vmem>>, vector<1x8x128xf32>
    %224 = vector.shape_cast %223 : vector<1x8x128xf32> to vector<8x128xf32>
    %225 = vector.shape_cast %221 : vector<8x128xf32> to vector<1x8x128xf32>
    tpu.vector_store %arg6[%222, %c0_64, %c0_65], %225 {strides = array<i32>} : memref<8x8x128xf32, #tpu.memory_space<vmem>>, vector<1x8x128xf32>,
    %c6_i32 = arith.constant 6 : i32
    %226 = arith.index_cast %c6_i32 : i32 to index
    %c0_66 = arith.constant 0 : index
    %c0_67 = arith.constant 0 : index
    %227 = vector.load %arg9[%226, %c0_66, %c0_67] : memref<8x8x512xf32, #tpu.memory_space<vmem>>, vector<1x8x512xf32>
    %228 = vector.shape_cast %227 : vector<1x8x512xf32> to vector<8x512xf32>
    %229 = arith.truncf %221 : vector<8x128xf32> to vector<8x128xbf16>
    %cst_68 = arith.constant dense<0.000000e+00> : vector<8x512xf32>
    %230 = tpu.matmul %229, %15, %cst_68 {dimension_numbers = #tpu.dot_dimension_numbers<[1], [0], [0], [1], [0, 0, 1, 1], [], []>} : vector<8x128xbf16>, vector<128x512xbf16>, vector<8x512xf32> -> vector<8x512xf32>
    %231 = arith.addf %228, %230 : vector<8x512xf32>
    %232 = vector.extract_strided_slice %231 {offsets = [0, 0], sizes = [8, 128], strides = [1, 1]} : vector<8x512xf32> to vector<8x128xf32>
    %233 = arith.negf %232 : vector<8x128xf32>
    %234 = math.exp %233 : vector<8x128xf32>
    %cst_69 = arith.constant 1.000000e+00 : f32
    %235 = vector.broadcast %cst_69 : f32 to vector<8x128xf32>
    %236 = arith.addf %235, %234 : vector<8x128xf32>
    %237 = arith.divf %235, %236 : vector<8x128xf32>
    %238 = vector.extract_strided_slice %231 {offsets = [0, 128], sizes = [8, 128], strides = [1, 1]} : vector<8x512xf32> to vector<8x128xf32>
    %239 = arith.negf %238 : vector<8x128xf32>
    %240 = math.exp %239 : vector<8x128xf32>
    %cst_70 = arith.constant 1.000000e+00 : f32
    %241 = vector.broadcast %cst_70 : f32 to vector<8x128xf32>
    %242 = arith.addf %241, %240 : vector<8x128xf32>
    %243 = arith.divf %241, %242 : vector<8x128xf32>
    %244 = vector.extract_strided_slice %231 {offsets = [0, 256], sizes = [8, 128], strides = [1, 1]} : vector<8x512xf32> to vector<8x128xf32>
    %245 = math.tanh %244 : vector<8x128xf32>
    %246 = vector.extract_strided_slice %231 {offsets = [0, 384], sizes = [8, 128], strides = [1, 1]} : vector<8x512xf32> to vector<8x128xf32>
    %247 = arith.negf %246 : vector<8x128xf32>
    %248 = math.exp %247 : vector<8x128xf32>
    %cst_71 = arith.constant 1.000000e+00 : f32
    %249 = vector.broadcast %cst_71 : f32 to vector<8x128xf32>
    %250 = arith.addf %249, %248 : vector<8x128xf32>
    %251 = arith.divf %249, %250 : vector<8x128xf32>
    %252 = arith.mulf %243, %219 : vector<8x128xf32>
    %253 = arith.mulf %237, %245 : vector<8x128xf32>
    %254 = arith.addf %252, %253 : vector<8x128xf32>
    %255 = math.tanh %254 : vector<8x128xf32>
    %256 = arith.mulf %251, %255 : vector<8x128xf32>
    %257 = arith.index_cast %c6_i32 : i32 to index
    %c0_72 = arith.constant 0 : index
    %c0_73 = arith.constant 0 : index
    %258 = vector.load %arg6[%257, %c0_72, %c0_73] : memref<8x8x128xf32, #tpu.memory_space<vmem>>, vector<1x8x128xf32>
    %259 = vector.shape_cast %258 : vector<1x8x128xf32> to vector<8x128xf32>
    %260 = vector.shape_cast %256 : vector<8x128xf32> to vector<1x8x128xf32>
    tpu.vector_store %arg6[%257, %c0_72, %c0_73], %260 {strides = array<i32>} : memref<8x8x128xf32, #tpu.memory_space<vmem>>, vector<1x8x128xf32>,
    %c7_i32 = arith.constant 7 : i32
    %261 = arith.index_cast %c7_i32 : i32 to index
    %c0_74 = arith.constant 0 : index
    %c0_75 = arith.constant 0 : index
    %262 = vector.load %arg9[%261, %c0_74, %c0_75] : memref<8x8x512xf32, #tpu.memory_space<vmem>>, vector<1x8x512xf32>
    %263 = vector.shape_cast %262 : vector<1x8x512xf32> to vector<8x512xf32>
    %264 = arith.truncf %256 : vector<8x128xf32> to vector<8x128xbf16>
    %cst_76 = arith.constant dense<0.000000e+00> : vector<8x512xf32>
    %265 = tpu.matmul %264, %15, %cst_76 {dimension_numbers = #tpu.dot_dimension_numbers<[1], [0], [0], [1], [0, 0, 1, 1], [], []>} : vector<8x128xbf16>, vector<128x512xbf16>, vector<8x512xf32> -> vector<8x512xf32>
    %266 = arith.addf %263, %265 : vector<8x512xf32>
    %267 = vector.extract_strided_slice %266 {offsets = [0, 0], sizes = [8, 128], strides = [1, 1]} : vector<8x512xf32> to vector<8x128xf32>
    %268 = arith.negf %267 : vector<8x128xf32>
    %269 = math.exp %268 : vector<8x128xf32>
    %cst_77 = arith.constant 1.000000e+00 : f32
    %270 = vector.broadcast %cst_77 : f32 to vector<8x128xf32>
    %271 = arith.addf %270, %269 : vector<8x128xf32>
    %272 = arith.divf %270, %271 : vector<8x128xf32>
    %273 = vector.extract_strided_slice %266 {offsets = [0, 128], sizes = [8, 128], strides = [1, 1]} : vector<8x512xf32> to vector<8x128xf32>
    %274 = arith.negf %273 : vector<8x128xf32>
    %275 = math.exp %274 : vector<8x128xf32>
    %cst_78 = arith.constant 1.000000e+00 : f32
    %276 = vector.broadcast %cst_78 : f32 to vector<8x128xf32>
    %277 = arith.addf %276, %275 : vector<8x128xf32>
    %278 = arith.divf %276, %277 : vector<8x128xf32>
    %279 = vector.extract_strided_slice %266 {offsets = [0, 256], sizes = [8, 128], strides = [1, 1]} : vector<8x512xf32> to vector<8x128xf32>
    %280 = math.tanh %279 : vector<8x128xf32>
    %281 = vector.extract_strided_slice %266 {offsets = [0, 384], sizes = [8, 128], strides = [1, 1]} : vector<8x512xf32> to vector<8x128xf32>
    %282 = arith.negf %281 : vector<8x128xf32>
    %283 = math.exp %282 : vector<8x128xf32>
    %cst_79 = arith.constant 1.000000e+00 : f32
    %284 = vector.broadcast %cst_79 : f32 to vector<8x128xf32>
    %285 = arith.addf %284, %283 : vector<8x128xf32>
    %286 = arith.divf %284, %285 : vector<8x128xf32>
    %287 = arith.mulf %278, %254 : vector<8x128xf32>
    %288 = arith.mulf %272, %280 : vector<8x128xf32>
    %289 = arith.addf %287, %288 : vector<8x128xf32>
    %290 = math.tanh %289 : vector<8x128xf32>
    %291 = arith.mulf %286, %290 : vector<8x128xf32>
    %292 = arith.index_cast %c7_i32 : i32 to index
    %c0_80 = arith.constant 0 : index
    %c0_81 = arith.constant 0 : index
    %293 = vector.load %arg6[%292, %c0_80, %c0_81] : memref<8x8x128xf32, #tpu.memory_space<vmem>>, vector<1x8x128xf32>
    %294 = vector.shape_cast %293 : vector<1x8x128xf32> to vector<8x128xf32>
    %295 = vector.shape_cast %291 : vector<8x128xf32> to vector<1x8x128xf32>
    tpu.vector_store %arg6[%292, %c0_80, %c0_81], %295 {strides = array<i32>} : memref<8x8x128xf32, #tpu.memory_space<vmem>>, vector<1x8x128xf32>,
    %c8_i32 = arith.constant 8 : i32
    %c0_82 = arith.constant 0 : index
    %c0_83 = arith.constant 0 : index
    %c0_84 = arith.constant 0 : index
    %296 = vector.load %arg6[%c0_82, %c0_83, %c0_84] : memref<8x8x128xf32, #tpu.memory_space<vmem>>, vector<8x8x128xf32>
    %297 = arith.truncf %296 : vector<8x8x128xf32> to vector<8x8x128xbf16>
    %298 = vector.shape_cast %297 : vector<8x8x128xbf16> to vector<64x128xbf16>
    %c1 = arith.constant 1 : index
    %c0_85 = arith.constant 0 : index
    %c0_86 = arith.constant 0 : index
    %299 = vector.load %arg1[%c1, %c0_85, %c0_86] : memref<2x128x512xbf16, #tpu.memory_space<vmem>>, vector<1x128x512xbf16>
    %300 = vector.shape_cast %299 : vector<1x128x512xbf16> to vector<128x512xbf16>
    %cst_87 = arith.constant dense<0.000000e+00> : vector<64x512xf32>
    %301 = tpu.matmul %298, %300, %cst_87 {dimension_numbers = #tpu.dot_dimension_numbers<[1], [0], [0], [1], [0, 0, 1, 1], [], []>} : vector<64x128xbf16>, vector<128x512xbf16>, vector<64x512xf32> -> vector<64x512xf32>
    %c1_88 = arith.constant 1 : index
    %c0_89 = arith.constant 0 : index
    %c0_90 = arith.constant 0 : index
    %302 = vector.load %arg3[%c1_88, %c0_89, %c0_90] : memref<2x1x512xf32, #tpu.memory_space<vmem>>, vector<1x1x512xf32>
    %303 = vector.shape_cast %302 : vector<1x1x512xf32> to vector<1x512xf32>
    %304 = vector.broadcast %303 : vector<1x512xf32> to vector<64x512xf32>
    %305 = arith.addf %301, %304 : vector<64x512xf32>
    %306 = vector.shape_cast %305 : vector<64x512xf32> to vector<8x8x512xf32>
    %c0_91 = arith.constant 0 : index
    %c0_92 = arith.constant 0 : index
    %c0_93 = arith.constant 0 : index
    %307 = vector.load %arg9[%c0_91, %c0_92, %c0_93] : memref<8x8x512xf32, #tpu.memory_space<vmem>>, vector<8x8x512xf32>
    tpu.vector_store %arg9[%c0_91, %c0_92, %c0_93], %306 {strides = array<i32>} : memref<8x8x512xf32, #tpu.memory_space<vmem>>, vector<8x8x512xf32>,
    %c1_94 = arith.constant 1 : index
    %c0_95 = arith.constant 0 : index
    %c0_96 = arith.constant 0 : index
    %308 = vector.load %arg2[%c1_94, %c0_95, %c0_96] : memref<2x128x512xbf16, #tpu.memory_space<vmem>>, vector<1x128x512xbf16>
    %309 = vector.shape_cast %308 : vector<1x128x512xbf16> to vector<128x512xbf16>
    %c0_i32_97 = arith.constant 0 : i32
    %310 = arith.index_cast %c0_i32_97 : i32 to index
    %c0_98 = arith.constant 0 : index
    %c0_99 = arith.constant 0 : index
    %311 = vector.load %arg9[%310, %c0_98, %c0_99] : memref<8x8x512xf32, #tpu.memory_space<vmem>>, vector<1x8x512xf32>
    %312 = vector.shape_cast %311 : vector<1x8x512xf32> to vector<8x512xf32>
    %313 = arith.truncf %291 : vector<8x128xf32> to vector<8x128xbf16>
    %cst_100 = arith.constant dense<0.000000e+00> : vector<8x512xf32>
    %314 = tpu.matmul %313, %309, %cst_100 {dimension_numbers = #tpu.dot_dimension_numbers<[1], [0], [0], [1], [0, 0, 1, 1], [], []>} : vector<8x128xbf16>, vector<128x512xbf16>, vector<8x512xf32> -> vector<8x512xf32>
    %315 = arith.addf %312, %314 : vector<8x512xf32>
    %316 = vector.extract_strided_slice %315 {offsets = [0, 0], sizes = [8, 128], strides = [1, 1]} : vector<8x512xf32> to vector<8x128xf32>
    %317 = arith.negf %316 : vector<8x128xf32>
    %318 = math.exp %317 : vector<8x128xf32>
    %cst_101 = arith.constant 1.000000e+00 : f32
    %319 = vector.broadcast %cst_101 : f32 to vector<8x128xf32>
    %320 = arith.addf %319, %318 : vector<8x128xf32>
    %321 = arith.divf %319, %320 : vector<8x128xf32>
    %322 = vector.extract_strided_slice %315 {offsets = [0, 128], sizes = [8, 128], strides = [1, 1]} : vector<8x512xf32> to vector<8x128xf32>
    %323 = arith.negf %322 : vector<8x128xf32>
    %324 = math.exp %323 : vector<8x128xf32>
    %cst_102 = arith.constant 1.000000e+00 : f32
    %325 = vector.broadcast %cst_102 : f32 to vector<8x128xf32>
    %326 = arith.addf %325, %324 : vector<8x128xf32>
    %327 = arith.divf %325, %326 : vector<8x128xf32>
    %328 = vector.extract_strided_slice %315 {offsets = [0, 256], sizes = [8, 128], strides = [1, 1]} : vector<8x512xf32> to vector<8x128xf32>
    %329 = math.tanh %328 : vector<8x128xf32>
    %330 = vector.extract_strided_slice %315 {offsets = [0, 384], sizes = [8, 128], strides = [1, 1]} : vector<8x512xf32> to vector<8x128xf32>
    %331 = arith.negf %330 : vector<8x128xf32>
    %332 = math.exp %331 : vector<8x128xf32>
    %cst_103 = arith.constant 1.000000e+00 : f32
    %333 = vector.broadcast %cst_103 : f32 to vector<8x128xf32>
    %334 = arith.addf %333, %332 : vector<8x128xf32>
    %335 = arith.divf %333, %334 : vector<8x128xf32>
    %336 = arith.mulf %327, %289 : vector<8x128xf32>
    %337 = arith.mulf %321, %329 : vector<8x128xf32>
    %338 = arith.addf %336, %337 : vector<8x128xf32>
    %339 = math.tanh %338 : vector<8x128xf32>
    %340 = arith.mulf %335, %339 : vector<8x128xf32>
    %341 = arith.index_cast %c0_i32_97 : i32 to index
    %c0_104 = arith.constant 0 : index
    %c0_105 = arith.constant 0 : index
    %342 = vector.load %arg6[%341, %c0_104, %c0_105] : memref<8x8x128xf32, #tpu.memory_space<vmem>>, vector<1x8x128xf32>
    %343 = vector.shape_cast %342 : vector<1x8x128xf32> to vector<8x128xf32>
    %344 = vector.shape_cast %340 : vector<8x128xf32> to vector<1x8x128xf32>
    tpu.vector_store %arg6[%341, %c0_104, %c0_105], %344 {strides = array<i32>} : memref<8x8x128xf32, #tpu.memory_space<vmem>>, vector<1x8x128xf32>,
    %c1_i32_106 = arith.constant 1 : i32
    %345 = arith.index_cast %c1_i32_106 : i32 to index
    %c0_107 = arith.constant 0 : index
    %c0_108 = arith.constant 0 : index
    %346 = vector.load %arg9[%345, %c0_107, %c0_108] : memref<8x8x512xf32, #tpu.memory_space<vmem>>, vector<1x8x512xf32>
    %347 = vector.shape_cast %346 : vector<1x8x512xf32> to vector<8x512xf32>
    %348 = arith.truncf %340 : vector<8x128xf32> to vector<8x128xbf16>
    %cst_109 = arith.constant dense<0.000000e+00> : vector<8x512xf32>
    %349 = tpu.matmul %348, %309, %cst_109 {dimension_numbers = #tpu.dot_dimension_numbers<[1], [0], [0], [1], [0, 0, 1, 1], [], []>} : vector<8x128xbf16>, vector<128x512xbf16>, vector<8x512xf32> -> vector<8x512xf32>
    %350 = arith.addf %347, %349 : vector<8x512xf32>
    %351 = vector.extract_strided_slice %350 {offsets = [0, 0], sizes = [8, 128], strides = [1, 1]} : vector<8x512xf32> to vector<8x128xf32>
    %352 = arith.negf %351 : vector<8x128xf32>
    %353 = math.exp %352 : vector<8x128xf32>
    %cst_110 = arith.constant 1.000000e+00 : f32
    %354 = vector.broadcast %cst_110 : f32 to vector<8x128xf32>
    %355 = arith.addf %354, %353 : vector<8x128xf32>
    %356 = arith.divf %354, %355 : vector<8x128xf32>
    %357 = vector.extract_strided_slice %350 {offsets = [0, 128], sizes = [8, 128], strides = [1, 1]} : vector<8x512xf32> to vector<8x128xf32>
    %358 = arith.negf %357 : vector<8x128xf32>
    %359 = math.exp %358 : vector<8x128xf32>
    %cst_111 = arith.constant 1.000000e+00 : f32
    %360 = vector.broadcast %cst_111 : f32 to vector<8x128xf32>
    %361 = arith.addf %360, %359 : vector<8x128xf32>
    %362 = arith.divf %360, %361 : vector<8x128xf32>
    %363 = vector.extract_strided_slice %350 {offsets = [0, 256], sizes = [8, 128], strides = [1, 1]} : vector<8x512xf32> to vector<8x128xf32>
    %364 = math.tanh %363 : vector<8x128xf32>
    %365 = vector.extract_strided_slice %350 {offsets = [0, 384], sizes = [8, 128], strides = [1, 1]} : vector<8x512xf32> to vector<8x128xf32>
    %366 = arith.negf %365 : vector<8x128xf32>
    %367 = math.exp %366 : vector<8x128xf32>
    %cst_112 = arith.constant 1.000000e+00 : f32
    %368 = vector.broadcast %cst_112 : f32 to vector<8x128xf32>
    %369 = arith.addf %368, %367 : vector<8x128xf32>
    %370 = arith.divf %368, %369 : vector<8x128xf32>
    %371 = arith.mulf %362, %338 : vector<8x128xf32>
    %372 = arith.mulf %356, %364 : vector<8x128xf32>
    %373 = arith.addf %371, %372 : vector<8x128xf32>
    %374 = math.tanh %373 : vector<8x128xf32>
    %375 = arith.mulf %370, %374 : vector<8x128xf32>
    %376 = arith.index_cast %c1_i32_106 : i32 to index
    %c0_113 = arith.constant 0 : index
    %c0_114 = arith.constant 0 : index
    %377 = vector.load %arg6[%376, %c0_113, %c0_114] : memref<8x8x128xf32, #tpu.memory_space<vmem>>, vector<1x8x128xf32>
    %378 = vector.shape_cast %377 : vector<1x8x128xf32> to vector<8x128xf32>
    %379 = vector.shape_cast %375 : vector<8x128xf32> to vector<1x8x128xf32>
    tpu.vector_store %arg6[%376, %c0_113, %c0_114], %379 {strides = array<i32>} : memref<8x8x128xf32, #tpu.memory_space<vmem>>, vector<1x8x128xf32>,
    %c2_i32_115 = arith.constant 2 : i32
    %380 = arith.index_cast %c2_i32_115 : i32 to index
    %c0_116 = arith.constant 0 : index
    %c0_117 = arith.constant 0 : index
    %381 = vector.load %arg9[%380, %c0_116, %c0_117] : memref<8x8x512xf32, #tpu.memory_space<vmem>>, vector<1x8x512xf32>
    %382 = vector.shape_cast %381 : vector<1x8x512xf32> to vector<8x512xf32>
    %383 = arith.truncf %375 : vector<8x128xf32> to vector<8x128xbf16>
    %cst_118 = arith.constant dense<0.000000e+00> : vector<8x512xf32>
    %384 = tpu.matmul %383, %309, %cst_118 {dimension_numbers = #tpu.dot_dimension_numbers<[1], [0], [0], [1], [0, 0, 1, 1], [], []>} : vector<8x128xbf16>, vector<128x512xbf16>, vector<8x512xf32> -> vector<8x512xf32>
    %385 = arith.addf %382, %384 : vector<8x512xf32>
    %386 = vector.extract_strided_slice %385 {offsets = [0, 0], sizes = [8, 128], strides = [1, 1]} : vector<8x512xf32> to vector<8x128xf32>
    %387 = arith.negf %386 : vector<8x128xf32>
    %388 = math.exp %387 : vector<8x128xf32>
    %cst_119 = arith.constant 1.000000e+00 : f32
    %389 = vector.broadcast %cst_119 : f32 to vector<8x128xf32>
    %390 = arith.addf %389, %388 : vector<8x128xf32>
    %391 = arith.divf %389, %390 : vector<8x128xf32>
    %392 = vector.extract_strided_slice %385 {offsets = [0, 128], sizes = [8, 128], strides = [1, 1]} : vector<8x512xf32> to vector<8x128xf32>
    %393 = arith.negf %392 : vector<8x128xf32>
    %394 = math.exp %393 : vector<8x128xf32>
    %cst_120 = arith.constant 1.000000e+00 : f32
    %395 = vector.broadcast %cst_120 : f32 to vector<8x128xf32>
    %396 = arith.addf %395, %394 : vector<8x128xf32>
    %397 = arith.divf %395, %396 : vector<8x128xf32>
    %398 = vector.extract_strided_slice %385 {offsets = [0, 256], sizes = [8, 128], strides = [1, 1]} : vector<8x512xf32> to vector<8x128xf32>
    %399 = math.tanh %398 : vector<8x128xf32>
    %400 = vector.extract_strided_slice %385 {offsets = [0, 384], sizes = [8, 128], strides = [1, 1]} : vector<8x512xf32> to vector<8x128xf32>
    %401 = arith.negf %400 : vector<8x128xf32>
    %402 = math.exp %401 : vector<8x128xf32>
    %cst_121 = arith.constant 1.000000e+00 : f32
    %403 = vector.broadcast %cst_121 : f32 to vector<8x128xf32>
    %404 = arith.addf %403, %402 : vector<8x128xf32>
    %405 = arith.divf %403, %404 : vector<8x128xf32>
    %406 = arith.mulf %397, %373 : vector<8x128xf32>
    %407 = arith.mulf %391, %399 : vector<8x128xf32>
    %408 = arith.addf %406, %407 : vector<8x128xf32>
    %409 = math.tanh %408 : vector<8x128xf32>
    %410 = arith.mulf %405, %409 : vector<8x128xf32>
    %411 = arith.index_cast %c2_i32_115 : i32 to index
    %c0_122 = arith.constant 0 : index
    %c0_123 = arith.constant 0 : index
    %412 = vector.load %arg6[%411, %c0_122, %c0_123] : memref<8x8x128xf32, #tpu.memory_space<vmem>>, vector<1x8x128xf32>
    %413 = vector.shape_cast %412 : vector<1x8x128xf32> to vector<8x128xf32>
    %414 = vector.shape_cast %410 : vector<8x128xf32> to vector<1x8x128xf32>
    tpu.vector_store %arg6[%411, %c0_122, %c0_123], %414 {strides = array<i32>} : memref<8x8x128xf32, #tpu.memory_space<vmem>>, vector<1x8x128xf32>,
    %c3_i32_124 = arith.constant 3 : i32
    %415 = arith.index_cast %c3_i32_124 : i32 to index
    %c0_125 = arith.constant 0 : index
    %c0_126 = arith.constant 0 : index
    %416 = vector.load %arg9[%415, %c0_125, %c0_126] : memref<8x8x512xf32, #tpu.memory_space<vmem>>, vector<1x8x512xf32>
    %417 = vector.shape_cast %416 : vector<1x8x512xf32> to vector<8x512xf32>
    %418 = arith.truncf %410 : vector<8x128xf32> to vector<8x128xbf16>
    %cst_127 = arith.constant dense<0.000000e+00> : vector<8x512xf32>
    %419 = tpu.matmul %418, %309, %cst_127 {dimension_numbers = #tpu.dot_dimension_numbers<[1], [0], [0], [1], [0, 0, 1, 1], [], []>} : vector<8x128xbf16>, vector<128x512xbf16>, vector<8x512xf32> -> vector<8x512xf32>
    %420 = arith.addf %417, %419 : vector<8x512xf32>
    %421 = vector.extract_strided_slice %420 {offsets = [0, 0], sizes = [8, 128], strides = [1, 1]} : vector<8x512xf32> to vector<8x128xf32>
    %422 = arith.negf %421 : vector<8x128xf32>
    %423 = math.exp %422 : vector<8x128xf32>
    %cst_128 = arith.constant 1.000000e+00 : f32
    %424 = vector.broadcast %cst_128 : f32 to vector<8x128xf32>
    %425 = arith.addf %424, %423 : vector<8x128xf32>
    %426 = arith.divf %424, %425 : vector<8x128xf32>
    %427 = vector.extract_strided_slice %420 {offsets = [0, 128], sizes = [8, 128], strides = [1, 1]} : vector<8x512xf32> to vector<8x128xf32>
    %428 = arith.negf %427 : vector<8x128xf32>
    %429 = math.exp %428 : vector<8x128xf32>
    %cst_129 = arith.constant 1.000000e+00 : f32
    %430 = vector.broadcast %cst_129 : f32 to vector<8x128xf32>
    %431 = arith.addf %430, %429 : vector<8x128xf32>
    %432 = arith.divf %430, %431 : vector<8x128xf32>
    %433 = vector.extract_strided_slice %420 {offsets = [0, 256], sizes = [8, 128], strides = [1, 1]} : vector<8x512xf32> to vector<8x128xf32>
    %434 = math.tanh %433 : vector<8x128xf32>
    %435 = vector.extract_strided_slice %420 {offsets = [0, 384], sizes = [8, 128], strides = [1, 1]} : vector<8x512xf32> to vector<8x128xf32>
    %436 = arith.negf %435 : vector<8x128xf32>
    %437 = math.exp %436 : vector<8x128xf32>
    %cst_130 = arith.constant 1.000000e+00 : f32
    %438 = vector.broadcast %cst_130 : f32 to vector<8x128xf32>
    %439 = arith.addf %438, %437 : vector<8x128xf32>
    %440 = arith.divf %438, %439 : vector<8x128xf32>
    %441 = arith.mulf %432, %408 : vector<8x128xf32>
    %442 = arith.mulf %426, %434 : vector<8x128xf32>
    %443 = arith.addf %441, %442 : vector<8x128xf32>
    %444 = math.tanh %443 : vector<8x128xf32>
    %445 = arith.mulf %440, %444 : vector<8x128xf32>
    %446 = arith.index_cast %c3_i32_124 : i32 to index
    %c0_131 = arith.constant 0 : index
    %c0_132 = arith.constant 0 : index
    %447 = vector.load %arg6[%446, %c0_131, %c0_132] : memref<8x8x128xf32, #tpu.memory_space<vmem>>, vector<1x8x128xf32>
    %448 = vector.shape_cast %447 : vector<1x8x128xf32> to vector<8x128xf32>
    %449 = vector.shape_cast %445 : vector<8x128xf32> to vector<1x8x128xf32>
    tpu.vector_store %arg6[%446, %c0_131, %c0_132], %449 {strides = array<i32>} : memref<8x8x128xf32, #tpu.memory_space<vmem>>, vector<1x8x128xf32>,
    %c4_i32_133 = arith.constant 4 : i32
    %450 = arith.index_cast %c4_i32_133 : i32 to index
    %c0_134 = arith.constant 0 : index
    %c0_135 = arith.constant 0 : index
    %451 = vector.load %arg9[%450, %c0_134, %c0_135] : memref<8x8x512xf32, #tpu.memory_space<vmem>>, vector<1x8x512xf32>
    %452 = vector.shape_cast %451 : vector<1x8x512xf32> to vector<8x512xf32>
    %453 = arith.truncf %445 : vector<8x128xf32> to vector<8x128xbf16>
    %cst_136 = arith.constant dense<0.000000e+00> : vector<8x512xf32>
    %454 = tpu.matmul %453, %309, %cst_136 {dimension_numbers = #tpu.dot_dimension_numbers<[1], [0], [0], [1], [0, 0, 1, 1], [], []>} : vector<8x128xbf16>, vector<128x512xbf16>, vector<8x512xf32> -> vector<8x512xf32>
    %455 = arith.addf %452, %454 : vector<8x512xf32>
    %456 = vector.extract_strided_slice %455 {offsets = [0, 0], sizes = [8, 128], strides = [1, 1]} : vector<8x512xf32> to vector<8x128xf32>
    %457 = arith.negf %456 : vector<8x128xf32>
    %458 = math.exp %457 : vector<8x128xf32>
    %cst_137 = arith.constant 1.000000e+00 : f32
    %459 = vector.broadcast %cst_137 : f32 to vector<8x128xf32>
    %460 = arith.addf %459, %458 : vector<8x128xf32>
    %461 = arith.divf %459, %460 : vector<8x128xf32>
    %462 = vector.extract_strided_slice %455 {offsets = [0, 128], sizes = [8, 128], strides = [1, 1]} : vector<8x512xf32> to vector<8x128xf32>
    %463 = arith.negf %462 : vector<8x128xf32>
    %464 = math.exp %463 : vector<8x128xf32>
    %cst_138 = arith.constant 1.000000e+00 : f32
    %465 = vector.broadcast %cst_138 : f32 to vector<8x128xf32>
    %466 = arith.addf %465, %464 : vector<8x128xf32>
    %467 = arith.divf %465, %466 : vector<8x128xf32>
    %468 = vector.extract_strided_slice %455 {offsets = [0, 256], sizes = [8, 128], strides = [1, 1]} : vector<8x512xf32> to vector<8x128xf32>
    %469 = math.tanh %468 : vector<8x128xf32>
    %470 = vector.extract_strided_slice %455 {offsets = [0, 384], sizes = [8, 128], strides = [1, 1]} : vector<8x512xf32> to vector<8x128xf32>
    %471 = arith.negf %470 : vector<8x128xf32>
    %472 = math.exp %471 : vector<8x128xf32>
    %cst_139 = arith.constant 1.000000e+00 : f32
    %473 = vector.broadcast %cst_139 : f32 to vector<8x128xf32>
    %474 = arith.addf %473, %472 : vector<8x128xf32>
    %475 = arith.divf %473, %474 : vector<8x128xf32>
    %476 = arith.mulf %467, %443 : vector<8x128xf32>
    %477 = arith.mulf %461, %469 : vector<8x128xf32>
    %478 = arith.addf %476, %477 : vector<8x128xf32>
    %479 = math.tanh %478 : vector<8x128xf32>
    %480 = arith.mulf %475, %479 : vector<8x128xf32>
    %481 = arith.index_cast %c4_i32_133 : i32 to index
    %c0_140 = arith.constant 0 : index
    %c0_141 = arith.constant 0 : index
    %482 = vector.load %arg6[%481, %c0_140, %c0_141] : memref<8x8x128xf32, #tpu.memory_space<vmem>>, vector<1x8x128xf32>
    %483 = vector.shape_cast %482 : vector<1x8x128xf32> to vector<8x128xf32>
    %484 = vector.shape_cast %480 : vector<8x128xf32> to vector<1x8x128xf32>
    tpu.vector_store %arg6[%481, %c0_140, %c0_141], %484 {strides = array<i32>} : memref<8x8x128xf32, #tpu.memory_space<vmem>>, vector<1x8x128xf32>,
    %c5_i32_142 = arith.constant 5 : i32
    %485 = arith.index_cast %c5_i32_142 : i32 to index
    %c0_143 = arith.constant 0 : index
    %c0_144 = arith.constant 0 : index
    %486 = vector.load %arg9[%485, %c0_143, %c0_144] : memref<8x8x512xf32, #tpu.memory_space<vmem>>, vector<1x8x512xf32>
    %487 = vector.shape_cast %486 : vector<1x8x512xf32> to vector<8x512xf32>
    %488 = arith.truncf %480 : vector<8x128xf32> to vector<8x128xbf16>
    %cst_145 = arith.constant dense<0.000000e+00> : vector<8x512xf32>
    %489 = tpu.matmul %488, %309, %cst_145 {dimension_numbers = #tpu.dot_dimension_numbers<[1], [0], [0], [1], [0, 0, 1, 1], [], []>} : vector<8x128xbf16>, vector<128x512xbf16>, vector<8x512xf32> -> vector<8x512xf32>
    %490 = arith.addf %487, %489 : vector<8x512xf32>
    %491 = vector.extract_strided_slice %490 {offsets = [0, 0], sizes = [8, 128], strides = [1, 1]} : vector<8x512xf32> to vector<8x128xf32>
    %492 = arith.negf %491 : vector<8x128xf32>
    %493 = math.exp %492 : vector<8x128xf32>
    %cst_146 = arith.constant 1.000000e+00 : f32
    %494 = vector.broadcast %cst_146 : f32 to vector<8x128xf32>
    %495 = arith.addf %494, %493 : vector<8x128xf32>
    %496 = arith.divf %494, %495 : vector<8x128xf32>
    %497 = vector.extract_strided_slice %490 {offsets = [0, 128], sizes = [8, 128], strides = [1, 1]} : vector<8x512xf32> to vector<8x128xf32>
    %498 = arith.negf %497 : vector<8x128xf32>
    %499 = math.exp %498 : vector<8x128xf32>
    %cst_147 = arith.constant 1.000000e+00 : f32
    %500 = vector.broadcast %cst_147 : f32 to vector<8x128xf32>
    %501 = arith.addf %500, %499 : vector<8x128xf32>
    %502 = arith.divf %500, %501 : vector<8x128xf32>
    %503 = vector.extract_strided_slice %490 {offsets = [0, 256], sizes = [8, 128], strides = [1, 1]} : vector<8x512xf32> to vector<8x128xf32>
    %504 = math.tanh %503 : vector<8x128xf32>
    %505 = vector.extract_strided_slice %490 {offsets = [0, 384], sizes = [8, 128], strides = [1, 1]} : vector<8x512xf32> to vector<8x128xf32>
    %506 = arith.negf %505 : vector<8x128xf32>
    %507 = math.exp %506 : vector<8x128xf32>
    %cst_148 = arith.constant 1.000000e+00 : f32
    %508 = vector.broadcast %cst_148 : f32 to vector<8x128xf32>
    %509 = arith.addf %508, %507 : vector<8x128xf32>
    %510 = arith.divf %508, %509 : vector<8x128xf32>
    %511 = arith.mulf %502, %478 : vector<8x128xf32>
    %512 = arith.mulf %496, %504 : vector<8x128xf32>
    %513 = arith.addf %511, %512 : vector<8x128xf32>
    %514 = math.tanh %513 : vector<8x128xf32>
    %515 = arith.mulf %510, %514 : vector<8x128xf32>
    %516 = arith.index_cast %c5_i32_142 : i32 to index
    %c0_149 = arith.constant 0 : index
    %c0_150 = arith.constant 0 : index
    %517 = vector.load %arg6[%516, %c0_149, %c0_150] : memref<8x8x128xf32, #tpu.memory_space<vmem>>, vector<1x8x128xf32>
    %518 = vector.shape_cast %517 : vector<1x8x128xf32> to vector<8x128xf32>
    %519 = vector.shape_cast %515 : vector<8x128xf32> to vector<1x8x128xf32>
    tpu.vector_store %arg6[%516, %c0_149, %c0_150], %519 {strides = array<i32>} : memref<8x8x128xf32, #tpu.memory_space<vmem>>, vector<1x8x128xf32>,
    %c6_i32_151 = arith.constant 6 : i32
    %520 = arith.index_cast %c6_i32_151 : i32 to index
    %c0_152 = arith.constant 0 : index
    %c0_153 = arith.constant 0 : index
    %521 = vector.load %arg9[%520, %c0_152, %c0_153] : memref<8x8x512xf32, #tpu.memory_space<vmem>>, vector<1x8x512xf32>
    %522 = vector.shape_cast %521 : vector<1x8x512xf32> to vector<8x512xf32>
    %523 = arith.truncf %515 : vector<8x128xf32> to vector<8x128xbf16>
    %cst_154 = arith.constant dense<0.000000e+00> : vector<8x512xf32>
    %524 = tpu.matmul %523, %309, %cst_154 {dimension_numbers = #tpu.dot_dimension_numbers<[1], [0], [0], [1], [0, 0, 1, 1], [], []>} : vector<8x128xbf16>, vector<128x512xbf16>, vector<8x512xf32> -> vector<8x512xf32>
    %525 = arith.addf %522, %524 : vector<8x512xf32>
    %526 = vector.extract_strided_slice %525 {offsets = [0, 0], sizes = [8, 128], strides = [1, 1]} : vector<8x512xf32> to vector<8x128xf32>
    %527 = arith.negf %526 : vector<8x128xf32>
    %528 = math.exp %527 : vector<8x128xf32>
    %cst_155 = arith.constant 1.000000e+00 : f32
    %529 = vector.broadcast %cst_155 : f32 to vector<8x128xf32>
    %530 = arith.addf %529, %528 : vector<8x128xf32>
    %531 = arith.divf %529, %530 : vector<8x128xf32>
    %532 = vector.extract_strided_slice %525 {offsets = [0, 128], sizes = [8, 128], strides = [1, 1]} : vector<8x512xf32> to vector<8x128xf32>
    %533 = arith.negf %532 : vector<8x128xf32>
    %534 = math.exp %533 : vector<8x128xf32>
    %cst_156 = arith.constant 1.000000e+00 : f32
    %535 = vector.broadcast %cst_156 : f32 to vector<8x128xf32>
    %536 = arith.addf %535, %534 : vector<8x128xf32>
    %537 = arith.divf %535, %536 : vector<8x128xf32>
    %538 = vector.extract_strided_slice %525 {offsets = [0, 256], sizes = [8, 128], strides = [1, 1]} : vector<8x512xf32> to vector<8x128xf32>
    %539 = math.tanh %538 : vector<8x128xf32>
    %540 = vector.extract_strided_slice %525 {offsets = [0, 384], sizes = [8, 128], strides = [1, 1]} : vector<8x512xf32> to vector<8x128xf32>
    %541 = arith.negf %540 : vector<8x128xf32>
    %542 = math.exp %541 : vector<8x128xf32>
    %cst_157 = arith.constant 1.000000e+00 : f32
    %543 = vector.broadcast %cst_157 : f32 to vector<8x128xf32>
    %544 = arith.addf %543, %542 : vector<8x128xf32>
    %545 = arith.divf %543, %544 : vector<8x128xf32>
    %546 = arith.mulf %537, %513 : vector<8x128xf32>
    %547 = arith.mulf %531, %539 : vector<8x128xf32>
    %548 = arith.addf %546, %547 : vector<8x128xf32>
    %549 = math.tanh %548 : vector<8x128xf32>
    %550 = arith.mulf %545, %549 : vector<8x128xf32>
    %551 = arith.index_cast %c6_i32_151 : i32 to index
    %c0_158 = arith.constant 0 : index
    %c0_159 = arith.constant 0 : index
    %552 = vector.load %arg6[%551, %c0_158, %c0_159] : memref<8x8x128xf32, #tpu.memory_space<vmem>>, vector<1x8x128xf32>
    %553 = vector.shape_cast %552 : vector<1x8x128xf32> to vector<8x128xf32>
    %554 = vector.shape_cast %550 : vector<8x128xf32> to vector<1x8x128xf32>
    tpu.vector_store %arg6[%551, %c0_158, %c0_159], %554 {strides = array<i32>} : memref<8x8x128xf32, #tpu.memory_space<vmem>>, vector<1x8x128xf32>,
    %c7_i32_160 = arith.constant 7 : i32
    %555 = arith.index_cast %c7_i32_160 : i32 to index
    %c0_161 = arith.constant 0 : index
    %c0_162 = arith.constant 0 : index
    %556 = vector.load %arg9[%555, %c0_161, %c0_162] : memref<8x8x512xf32, #tpu.memory_space<vmem>>, vector<1x8x512xf32>
    %557 = vector.shape_cast %556 : vector<1x8x512xf32> to vector<8x512xf32>
    %558 = arith.truncf %550 : vector<8x128xf32> to vector<8x128xbf16>
    %cst_163 = arith.constant dense<0.000000e+00> : vector<8x512xf32>
    %559 = tpu.matmul %558, %309, %cst_163 {dimension_numbers = #tpu.dot_dimension_numbers<[1], [0], [0], [1], [0, 0, 1, 1], [], []>} : vector<8x128xbf16>, vector<128x512xbf16>, vector<8x512xf32> -> vector<8x512xf32>
    %560 = arith.addf %557, %559 : vector<8x512xf32>
    %561 = vector.extract_strided_slice %560 {offsets = [0, 0], sizes = [8, 128], strides = [1, 1]} : vector<8x512xf32> to vector<8x128xf32>
    %562 = arith.negf %561 : vector<8x128xf32>
    %563 = math.exp %562 : vector<8x128xf32>
    %cst_164 = arith.constant 1.000000e+00 : f32
    %564 = vector.broadcast %cst_164 : f32 to vector<8x128xf32>
    %565 = arith.addf %564, %563 : vector<8x128xf32>
    %566 = arith.divf %564, %565 : vector<8x128xf32>
    %567 = vector.extract_strided_slice %560 {offsets = [0, 128], sizes = [8, 128], strides = [1, 1]} : vector<8x512xf32> to vector<8x128xf32>
    %568 = arith.negf %567 : vector<8x128xf32>
    %569 = math.exp %568 : vector<8x128xf32>
    %cst_165 = arith.constant 1.000000e+00 : f32
    %570 = vector.broadcast %cst_165 : f32 to vector<8x128xf32>
    %571 = arith.addf %570, %569 : vector<8x128xf32>
    %572 = arith.divf %570, %571 : vector<8x128xf32>
    %573 = vector.extract_strided_slice %560 {offsets = [0, 256], sizes = [8, 128], strides = [1, 1]} : vector<8x512xf32> to vector<8x128xf32>
    %574 = math.tanh %573 : vector<8x128xf32>
    %575 = vector.extract_strided_slice %560 {offsets = [0, 384], sizes = [8, 128], strides = [1, 1]} : vector<8x512xf32> to vector<8x128xf32>
    %576 = arith.negf %575 : vector<8x128xf32>
    %577 = math.exp %576 : vector<8x128xf32>
    %cst_166 = arith.constant 1.000000e+00 : f32
    %578 = vector.broadcast %cst_166 : f32 to vector<8x128xf32>
    %579 = arith.addf %578, %577 : vector<8x128xf32>
    %580 = arith.divf %578, %579 : vector<8x128xf32>
    %581 = arith.mulf %572, %548 : vector<8x128xf32>
    %582 = arith.mulf %566, %574 : vector<8x128xf32>
    %583 = arith.addf %581, %582 : vector<8x128xf32>
    %584 = math.tanh %583 : vector<8x128xf32>
    %585 = arith.mulf %580, %584 : vector<8x128xf32>
    %586 = arith.index_cast %c7_i32_160 : i32 to index
    %c0_167 = arith.constant 0 : index
    %c0_168 = arith.constant 0 : index
    %587 = vector.load %arg6[%586, %c0_167, %c0_168] : memref<8x8x128xf32, #tpu.memory_space<vmem>>, vector<1x8x128xf32>
    %588 = vector.shape_cast %587 : vector<1x8x128xf32> to vector<8x128xf32>
    %589 = vector.shape_cast %585 : vector<8x128xf32> to vector<1x8x128xf32>
    tpu.vector_store %arg6[%586, %c0_167, %c0_168], %589 {strides = array<i32>} : memref<8x8x128xf32, #tpu.memory_space<vmem>>, vector<1x8x128xf32>,
    %c8_i32_169 = arith.constant 8 : i32
    %c0_170 = arith.constant 0 : index
    %c0_171 = arith.constant 0 : index
    %590 = vector.load %arg7[%c0_170, %c0_171] : memref<8x128xf32, #tpu.memory_space<vmem>>, vector<8x128xf32>
    tpu.vector_store %arg7[%c0_170, %c0_171], %585 {strides = array<i32>} : memref<8x128xf32, #tpu.memory_space<vmem>>, vector<8x128xf32>,
    %c0_172 = arith.constant 0 : index
    %c0_173 = arith.constant 0 : index
    %591 = vector.load %arg8[%c0_172, %c0_173] : memref<8x128xf32, #tpu.memory_space<vmem>>, vector<8x128xf32>
    tpu.vector_store %arg8[%c0_172, %c0_173], %583 {strides = array<i32>} : memref<8x128xf32, #tpu.memory_space<vmem>>, vector<8x128xf32>,
    return
  }
}

</mosaic_0001>

<llo_original>
// kernel: lstm_forward.1
$region0: #{lstm_forward.1}
  #allocation0 [shape = 'u32[]', space=smem, size = 0x4, offset = 0x4, fixed_abs, tag = 'smem constant byte address 0x4 - core index']
  #allocation1 [shape = 'u32[144,128]{1,0:T(1,128)}', space=vmem, size = 0x12000, scoped, tag = 'internal scratch']
  #allocation2 [shape = 'f32[8,8,512]{2,1,0:T(8,128)}', space=vmem, size = 0x20000, scoped, tag = 'scratch operand']
  %s0 = inlined_call_operand.vmem [shape: f32[8,8,128], index: 0, kind: input, shape index: {}]
  %s1 = inlined_call_operand.vmem [shape: bf16[2,128,512], index: 1, kind: input, shape index: {}]
  %s2 = inlined_call_operand.vmem [shape: bf16[2,128,512], index: 2, kind: input, shape index: {}]
  %s3 = inlined_call_operand.vmem [shape: f32[2,1,512], index: 3, kind: input, shape index: {}]
  %s4 = inlined_call_operand.vmem [shape: f32[8,128], index: 4, kind: input, shape index: {}, may-alias: {4,5}]
  %s5 = inlined_call_operand.vmem [shape: f32[8,128], index: 5, kind: input, shape index: {}, may-alias: {4,5}]
  %s6 = inlined_call_operand.hbm [shape: f32[8,8,128], index: 6, kind: output, shape index: {0}]
  %s7 = inlined_call_operand.hbm [shape: f32[8,128], index: 7, kind: output, shape index: {1}]
  %s8 = inlined_call_operand.hbm [shape: f32[8,128], index: 8, kind: output, shape index: {2}]
  %9 = xla_tuple %s6, %s7, %s8
  %s10 = sld [smem:[#allocation0]]
  $region50: #{lstm_forward.1} parent=0
    _
  %s12 = ssub.s32 1, %s10
  %s13 = scalar_select 0, %s12, %s10
  $region1: #{lstm_forward.1} parent=0
    #allocation3 [shape = 'u8[32768]{0}', space=vmem, size = 0x8000, scoped, tag = 'output window, operand 0, single buffered']
    #allocation4 [shape = 's32[1]{0}', space=sflag, size = 0x4, scoped, tag = 'scoped memory for lstm_forward.1']
    #allocation5 [shape = 'u8[4096]{0}', space=vmem, size = 0x1000, scoped, tag = 'output window, operand 1, single buffered']
    #allocation6 [shape = 's32[1]{0}', space=sflag, size = 0x4, scoped, tag = 'scoped memory for lstm_forward.1']
    #allocation7 [shape = 'u8[4096]{0}', space=vmem, size = 0x1000, scoped, tag = 'output window, operand 2, single buffered']
    %14 = vsyncpa [#allocation4], 0
    %15 = vsyncpa [#allocation6], 0
    // Predicated region
    $region2: #{lstm_forward.1} parent=1 // pred_check
      _
    $region3: #{lstm_forward.1} parent=1 // pred_check_branch
      %17 = sbr.rel (0) target = $region5
    $region4: #{lstm_forward.1} parent=1 // pred_region
      _
    $region5: #{lstm_forward.1} parent=1 // pred_fallthru
      _
    // Predicated region
    $region6: #{lstm_forward.1} parent=1 // pred_check
      _
    $region7: #{lstm_forward.1} parent=1 // pred_check_branch
      %19 = sbr.rel (0) target = $region9
    $region8: #{lstm_forward.1} parent=1 // pred_region
      _
    $region9: #{lstm_forward.1} parent=1 // pred_fallthru
      _
    // Predicated region
    $region10: #{lstm_forward.1} parent=1 // pred_check
      _
    $region11: #{lstm_forward.1} parent=1 // pred_check_branch
      %21 = sbr.rel (0) target = $region13
    $region12: #{lstm_forward.1} parent=1 // pred_region
      _
    $region13: #{lstm_forward.1} parent=1 // pred_fallthru
      _
    // Predicated region
    $region14: #{lstm_forward.1} parent=1 // pred_check
      _
    $region15: #{lstm_forward.1} parent=1 // pred_check_branch
      %23 = sbr.rel (0) target = $region17
    $region16: #{lstm_forward.1} parent=1 // pred_region
      _
    $region17: #{lstm_forward.1} parent=1 // pred_fallthru
      _
    // Predicated region
    $region18: #{lstm_forward.1} parent=1 // pred_check
      _
    $region19: #{lstm_forward.1} parent=1 // pred_check_branch
      %25 = sbr.rel (0) target = $region21
    $region20: #{lstm_forward.1} parent=1 // pred_region
      _
    $region21: #{lstm_forward.1} parent=1 // pred_fallthru
      _
    // Predicated region
    $region22: #{lstm_forward.1} parent=1 // pred_check
      _
    $region23: #{lstm_forward.1} parent=1 // pred_check_branch
      %27 = sbr.rel (0) target = $region25
    $region24: #{lstm_forward.1} parent=1 // pred_region
      _
    $region25: #{lstm_forward.1} parent=1 // pred_fallthru
      _
    %v29 = vld [vmem:[%s4] sm:$0xff]
    %v30 = vld [vmem:[%s5] sm:$0xff]
    %v31 = vld [vmem:[%s0] sm:$0xff]
    %v32 = vld [vmem:[%s0 + $0x8] sm:$0xff]
    %v33 = vld [vmem:[%s0 + $0x10] sm:$0xff]
    %v34 = vld [vmem:[%s0 + $0x18] sm:$0xff]
    %v35 = vld [vmem:[%s0 + $0x20] sm:$0xff]
    %v36 = vld [vmem:[%s0 + $0x28] sm:$0xff]
    %v37 = vld [vmem:[%s0 + $0x30] sm:$0xff]
    %v38 = vld [vmem:[%s0 + $0x38] sm:$0xff]
    %v39 = vpack.c.bf16 %v31, %v31
    %v40 = vpack.c.bf16 %v32, %v32
    %v41 = vpack.c.bf16 %v33, %v33
    %v42 = vpack.c.bf16 %v34, %v34
    %v43 = vpack.c.bf16 %v35, %v35
    %v44 = vpack.c.bf16 %v36, %v36
    %v45 = vpack.c.bf16 %v37, %v37
    %v46 = vpack.c.bf16 %v38, %v38
    %v47 = vld [vmem:[%s1] sm:$0xff]
    %v48 = vld [vmem:[%s1 + $0x8] sm:$0xff]
    %v49 = vld [vmem:[%s1 + $0x10] sm:$0xff]
    %v50 = vld [vmem:[%s1 + $0x18] sm:$0xff]
    %v51 = vld [vmem:[%s1 + $0x20] sm:$0xff]
    %v52 = vld [vmem:[%s1 + $0x28] sm:$0xff]
    %v53 = vld [vmem:[%s1 + $0x30] sm:$0xff]
    %v54 = vld [vmem:[%s1 + $0x38] sm:$0xff]
    %v55 = vld [vmem:[%s1 + $0x40] sm:$0xff]
    %v56 = vld [vmem:[%s1 + $0x48] sm:$0xff]
    %v57 = vld [vmem:[%s1 + $0x50] sm:$0xff]
    %v58 = vld [vmem:[%s1 + $0x58] sm:$0xff]
    %v59 = vld [vmem:[%s1 + $0x60] sm:$0xff]
    %v60 = vld [vmem:[%s1 + $0x68] sm:$0xff]
    %v61 = vld [vmem:[%s1 + $0x70] sm:$0xff]
    %v62 = vld [vmem:[%s1 + $0x78] sm:$0xff]
    %v63 = vld [vmem:[%s1 + $0x80] sm:$0xff]
    %v64 = vld [vmem:[%s1 + $0x88] sm:$0xff]
    %v65 = vld [vmem:[%s1 + $0x90] sm:$0xff]
    %v66 = vld [vmem:[%s1 + $0x98] sm:$0xff]
    %v67 = vld [vmem:[%s1 + $0xa0] sm:$0xff]
    %v68 = vld [vmem:[%s1 + $0xa8] sm:$0xff]
    %v69 = vld [vmem:[%s1 + $0xb0] sm:$0xff]
    %v70 = vld [vmem:[%s1 + $0xb8] sm:$0xff]
    %v71 = vld [vmem:[%s1 + $0xc0] sm:$0xff]
    %v72 = vld [vmem:[%s1 + $0xc8] sm:$0xff]
    %v73 = vld [vmem:[%s1 + $0xd0] sm:$0xff]
    %v74 = vld [vmem:[%s1 + $0xd8] sm:$0xff]
    %v75 = vld [vmem:[%s1 + $0xe0] sm:$0xff]
    %v76 = vld [vmem:[%s1 + $0xe8] sm:$0xff]
    %v77 = vld [vmem:[%s1 + $0xf0] sm:$0xff]
    %v78 = vld [vmem:[%s1 + $0xf8] sm:$0xff]
    %v79 = vld [vmem:[%s3] sm:$0xf]
    %v81 = vlaneseq
    %v82 = vshrl.u32 %v81, 7
    %v83 = vsub.s32 0, %v82
    %v84 = vrot.slane %v79, %v83
    %v85 = vlaneseq
    %v86 = vshrl.u32 %v85, 7
    %v87 = vsub.s32 1, %v86
    %v88 = vrot.slane %v79, %v87
    %v89 = vlaneseq
    %v90 = vshrl.u32 %v89, 7
    %v91 = vsub.s32 2, %v90
    %v92 = vrot.slane %v79, %v91
    %v93 = vlaneseq
    %v94 = vshrl.u32 %v93, 7
    %v95 = vsub.s32 3, %v94
    %v96 = vrot.slane %v79, %v95
    %v109 = vunpack.c.l.b16 %v39
    %v110 = vunpack.c.l.b16 %v40
    %v111 = vunpack.c.l.b16 %v41
    %v112 = vunpack.c.l.b16 %v42
    %v113 = vunpack.c.l.b16 %v43
    %v114 = vunpack.c.l.b16 %v44
    %v115 = vunpack.c.l.b16 %v45
    %v116 = vunpack.c.l.b16 %v46
    %v117 = vpack.c.b16 %v110, %v109
    %v118 = vpack.c.b16 %v112, %v111
    %v119 = vpack.c.b16 %v114, %v113
    %v120 = vpack.c.b16 %v116, %v115
    %v157 = vunpack.c.l.b16 %v47
    %v158 = vunpack.c.h.b16 %v47
    %v159 = vunpack.c.l.b16 %v48
    %v160 = vunpack.c.h.b16 %v48
    %v161 = vunpack.c.l.b16 %v49
    %v162 = vunpack.c.h.b16 %v49
    %v163 = vunpack.c.l.b16 %v50
    %v164 = vunpack.c.h.b16 %v50
    %v165 = vunpack.c.l.b16 %v51
    %v166 = vunpack.c.h.b16 %v51
    %v167 = vunpack.c.l.b16 %v52
    %v168 = vunpack.c.h.b16 %v52
    %v169 = vunpack.c.l.b16 %v53
    %v170 = vunpack.c.h.b16 %v53
    %v171 = vunpack.c.l.b16 %v54
    %v172 = vunpack.c.h.b16 %v54
    %v173 = vunpack.c.l.b16 %v55
    %v174 = vunpack.c.h.b16 %v55
    %v175 = vunpack.c.l.b16 %v56
    %v176 = vunpack.c.h.b16 %v56
    %v177 = vunpack.c.l.b16 %v57
    %v178 = vunpack.c.h.b16 %v57
    %v179 = vunpack.c.l.b16 %v58
    %v180 = vunpack.c.h.b16 %v58
    %v181 = vunpack.c.l.b16 %v59
    %v182 = vunpack.c.h.b16 %v59
    %v183 = vunpack.c.l.b16 %v60
    %v184 = vunpack.c.h.b16 %v60
    %v185 = vunpack.c.l.b16 %v61
    %v186 = vunpack.c.h.b16 %v61
    %v187 = vunpack.c.l.b16 %v62
    %v188 = vunpack.c.h.b16 %v62
    %v189 = vunpack.c.l.b16 %v63
    %v190 = vunpack.c.h.b16 %v63
    %v191 = vunpack.c.l.b16 %v64
    %v192 = vunpack.c.h.b16 %v64
    %v193 = vunpack.c.l.b16 %v65
    %v194 = vunpack.c.h.b16 %v65
    %v195 = vunpack.c.l.b16 %v66
    %v196 = vunpack.c.h.b16 %v66
    %v197 = vunpack.c.l.b16 %v67
    %v198 = vunpack.c.h.b16 %v67
    %v199 = vunpack.c.l.b16 %v68
    %v200 = vunpack.c.h.b16 %v68
    %v201 = vunpack.c.l.b16 %v69
    %v202 = vunpack.c.h.b16 %v69
    %v203 = vunpack.c.l.b16 %v70
    %v204 = vunpack.c.h.b16 %v70
    %v205 = vunpack.c.l.b16 %v71
    %v206 = vunpack.c.h.b16 %v71
    %v207 = vunpack.c.l.b16 %v72
    %v208 = vunpack.c.h.b16 %v72
    %v209 = vunpack.c.l.b16 %v73
    %v210 = vunpack.c.h.b16 %v73
    %v211 = vunpack.c.l.b16 %v74
    %v212 = vunpack.c.h.b16 %v74
    %v213 = vunpack.c.l.b16 %v75
    %v214 = vunpack.c.h.b16 %v75
    %v215 = vunpack.c.l.b16 %v76
    %v216 = vunpack.c.h.b16 %v76
    %v217 = vunpack.c.l.b16 %v77
    %v218 = vunpack.c.h.b16 %v77
    %v219 = vunpack.c.l.b16 %v78
    %v220 = vunpack.c.h.b16 %v78
    %v221 = vpack.c.b16 %v161, %v157
    %v222 = vpack.c.b16 %v162, %v158
    %v223 = vpack.c.b16 %v163, %v159
    %v224 = vpack.c.b16 %v164, %v160
    %v225 = vpack.c.b16 %v169, %v165
    %v226 = vpack.c.b16 %v170, %v166
    %v227 = vpack.c.b16 %v171, %v167
    %v228 = vpack.c.b16 %v172, %v168
    %v229 = vpack.c.b16 %v177, %v173
    %v230 = vpack.c.b16 %v178, %v174
    %v231 = vpack.c.b16 %v179, %v175
    %v232 = vpack.c.b16 %v180, %v176
    %v233 = vpack.c.b16 %v185, %v181
    %v234 = vpack.c.b16 %v186, %v182
    %v235 = vpack.c.b16 %v187, %v183
    %v236 = vpack.c.b16 %v188, %v184
    %v237 = vpack.c.b16 %v193, %v189
    %v238 = vpack.c.b16 %v194, %v190
    %v239 = vpack.c.b16 %v195, %v191
    %v240 = vpack.c.b16 %v196, %v192
    %v241 = vpack.c.b16 %v201, %v197
    %v242 = vpack.c.b16 %v202, %v198
    %v243 = vpack.c.b16 %v203, %v199
    %v244 = vpack.c.b16 %v204, %v200
    %v245 = vpack.c.b16 %v209, %v205
    %v246 = vpack.c.b16 %v210, %v206
    %v247 = vpack.c.b16 %v211, %v207
    %v248 = vpack.c.b16 %v212, %v208
    %v249 = vpack.c.b16 %v217, %v213
    %v250 = vpack.c.b16 %v218, %v214
    %v251 = vpack.c.b16 %v219, %v215
    %v252 = vpack.c.b16 %v220, %v216
    %285 = vmatprep.subr.bf16.mxu0 %v222
    %286 = vmatpush1.bf16.msra.mxu0 %v221
    %287 = vmatprep.subr.bf16.mxu0 %v226
    %288 = vmatpush1.bf16.msra.mxu0 %v225
    %289 = vmatprep.subr.bf16.mxu0 %v230
    %290 = vmatpush1.bf16.msra.mxu0 %v229
    %291 = vmatprep.subr.bf16.mxu0 %v234
    %292 = vmatpush1.bf16.msra.mxu0 %v233
    %293 = vmatprep.subr.bf16.mxu0 %v238
    %294 = vmatpush1.bf16.msra.mxu0 %v237
    %295 = vmatprep.subr.bf16.mxu0 %v242
    %296 = vmatpush1.bf16.msra.mxu0 %v241
    %297 = vmatprep.subr.bf16.mxu0 %v246
    %298 = vmatpush1.bf16.msra.mxu0 %v245
    %299 = vmatprep.subr.bf16.mxu0 %v250
    %300 = vmatpush1.bf16.msra.mxu0 %v249
    %301 = vmatprep.subr.bf16.mxu0 0
    %302 = vmatpush1.bf16.msra.mxu0 0
    %303 = vmatprep.subr.bf16.mxu0 0
    %304 = vmatpush1.bf16.msra.mxu0 0
    %305 = vmatprep.subr.bf16.mxu0 0
    %306 = vmatpush1.bf16.msra.mxu0 0
    %307 = vmatprep.subr.bf16.mxu0 0
    %308 = vmatpush1.bf16.msra.mxu0 0
    %309 = vmatprep.subr.bf16.mxu0 0
    %310 = vmatpush1.bf16.msra.mxu0 0
    %311 = vmatprep.subr.bf16.mxu0 0
    %312 = vmatpush1.bf16.msra.mxu0 0
    %313 = vmatprep.subr.bf16.mxu0 0
    %314 = vmatpush1.bf16.msra.mxu0 0
    %315 = vmatprep.subr.bf16.mxu0 0
    %316 = vmatpush1.bf16.msra.mxu0 0
    %317 = vmatprep.mubr.bf16.mxu0 0
    %318 = vmatmul.mubr.bf16.gmra.mrb[0].mxu0 %v117
    %v319 = vpop.f32.mrb[0].mxu0
    %v320 = vadd.f32 %v84, %v319
    %v321 = vpop.f32.mrb[0].mxu0
    %v322 = vadd.f32 %v88, %v321
    %v323 = vpop.f32.mrb[0].mxu0
    %v324 = vadd.f32 %v84, %v323
    %v325 = vpop.f32.mrb[0].mxu0
    %v326 = vadd.f32 %v88, %v325
    %327 = vmatprep.mubr.bf16.mxu0 0
    %328 = vmatmul.mubr.bf16.gmra.mrb[0].mxu0 %v118
    %v329 = vpop.f32.mrb[0].mxu0
    %v330 = vadd.f32 %v84, %v329
    %v331 = vpop.f32.mrb[0].mxu0
    %v332 = vadd.f32 %v88, %v331
    %v333 = vpop.f32.mrb[0].mxu0
    %v334 = vadd.f32 %v84, %v333
    %v335 = vpop.f32.mrb[0].mxu0
    %v336 = vadd.f32 %v88, %v335
    %337 = vmatprep.mubr.bf16.mxu0 0
    %338 = vmatmul.mubr.bf16.gmra.mrb[0].mxu0 %v119
    %v339 = vpop.f32.mrb[0].mxu0
    %v340 = vadd.f32 %v84, %v339
    %v341 = vpop.f32.mrb[0].mxu0
    %v342 = vadd.f32 %v88, %v341
    %v343 = vpop.f32.mrb[0].mxu0
    %v344 = vadd.f32 %v84, %v343
    %v345 = vpop.f32.mrb[0].mxu0
    %v346 = vadd.f32 %v88, %v345
    %347 = vmatprep.mubr.bf16.mxu0 0
    %348 = vmatmul.mubr.bf16.gmra.mrb[0].mxu0 %v120
    %v349 = vpop.f32.mrb[0].mxu0
    %v350 = vadd.f32 %v84, %v349
    %v351 = vpop.f32.mrb[0].mxu0
    %v352 = vadd.f32 %v88, %v351
    %v353 = vpop.f32.mrb[0].mxu0
    %v354 = vadd.f32 %v84, %v353
    %v355 = vpop.f32.mrb[0].mxu0
    %v356 = vadd.f32 %v88, %v355
    %357 = vdwg.mxu0
    %358 = vmatprep.subr.bf16.mxu0 %v224
    %359 = vmatpush1.bf16.msra.mxu0 %v223
    %360 = vmatprep.subr.bf16.mxu0 %v228
    %361 = vmatpush1.bf16.msra.mxu0 %v227
    %362 = vmatprep.subr.bf16.mxu0 %v232
    %363 = vmatpush1.bf16.msra.mxu0 %v231
    %364 = vmatprep.subr.bf16.mxu0 %v236
    %365 = vmatpush1.bf16.msra.mxu0 %v235
    %366 = vmatprep.subr.bf16.mxu0 %v240
    %367 = vmatpush1.bf16.msra.mxu0 %v239
    %368 = vmatprep.subr.bf16.mxu0 %v244
    %369 = vmatpush1.bf16.msra.mxu0 %v243
    %370 = vmatprep.subr.bf16.mxu0 %v248
    %371 = vmatpush1.bf16.msra.mxu0 %v247
    %372 = vmatprep.subr.bf16.mxu0 %v252
    %373 = vmatpush1.bf16.msra.mxu0 %v251
    %374 = vmatprep.subr.bf16.mxu0 0
    %375 = vmatpush1.bf16.msra.mxu0 0
    %376 = vmatprep.subr.bf16.mxu0 0
    %377 = vmatpush1.bf16.msra.mxu0 0
    %378 = vmatprep.subr.bf16.mxu0 0
    %379 = vmatpush1.bf16.msra.mxu0 0
    %380 = vmatprep.subr.bf16.mxu0 0
    %381 = vmatpush1.bf16.msra.mxu0 0
    %382 = vmatprep.subr.bf16.mxu0 0
    %383 = vmatpush1.bf16.msra.mxu0 0
    %384 = vmatprep.subr.bf16.mxu0 0
    %385 = vmatpush1.bf16.msra.mxu0 0
    %386 = vmatprep.subr.bf16.mxu0 0
    %387 = vmatpush1.bf16.msra.mxu0 0
    %388 = vmatprep.subr.bf16.mxu0 0
    %389 = vmatpush1.bf16.msra.mxu0 0
    %390 = vmatprep.mubr.bf16.mxu0 0
    %391 = vmatmul.mubr.bf16.gmra.mrb[0].mxu0 %v117
    %v392 = vpop.f32.mrb[0].mxu0
    %v393 = vadd.f32 %v92, %v392
    %v394 = vpop.f32.mrb[0].mxu0
    %v395 = vadd.f32 %v96, %v394
    %v396 = vpop.f32.mrb[0].mxu0
    %v397 = vadd.f32 %v92, %v396
    %v398 = vpop.f32.mrb[0].mxu0
    %v399 = vadd.f32 %v96, %v398
    %400 = vmatprep.mubr.bf16.mxu0 0
    %401 = vmatmul.mubr.bf16.gmra.mrb[0].mxu0 %v118
    %v402 = vpop.f32.mrb[0].mxu0
    %v403 = vadd.f32 %v92, %v402
    %v404 = vpop.f32.mrb[0].mxu0
    %v405 = vadd.f32 %v96, %v404
    %v406 = vpop.f32.mrb[0].mxu0
    %v407 = vadd.f32 %v92, %v406
    %v408 = vpop.f32.mrb[0].mxu0
    %v409 = vadd.f32 %v96, %v408
    %410 = vmatprep.mubr.bf16.mxu0 0
    %411 = vmatmul.mubr.bf16.gmra.mrb[0].mxu0 %v119
    %v412 = vpop.f32.mrb[0].mxu0
    %v413 = vadd.f32 %v92, %v412
    %v414 = vpop.f32.mrb[0].mxu0
    %v415 = vadd.f32 %v96, %v414
    %v416 = vpop.f32.mrb[0].mxu0
    %v417 = vadd.f32 %v92, %v416
    %v418 = vpop.f32.mrb[0].mxu0
    %v419 = vadd.f32 %v96, %v418
    %420 = vmatprep.mubr.bf16.mxu0 0
    %421 = vmatmul.mubr.bf16.gmra.mrb[0].mxu0 %v120
    %v422 = vpop.f32.mrb[0].mxu0
    %v423 = vadd.f32 %v92, %v422
    %v424 = vpop.f32.mrb[0].mxu0
    %v425 = vadd.f32 %v96, %v424
    %v426 = vpop.f32.mrb[0].mxu0
    %v427 = vadd.f32 %v92, %v426
    %v428 = vpop.f32.mrb[0].mxu0
    %v429 = vadd.f32 %v96, %v428
    %430 = vdwg.mxu0
    %431 = vst [vmem:[#allocation2] sm:$0xff] %v320
    %432 = vst [vmem:[#allocation2 + $0x8] sm:$0xff] %v322
    %433 = vst [vmem:[#allocation2 + $0x10] sm:$0xff] %v393
    %434 = vst [vmem:[#allocation2 + $0x18] sm:$0xff] %v395
    %435 = vst [vmem:[#allocation2 + $0x20] sm:$0xff] %v324
    %436 = vst [vmem:[#allocation2 + $0x28] sm:$0xff] %v326
    %437 = vst [vmem:[#allocation2 + $0x30] sm:$0xff] %v397
    %438 = vst [vmem:[#allocation2 + $0x38] sm:$0xff] %v399
    %439 = vst [vmem:[#allocation2 + $0x40] sm:$0xff] %v330
    %440 = vst [vmem:[#allocation2 + $0x48] sm:$0xff] %v332
    %441 = vst [vmem:[#allocation2 + $0x50] sm:$0xff] %v403
    %442 = vst [vmem:[#allocation2 + $0x58] sm:$0xff] %v405
    %443 = vst [vmem:[#allocation2 + $0x60] sm:$0xff] %v334
    %444 = vst [vmem:[#allocation2 + $0x68] sm:$0xff] %v336
    %445 = vst [vmem:[#allocation2 + $0x70] sm:$0xff] %v407
    %446 = vst [vmem:[#allocation2 + $0x78] sm:$0xff] %v409
    %447 = vst [vmem:[#allocation2 + $0x80] sm:$0xff] %v340
    %448 = vst [vmem:[#allocation2 + $0x88] sm:$0xff] %v342
    %449 = vst [vmem:[#allocation2 + $0x90] sm:$0xff] %v413
    %450 = vst [vmem:[#allocation2 + $0x98] sm:$0xff] %v415
    %451 = vst [vmem:[#allocation2 + $0xa0] sm:$0xff] %v344
    %452 = vst [vmem:[#allocation2 + $0xa8] sm:$0xff] %v346
    %453 = vst [vmem:[#allocation2 + $0xb0] sm:$0xff] %v417
    %454 = vst [vmem:[#allocation2 + $0xb8] sm:$0xff] %v419
    %455 = vst [vmem:[#allocation2 + $0xc0] sm:$0xff] %v350
    %456 = vst [vmem:[#allocation2 + $0xc8] sm:$0xff] %v352
    %457 = vst [vmem:[#allocation2 + $0xd0] sm:$0xff] %v423
    %458 = vst [vmem:[#allocation2 + $0xd8] sm:$0xff] %v425
    %459 = vst [vmem:[#allocation2 + $0xe0] sm:$0xff] %v354
    %460 = vst [vmem:[#allocation2 + $0xe8] sm:$0xff] %v356
    %461 = vst [vmem:[#allocation2 + $0xf0] sm:$0xff] %v427
    %462 = vst [vmem:[#allocation2 + $0xf8] sm:$0xff] %v429
    %v463 = vld [vmem:[%s2] sm:$0xff]
    %v464 = vld [vmem:[%s2 + $0x8] sm:$0xff]
    %v465 = vld [vmem:[%s2 + $0x10] sm:$0xff]
    %v466 = vld [vmem:[%s2 + $0x18] sm:$0xff]
    %v467 = vld [vmem:[%s2 + $0x20] sm:$0xff]
    %v468 = vld [vmem:[%s2 + $0x28] sm:$0xff]
    %v469 = vld [vmem:[%s2 + $0x30] sm:$0xff]
    %v470 = vld [vmem:[%s2 + $0x38] sm:$0xff]
    %v471 = vld [vmem:[%s2 + $0x40] sm:$0xff]
    %v472 = vld [vmem:[%s2 + $0x48] sm:$0xff]
    %v473 = vld [vmem:[%s2 + $0x50] sm:$0xff]
    %v474 = vld [vmem:[%s2 + $0x58] sm:$0xff]
    %v475 = vld [vmem:[%s2 + $0x60] sm:$0xff]
    %v476 = vld [vmem:[%s2 + $0x68] sm:$0xff]
    %v477 = vld [vmem:[%s2 + $0x70] sm:$0xff]
    %v478 = vld [vmem:[%s2 + $0x78] sm:$0xff]
    %v479 = vld [vmem:[%s2 + $0x80] sm:$0xff]
    %v480 = vld [vmem:[%s2 + $0x88] sm:$0xff]
    %v481 = vld [vmem:[%s2 + $0x90] sm:$0xff]
    %v482 = vld [vmem:[%s2 + $0x98] sm:$0xff]
    %v483 = vld [vmem:[%s2 + $0xa0] sm:$0xff]
    %v484 = vld [vmem:[%s2 + $0xa8] sm:$0xff]
    %v485 = vld [vmem:[%s2 + $0xb0] sm:$0xff]
    %v486 = vld [vmem:[%s2 + $0xb8] sm:$0xff]
    %v487 = vld [vmem:[%s2 + $0xc0] sm:$0xff]
    %v488 = vld [vmem:[%s2 + $0xc8] sm:$0xff]
    %v489 = vld [vmem:[%s2 + $0xd0] sm:$0xff]
    %v490 = vld [vmem:[%s2 + $0xd8] sm:$0xff]
    %v491 = vld [vmem:[%s2 + $0xe0] sm:$0xff]
    %v492 = vld [vmem:[%s2 + $0xe8] sm:$0xff]
    %v493 = vld [vmem:[%s2 + $0xf0] sm:$0xff]
    %v494 = vld [vmem:[%s2 + $0xf8] sm:$0xff]
    %v495 = vld [vmem:[#allocation2] sm:$0xff]
    %v496 = vld [vmem:[#allocation2 + $0x8] sm:$0xff]
    %v497 = vld [vmem:[#allocation2 + $0x10] sm:$0xff]
    %v498 = vld [vmem:[#allocation2 + $0x18] sm:$0xff]
    %v499 = vpack.c.bf16 %v29, %v29
    %v532 = vunpack.c.l.b16 %v463
    %v533 = vunpack.c.h.b16 %v463
    %v534 = vunpack.c.l.b16 %v464
    %v535 = vunpack.c.h.b16 %v464
    %v536 = vunpack.c.l.b16 %v465
    %v537 = vunpack.c.h.b16 %v465
    %v538 = vunpack.c.l.b16 %v466
    %v539 = vunpack.c.h.b16 %v466
    %v540 = vunpack.c.l.b16 %v467
    %v541 = vunpack.c.h.b16 %v467
    %v542 = vunpack.c.l.b16 %v468
    %v543 = vunpack.c.h.b16 %v468
    %v544 = vunpack.c.l.b16 %v469
    %v545 = vunpack.c.h.b16 %v469
    %v546 = vunpack.c.l.b16 %v470
    %v547 = vunpack.c.h.b16 %v470
    %v548 = vunpack.c.l.b16 %v471
    %v549 = vunpack.c.h.b16 %v471
    %v550 = vunpack.c.l.b16 %v472
    %v551 = vunpack.c.h.b16 %v472
    %v552 = vunpack.c.l.b16 %v473
    %v553 = vunpack.c.h.b16 %v473
    %v554 = vunpack.c.l.b16 %v474
    %v555 = vunpack.c.h.b16 %v474
    %v556 = vunpack.c.l.b16 %v475
    %v557 = vunpack.c.h.b16 %v475
    %v558 = vunpack.c.l.b16 %v476
    %v559 = vunpack.c.h.b16 %v476
    %v560 = vunpack.c.l.b16 %v477
    %v561 = vunpack.c.h.b16 %v477
    %v562 = vunpack.c.l.b16 %v478
    %v563 = vunpack.c.h.b16 %v478
    %v564 = vunpack.c.l.b16 %v479
    %v565 = vunpack.c.h.b16 %v479
    %v566 = vunpack.c.l.b16 %v480
    %v567 = vunpack.c.h.b16 %v480
    %v568 = vunpack.c.l.b16 %v481
    %v569 = vunpack.c.h.b16 %v481
    %v570 = vunpack.c.l.b16 %v482
    %v571 = vunpack.c.h.b16 %v482
    %v572 = vunpack.c.l.b16 %v483
    %v573 = vunpack.c.h.b16 %v483
    %v574 = vunpack.c.l.b16 %v484
    %v575 = vunpack.c.h.b16 %v484
    %v576 = vunpack.c.l.b16 %v485
    %v577 = vunpack.c.h.b16 %v485
    %v578 = vunpack.c.l.b16 %v486
    %v579 = vunpack.c.h.b16 %v486
    %v580 = vunpack.c.l.b16 %v487
    %v581 = vunpack.c.h.b16 %v487
    %v582 = vunpack.c.l.b16 %v488
    %v583 = vunpack.c.h.b16 %v488
    %v584 = vunpack.c.l.b16 %v489
    %v585 = vunpack.c.h.b16 %v489
    %v586 = vunpack.c.l.b16 %v490
    %v587 = vunpack.c.h.b16 %v490
    %v588 = vunpack.c.l.b16 %v491
    %v589 = vunpack.c.h.b16 %v491
    %v590 = vunpack.c.l.b16 %v492
    %v591 = vunpack.c.h.b16 %v492
    %v592 = vunpack.c.l.b16 %v493
    %v593 = vunpack.c.h.b16 %v493
    %v594 = vunpack.c.l.b16 %v494
    %v595 = vunpack.c.h.b16 %v494
    %v596 = vpack.c.b16 %v536, %v532
    %v597 = vpack.c.b16 %v537, %v533
    %v598 = vpack.c.b16 %v538, %v534
    %v599 = vpack.c.b16 %v539, %v535
    %v600 = vpack.c.b16 %v544, %v540
    %v601 = vpack.c.b16 %v545, %v541
    %v602 = vpack.c.b16 %v546, %v542
    %v603 = vpack.c.b16 %v547, %v543
    %v604 = vpack.c.b16 %v552, %v548
    %v605 = vpack.c.b16 %v553, %v549
    %v606 = vpack.c.b16 %v554, %v550
    %v607 = vpack.c.b16 %v555, %v551
    %v608 = vpack.c.b16 %v560, %v556
    %v609 = vpack.c.b16 %v561, %v557
    %v610 = vpack.c.b16 %v562, %v558
    %v611 = vpack.c.b16 %v563, %v559
    %v612 = vpack.c.b16 %v568, %v564
    %v613 = vpack.c.b16 %v569, %v565
    %v614 = vpack.c.b16 %v570, %v566
    %v615 = vpack.c.b16 %v571, %v567
    %v616 = vpack.c.b16 %v576, %v572
    %v617 = vpack.c.b16 %v577, %v573
    %v618 = vpack.c.b16 %v578, %v574
    %v619 = vpack.c.b16 %v579, %v575
    %v620 = vpack.c.b16 %v584, %v580
    %v621 = vpack.c.b16 %v585, %v581
    %v622 = vpack.c.b16 %v586, %v582
    %v623 = vpack.c.b16 %v587, %v583
    %v624 = vpack.c.b16 %v592, %v588
    %v625 = vpack.c.b16 %v593, %v589
    %v626 = vpack.c.b16 %v594, %v590
    %v627 = vpack.c.b16 %v595, %v591
    %660 = vmatprep.subr.bf16.mxu0 %v597
    %661 = vmatpush1.bf16.msra.mxu0 %v596
    %662 = vmatprep.subr.bf16.mxu0 %v601
    %663 = vmatpush1.bf16.msra.mxu0 %v600
    %664 = vmatprep.subr.bf16.mxu0 %v605
    %665 = vmatpush1.bf16.msra.mxu0 %v604
    %666 = vmatprep.subr.bf16.mxu0 %v609
    %667 = vmatpush1.bf16.msra.mxu0 %v608
    %668 = vmatprep.subr.bf16.mxu0 %v613
    %669 = vmatpush1.bf16.msra.mxu0 %v612
    %670 = vmatprep.subr.bf16.mxu0 %v617
    %671 = vmatpush1.bf16.msra.mxu0 %v616
    %672 = vmatprep.subr.bf16.mxu0 %v621
    %673 = vmatpush1.bf16.msra.mxu0 %v620
    %674 = vmatprep.subr.bf16.mxu0 %v625
    %675 = vmatpush1.bf16.msra.mxu0 %v624
    %676 = vmatprep.subr.bf16.mxu0 0
    %677 = vmatpush1.bf16.msra.mxu0 0
    %678 = vmatprep.subr.bf16.mxu0 0
    %679 = vmatpush1.bf16.msra.mxu0 0
    %680 = vmatprep.subr.bf16.mxu0 0
    %681 = vmatpush1.bf16.msra.mxu0 0
    %682 = vmatprep.subr.bf16.mxu0 0
    %683 = vmatpush1.bf16.msra.mxu0 0
    %684 = vmatprep.subr.bf16.mxu0 0
    %685 = vmatpush1.bf16.msra.mxu0 0
    %686 = vmatprep.subr.bf16.mxu0 0
    %687 = vmatpush1.bf16.msra.mxu0 0
    %688 = vmatprep.subr.bf16.mxu0 0
    %689 = vmatpush1.bf16.msra.mxu0 0
    %690 = vmatprep.subr.bf16.mxu0 0
    %691 = vmatpush1.bf16.msra.mxu0 0
    %692 = vmatprep.mubr.bf16.mxu0 0
    %693 = vmatmul.mubr.bf16.gmra.mrb[0].mxu0 %v499
    %v694 = vpop.f32.mrb[0].mxu0
    %v695 = vadd.f32 0.0, %v694
    %v696 = vpop.f32.mrb[0].mxu0
    %v697 = vadd.f32 0.0, %v696
    %v698 = vpop.f32.mrb[0].mxu0
    %v699 = vpop.f32.mrb[0].mxu0
    %700 = vdwg.mxu0
    %701 = vmatprep.subr.bf16.mxu0 %v599
    %702 = vmatpush1.bf16.msra.mxu0 %v598
    %703 = vmatprep.subr.bf16.mxu0 %v603
    %704 = vmatpush1.bf16.msra.mxu0 %v602
    %705 = vmatprep.subr.bf16.mxu0 %v607
    %706 = vmatpush1.bf16.msra.mxu0 %v606
    %707 = vmatprep.subr.bf16.mxu0 %v611
    %708 = vmatpush1.bf16.msra.mxu0 %v610
    %709 = vmatprep.subr.bf16.mxu0 %v615
    %710 = vmatpush1.bf16.msra.mxu0 %v614
    %711 = vmatprep.subr.bf16.mxu0 %v619
    %712 = vmatpush1.bf16.msra.mxu0 %v618
    %713 = vmatprep.subr.bf16.mxu0 %v623
    %714 = vmatpush1.bf16.msra.mxu0 %v622
    %715 = vmatprep.subr.bf16.mxu0 %v627
    %716 = vmatpush1.bf16.msra.mxu0 %v626
    %717 = vmatprep.subr.bf16.mxu0 0
    %718 = vmatpush1.bf16.msra.mxu0 0
    %719 = vmatprep.subr.bf16.mxu0 0
    %720 = vmatpush1.bf16.msra.mxu0 0
    %721 = vmatprep.subr.bf16.mxu0 0
    %722 = vmatpush1.bf16.msra.mxu0 0
    %723 = vmatprep.subr.bf16.mxu0 0
    %724 = vmatpush1.bf16.msra.mxu0 0
    %725 = vmatprep.subr.bf16.mxu0 0
    %726 = vmatpush1.bf16.msra.mxu0 0
    %727 = vmatprep.subr.bf16.mxu0 0
    %728 = vmatpush1.bf16.msra.mxu0 0
    %729 = vmatprep.subr.bf16.mxu0 0
    %730 = vmatpush1.bf16.msra.mxu0 0
    %731 = vmatprep.subr.bf16.mxu0 0
    %732 = vmatpush1.bf16.msra.mxu0 0
    %733 = vmatprep.mubr.bf16.mxu0 0
    %734 = vmatmul.mubr.bf16.gmra.mrb[0].mxu0 %v499
    %v735 = vpop.f32.mrb[0].mxu0
    %v736 = vadd.f32 0.0, %v735
    %v737 = vpop.f32.mrb[0].mxu0
    %v738 = vadd.f32 0.0, %v737
    %v739 = vpop.f32.mrb[0].mxu0
    %v740 = vpop.f32.mrb[0].mxu0
    %741 = vdwg.mxu0
    %v742 = vadd.f32 %v495, %v695
    %v743 = vadd.f32 %v496, %v697
    %v744 = vadd.f32 %v497, %v736
    %v745 = vadd.f32 %v498, %v738
    %v746 = vxor.u32 %v742, 2147483648
    %v747 = vmul.f32 %v746, 1.442695
    %v748 = vpow.pop %v747
    %v749 = vadd.f32 %v748, 1.0
    %v750 = vrcp.pop %v749
    %v751 = vmul.f32 1.0, %v750
    %v752 = vxor.u32 %v743, 2147483648
    %v753 = vmul.f32 %v752, 1.442695
    %v754 = vpow.pop %v753
    %v755 = vadd.f32 %v754, 1.0
    %v756 = vrcp.pop %v755
    %v757 = vmul.f32 1.0, %v756
    %v758 = vtanh.pop %v744
    %v759 = vxor.u32 %v745, 2147483648
    %v760 = vmul.f32 %v759, 1.442695
    %v761 = vpow.pop %v760
    %v762 = vadd.f32 %v761, 1.0
    %v763 = vrcp.pop %v762
    %v764 = vmul.f32 1.0, %v763
    %v765 = vmul.f32 %v757, %v30
    %v766 = vmul.f32 %v751, %v758
    %v767 = vadd.f32 %v765, %v766
    %v768 = vtanh.pop %v767
    %v769 = vmul.f32 %v764, %v768
    %770 = vst [vmem:[#allocation3] sm:$0xff] %v769
    %s771 = scalar_lea.vmem [#allocation2], 32
    %v772 = vld [vmem:[%s771] sm:$0xff]
    %v773 = vld [vmem:[%s771 + $0x8] sm:$0xff]
    %v774 = vld [vmem:[%s771 + $0x10] sm:$0xff]
    %v775 = vld [vmem:[%s771 + $0x18] sm:$0xff]
    %v776 = vpack.c.bf16 %v769, %v769
    %777 = vmatprep.subr.bf16.mxu0 %v597
    %778 = vmatpush1.bf16.msra.mxu0 %v596
    %779 = vmatprep.subr.bf16.mxu0 %v601
    %780 = vmatpush1.bf16.msra.mxu0 %v600
    %781 = vmatprep.subr.bf16.mxu0 %v605
    %782 = vmatpush1.bf16.msra.mxu0 %v604
    %783 = vmatprep.subr.bf16.mxu0 %v609
    %784 = vmatpush1.bf16.msra.mxu0 %v608
    %785 = vmatprep.subr.bf16.mxu0 %v613
    %786 = vmatpush1.bf16.msra.mxu0 %v612
    %787 = vmatprep.subr.bf16.mxu0 %v617
    %788 = vmatpush1.bf16.msra.mxu0 %v616
    %789 = vmatprep.subr.bf16.mxu0 %v621
    %790 = vmatpush1.bf16.msra.mxu0 %v620
    %791 = vmatprep.subr.bf16.mxu0 %v625
    %792 = vmatpush1.bf16.msra.mxu0 %v624
    %793 = vmatprep.subr.bf16.mxu0 0
    %794 = vmatpush1.bf16.msra.mxu0 0
    %795 = vmatprep.subr.bf16.mxu0 0
    %796 = vmatpush1.bf16.msra.mxu0 0
    %797 = vmatprep.subr.bf16.mxu0 0
    %798 = vmatpush1.bf16.msra.mxu0 0
    %799 = vmatprep.subr.bf16.mxu0 0
    %800 = vmatpush1.bf16.msra.mxu0 0
    %801 = vmatprep.subr.bf16.mxu0 0
    %802 = vmatpush1.bf16.msra.mxu0 0
    %803 = vmatprep.subr.bf16.mxu0 0
    %804 = vmatpush1.bf16.msra.mxu0 0
    %805 = vmatprep.subr.bf16.mxu0 0
    %806 = vmatpush1.bf16.msra.mxu0 0
    %807 = vmatprep.subr.bf16.mxu0 0
    %808 = vmatpush1.bf16.msra.mxu0 0
    %809 = vmatprep.mubr.bf16.mxu0 0
    %810 = vmatmul.mubr.bf16.gmra.mrb[0].mxu0 %v776
    %v811 = vpop.f32.mrb[0].mxu0
    %v812 = vadd.f32 0.0, %v811
    %v813 = vpop.f32.mrb[0].mxu0
    %v814 = vadd.f32 0.0, %v813
    %v815 = vpop.f32.mrb[0].mxu0
    %v816 = vpop.f32.mrb[0].mxu0
    %817 = vdwg.mxu0
    %818 = vmatprep.subr.bf16.mxu0 %v599
    %819 = vmatpush1.bf16.msra.mxu0 %v598
    %820 = vmatprep.subr.bf16.mxu0 %v603
    %821 = vmatpush1.bf16.msra.mxu0 %v602
    %822 = vmatprep.subr.bf16.mxu0 %v607
    %823 = vmatpush1.bf16.msra.mxu0 %v606
    %824 = vmatprep.subr.bf16.mxu0 %v611
    %825 = vmatpush1.bf16.msra.mxu0 %v610
    %826 = vmatprep.subr.bf16.mxu0 %v615
    %827 = vmatpush1.bf16.msra.mxu0 %v614
    %828 = vmatprep.subr.bf16.mxu0 %v619
    %829 = vmatpush1.bf16.msra.mxu0 %v618
    %830 = vmatprep.subr.bf16.mxu0 %v623
    %831 = vmatpush1.bf16.msra.mxu0 %v622
    %832 = vmatprep.subr.bf16.mxu0 %v627
    %833 = vmatpush1.bf16.msra.mxu0 %v626
    %834 = vmatprep.subr.bf16.mxu0 0
    %835 = vmatpush1.bf16.msra.mxu0 0
    %836 = vmatprep.subr.bf16.mxu0 0
    %837 = vmatpush1.bf16.msra.mxu0 0
    %838 = vmatprep.subr.bf16.mxu0 0
    %839 = vmatpush1.bf16.msra.mxu0 0
    %840 = vmatprep.subr.bf16.mxu0 0
    %841 = vmatpush1.bf16.msra.mxu0 0
    %842 = vmatprep.subr.bf16.mxu0 0
    %843 = vmatpush1.bf16.msra.mxu0 0
    %844 = vmatprep.subr.bf16.mxu0 0
    %845 = vmatpush1.bf16.msra.mxu0 0
    %846 = vmatprep.subr.bf16.mxu0 0
    %847 = vmatpush1.bf16.msra.mxu0 0
    %848 = vmatprep.subr.bf16.mxu0 0
    %849 = vmatpush1.bf16.msra.mxu0 0
    %850 = vmatprep.mubr.bf16.mxu0 0
    %851 = vmatmul.mubr.bf16.gmra.mrb[0].mxu0 %v776
    %v852 = vpop.f32.mrb[0].mxu0
    %v853 = vadd.f32 0.0, %v852
    %v854 = vpop.f32.mrb[0].mxu0
    %v855 = vadd.f32 0.0, %v854
    %v856 = vpop.f32.mrb[0].mxu0
    %v857 = vpop.f32.mrb[0].mxu0
    %858 = vdwg.mxu0
    %v859 = vadd.f32 %v772, %v812
    %v860 = vadd.f32 %v773, %v814
    %v861 = vadd.f32 %v774, %v853
    %v862 = vadd.f32 %v775, %v855
    %v863 = vxor.u32 %v859, 2147483648
    %v864 = vmul.f32 %v863, 1.442695
    %v865 = vpow.pop %v864
    %v866 = vadd.f32 %v865, 1.0
    %v867 = vrcp.pop %v866
    %v868 = vmul.f32 1.0, %v867
    %v869 = vxor.u32 %v860, 2147483648
    %v870 = vmul.f32 %v869, 1.442695
    %v871 = vpow.pop %v870
    %v872 = vadd.f32 %v871, 1.0
    %v873 = vrcp.pop %v872
    %v874 = vmul.f32 1.0, %v873
    %v875 = vtanh.pop %v861
    %v876 = vxor.u32 %v862, 2147483648
    %v877 = vmul.f32 %v876, 1.442695
    %v878 = vpow.pop %v877
    %v879 = vadd.f32 %v878, 1.0
    %v880 = vrcp.pop %v879
    %v881 = vmul.f32 1.0, %v880
    %v882 = vmul.f32 %v874, %v767
    %v883 = vmul.f32 %v868, %v875
    %v884 = vadd.f32 %v882, %v883
    %v885 = vtanh.pop %v884
    %v886 = vmul.f32 %v881, %v885
    %s887 = scalar_lea.vmem [#allocation3], 8
    %888 = vst [vmem:[%s887] sm:$0xff] %v886
    %s889 = scalar_lea.vmem [#allocation2], 64
    %v890 = vld [vmem:[%s889] sm:$0xff]
    %v891 = vld [vmem:[%s889 + $0x8] sm:$0xff]
    %v892 = vld [vmem:[%s889 + $0x10] sm:$0xff]
    %v893 = vld [vmem:[%s889 + $0x18] sm:$0xff]
    %v894 = vpack.c.bf16 %v886, %v886
    %895 = vmatprep.subr.bf16.mxu0 %v597
    %896 = vmatpush1.bf16.msra.mxu0 %v596
    %897 = vmatprep.subr.bf16.mxu0 %v601
    %898 = vmatpush1.bf16.msra.mxu0 %v600
    %899 = vmatprep.subr.bf16.mxu0 %v605
    %900 = vmatpush1.bf16.msra.mxu0 %v604
    %901 = vmatprep.subr.bf16.mxu0 %v609
    %902 = vmatpush1.bf16.msra.mxu0 %v608
    %903 = vmatprep.subr.bf16.mxu0 %v613
    %904 = vmatpush1.bf16.msra.mxu0 %v612
    %905 = vmatprep.subr.bf16.mxu0 %v617
    %906 = vmatpush1.bf16.msra.mxu0 %v616
    %907 = vmatprep.subr.bf16.mxu0 %v621
    %908 = vmatpush1.bf16.msra.mxu0 %v620
    %909 = vmatprep.subr.bf16.mxu0 %v625
    %910 = vmatpush1.bf16.msra.mxu0 %v624
    %911 = vmatprep.subr.bf16.mxu0 0
    %912 = vmatpush1.bf16.msra.mxu0 0
    %913 = vmatprep.subr.bf16.mxu0 0
    %914 = vmatpush1.bf16.msra.mxu0 0
    %915 = vmatprep.subr.bf16.mxu0 0
    %916 = vmatpush1.bf16.msra.mxu0 0
    %917 = vmatprep.subr.bf16.mxu0 0
    %918 = vmatpush1.bf16.msra.mxu0 0
    %919 = vmatprep.subr.bf16.mxu0 0
    %920 = vmatpush1.bf16.msra.mxu0 0
    %921 = vmatprep.subr.bf16.mxu0 0
    %922 = vmatpush1.bf16.msra.mxu0 0
    %923 = vmatprep.subr.bf16.mxu0 0
    %924 = vmatpush1.bf16.msra.mxu0 0
    %925 = vmatprep.subr.bf16.mxu0 0
    %926 = vmatpush1.bf16.msra.mxu0 0
    %927 = vmatprep.mubr.bf16.mxu0 0
    %928 = vmatmul.mubr.bf16.gmra.mrb[0].mxu0 %v894
    %v929 = vpop.f32.mrb[0].mxu0
    %v930 = vadd.f32 0.0, %v929
    %v931 = vpop.f32.mrb[0].mxu0
    %v932 = vadd.f32 0.0, %v931
    %v933 = vpop.f32.mrb[0].mxu0
    %v934 = vpop.f32.mrb[0].mxu0
    %935 = vdwg.mxu0
    %936 = vmatprep.subr.bf16.mxu0 %v599
    %937 = vmatpush1.bf16.msra.mxu0 %v598
    %938 = vmatprep.subr.bf16.mxu0 %v603
    %939 = vmatpush1.bf16.msra.mxu0 %v602
    %940 = vmatprep.subr.bf16.mxu0 %v607
    %941 = vmatpush1.bf16.msra.mxu0 %v606
    %942 = vmatprep.subr.bf16.mxu0 %v611
    %943 = vmatpush1.bf16.msra.mxu0 %v610
    %944 = vmatprep.subr.bf16.mxu0 %v615
    %945 = vmatpush1.bf16.msra.mxu0 %v614
    %946 = vmatprep.subr.bf16.mxu0 %v619
    %947 = vmatpush1.bf16.msra.mxu0 %v618
    %948 = vmatprep.subr.bf16.mxu0 %v623
    %949 = vmatpush1.bf16.msra.mxu0 %v622
    %950 = vmatprep.subr.bf16.mxu0 %v627
    %951 = vmatpush1.bf16.msra.mxu0 %v626
    %952 = vmatprep.subr.bf16.mxu0 0
    %953 = vmatpush1.bf16.msra.mxu0 0
    %954 = vmatprep.subr.bf16.mxu0 0
    %955 = vmatpush1.bf16.msra.mxu0 0
    %956 = vmatprep.subr.bf16.mxu0 0
    %957 = vmatpush1.bf16.msra.mxu0 0
    %958 = vmatprep.subr.bf16.mxu0 0
    %959 = vmatpush1.bf16.msra.mxu0 0
    %960 = vmatprep.subr.bf16.mxu0 0
    %961 = vmatpush1.bf16.msra.mxu0 0
    %962 = vmatprep.subr.bf16.mxu0 0
    %963 = vmatpush1.bf16.msra.mxu0 0
    %964 = vmatprep.subr.bf16.mxu0 0
    %965 = vmatpush1.bf16.msra.mxu0 0
    %966 = vmatprep.subr.bf16.mxu0 0
    %967 = vmatpush1.bf16.msra.mxu0 0
    %968 = vmatprep.mubr.bf16.mxu0 0
    %969 = vmatmul.mubr.bf16.gmra.mrb[0].mxu0 %v894
    %v970 = vpop.f32.mrb[0].mxu0
    %v971 = vadd.f32 0.0, %v970
    %v972 = vpop.f32.mrb[0].mxu0
    %v973 = vadd.f32 0.0, %v972
    %v974 = vpop.f32.mrb[0].mxu0
    %v975 = vpop.f32.mrb[0].mxu0
    %976 = vdwg.mxu0
    %v977 = vadd.f32 %v890, %v930
    %v978 = vadd.f32 %v891, %v932
    %v979 = vadd.f32 %v892, %v971
    %v980 = vadd.f32 %v893, %v973
    %v981 = vxor.u32 %v977, 2147483648
    %v982 = vmul.f32 %v981, 1.442695
    %v983 = vpow.pop %v982
    %v984 = vadd.f32 %v983, 1.0
    %v985 = vrcp.pop %v984
    %v986 = vmul.f32 1.0, %v985
    %v987 = vxor.u32 %v978, 2147483648
    %v988 = vmul.f32 %v987, 1.442695
    %v989 = vpow.pop %v988
    %v990 = vadd.f32 %v989, 1.0
    %v991 = vrcp.pop %v990
    %v992 = vmul.f32 1.0, %v991
    %v993 = vtanh.pop %v979
    %v994 = vxor.u32 %v980, 2147483648
    %v995 = vmul.f32 %v994, 1.442695
    %v996 = vpow.pop %v995
    %v997 = vadd.f32 %v996, 1.0
    %v998 = vrcp.pop %v997
    %v999 = vmul.f32 1.0, %v998
    %v1000 = vmul.f32 %v992, %v884
    %v1001 = vmul.f32 %v986, %v993
    %v1002 = vadd.f32 %v1000, %v1001
    %v1003 = vtanh.pop %v1002
    %v1004 = vmul.f32 %v999, %v1003
    %s1005 = scalar_lea.vmem [#allocation3], 16
    %1006 = vst [vmem:[%s1005] sm:$0xff] %v1004
    %s1007 = scalar_lea.vmem [#allocation2], 96
    %v1008 = vld [vmem:[%s1007] sm:$0xff]
    %v1009 = vld [vmem:[%s1007 + $0x8] sm:$0xff]
    %v1010 = vld [vmem:[%s1007 + $0x10] sm:$0xff]
    %v1011 = vld [vmem:[%s1007 + $0x18] sm:$0xff]
    %v1012 = vpack.c.bf16 %v1004, %v1004
    %1013 = vmatprep.subr.bf16.mxu0 %v597
    %1014 = vmatpush1.bf16.msra.mxu0 %v596
    %1015 = vmatprep.subr.bf16.mxu0 %v601
    %1016 = vmatpush1.bf16.msra.mxu0 %v600
    %1017 = vmatprep.subr.bf16.mxu0 %v605
    %1018 = vmatpush1.bf16.msra.mxu0 %v604
    %1019 = vmatprep.subr.bf16.mxu0 %v609
    %1020 = vmatpush1.bf16.msra.mxu0 %v608
    %1021 = vmatprep.subr.bf16.mxu0 %v613
    %1022 = vmatpush1.bf16.msra.mxu0 %v612
    %1023 = vmatprep.subr.bf16.mxu0 %v617
    %1024 = vmatpush1.bf16.msra.mxu0 %v616
    %1025 = vmatprep.subr.bf16.mxu0 %v621
    %1026 = vmatpush1.bf16.msra.mxu0 %v620
    %1027 = vmatprep.subr.bf16.mxu0 %v625
    %1028 = vmatpush1.bf16.msra.mxu0 %v624
    %1029 = vmatprep.subr.bf16.mxu0 0
    %1030 = vmatpush1.bf16.msra.mxu0 0
    %1031 = vmatprep.subr.bf16.mxu0 0
    %1032 = vmatpush1.bf16.msra.mxu0 0
    %1033 = vmatprep.subr.bf16.mxu0 0
    %1034 = vmatpush1.bf16.msra.mxu0 0
    %1035 = vmatprep.subr.bf16.mxu0 0
    %1036 = vmatpush1.bf16.msra.mxu0 0
    %1037 = vmatprep.subr.bf16.mxu0 0
    %1038 = vmatpush1.bf16.msra.mxu0 0
    %1039 = vmatprep.subr.bf16.mxu0 0
    %1040 = vmatpush1.bf16.msra.mxu0 0
    %1041 = vmatprep.subr.bf16.mxu0 0
    %1042 = vmatpush1.bf16.msra.mxu0 0
    %1043 = vmatprep.subr.bf16.mxu0 0
    %1044 = vmatpush1.bf16.msra.mxu0 0
    %1045 = vmatprep.mubr.bf16.mxu0 0
    %1046 = vmatmul.mubr.bf16.gmra.mrb[0].mxu0 %v1012
    %v1047 = vpop.f32.mrb[0].mxu0
    %v1048 = vadd.f32 0.0, %v1047
    %v1049 = vpop.f32.mrb[0].mxu0
    %v1050 = vadd.f32 0.0, %v1049
    %v1051 = vpop.f32.mrb[0].mxu0
    %v1052 = vpop.f32.mrb[0].mxu0
    %1053 = vdwg.mxu0
    %1054 = vmatprep.subr.bf16.mxu0 %v599
    %1055 = vmatpush1.bf16.msra.mxu0 %v598
    %1056 = vmatprep.subr.bf16.mxu0 %v603
    %1057 = vmatpush1.bf16.msra.mxu0 %v602
    %1058 = vmatprep.subr.bf16.mxu0 %v607
    %1059 = vmatpush1.bf16.msra.mxu0 %v606
    %1060 = vmatprep.subr.bf16.mxu0 %v611
    %1061 = vmatpush1.bf16.msra.mxu0 %v610
    %1062 = vmatprep.subr.bf16.mxu0 %v615
    %1063 = vmatpush1.bf16.msra.mxu0 %v614
    %1064 = vmatprep.subr.bf16.mxu0 %v619
    %1065 = vmatpush1.bf16.msra.mxu0 %v618
    %1066 = vmatprep.subr.bf16.mxu0 %v623
    %1067 = vmatpush1.bf16.msra.mxu0 %v622
    %1068 = vmatprep.subr.bf16.mxu0 %v627
    %1069 = vmatpush1.bf16.msra.mxu0 %v626
    %1070 = vmatprep.subr.bf16.mxu0 0
    %1071 = vmatpush1.bf16.msra.mxu0 0
    %1072 = vmatprep.subr.bf16.mxu0 0
    %1073 = vmatpush1.bf16.msra.mxu0 0
    %1074 = vmatprep.subr.bf16.mxu0 0
    %1075 = vmatpush1.bf16.msra.mxu0 0
    %1076 = vmatprep.subr.bf16.mxu0 0
    %1077 = vmatpush1.bf16.msra.mxu0 0
    %1078 = vmatprep.subr.bf16.mxu0 0
    %1079 = vmatpush1.bf16.msra.mxu0 0
    %1080 = vmatprep.subr.bf16.mxu0 0
    %1081 = vmatpush1.bf16.msra.mxu0 0
    %1082 = vmatprep.subr.bf16.mxu0 0
    %1083 = vmatpush1.bf16.msra.mxu0 0
    %1084 = vmatprep.subr.bf16.mxu0 0
    %1085 = vmatpush1.bf16.msra.mxu0 0
    %1086 = vmatprep.mubr.bf16.mxu0 0
    %1087 = vmatmul.mubr.bf16.gmra.mrb[0].mxu0 %v1012
    %v1088 = vpop.f32.mrb[0].mxu0
    %v1089 = vadd.f32 0.0, %v1088
    %v1090 = vpop.f32.mrb[0].mxu0
    %v1091 = vadd.f32 0.0, %v1090
    %v1092 = vpop.f32.mrb[0].mxu0
    %v1093 = vpop.f32.mrb[0].mxu0
    %1094 = vdwg.mxu0
    %v1095 = vadd.f32 %v1008, %v1048
    %v1096 = vadd.f32 %v1009, %v1050
    %v1097 = vadd.f32 %v1010, %v1089
    %v1098 = vadd.f32 %v1011, %v1091
    %v1099 = vxor.u32 %v1095, 2147483648
    %v1100 = vmul.f32 %v1099, 1.442695
    %v1101 = vpow.pop %v1100
    %v1102 = vadd.f32 %v1101, 1.0
    %v1103 = vrcp.pop %v1102
    %v1104 = vmul.f32 1.0, %v1103
    %v1105 = vxor.u32 %v1096, 2147483648
    %v1106 = vmul.f32 %v1105, 1.442695
    %v1107 = vpow.pop %v1106
    %v1108 = vadd.f32 %v1107, 1.0
    %v1109 = vrcp.pop %v1108
    %v1110 = vmul.f32 1.0, %v1109
    %v1111 = vtanh.pop %v1097
    %v1112 = vxor.u32 %v1098, 2147483648
    %v1113 = vmul.f32 %v1112, 1.442695
    %v1114 = vpow.pop %v1113
    %v1115 = vadd.f32 %v1114, 1.0
    %v1116 = vrcp.pop %v1115
    %v1117 = vmul.f32 1.0, %v1116
    %v1118 = vmul.f32 %v1110, %v1002
    %v1119 = vmul.f32 %v1104, %v1111
    %v1120 = vadd.f32 %v1118, %v1119
    %v1121 = vtanh.pop %v1120
    %v1122 = vmul.f32 %v1117, %v1121
    %s1123 = scalar_lea.vmem [#allocation3], 24
    %1124 = vst [vmem:[%s1123] sm:$0xff] %v1122
    %s1125 = scalar_lea.vmem [#allocation2], 128
    %v1126 = vld [vmem:[%s1125] sm:$0xff]
    %v1127 = vld [vmem:[%s1125 + $0x8] sm:$0xff]
    %v1128 = vld [vmem:[%s1125 + $0x10] sm:$0xff]
    %v1129 = vld [vmem:[%s1125 + $0x18] sm:$0xff]
    %v1130 = vpack.c.bf16 %v1122, %v1122
    %1131 = vmatprep.subr.bf16.mxu0 %v597
    %1132 = vmatpush1.bf16.msra.mxu0 %v596
    %1133 = vmatprep.subr.bf16.mxu0 %v601
    %1134 = vmatpush1.bf16.msra.mxu0 %v600
    %1135 = vmatprep.subr.bf16.mxu0 %v605
    %1136 = vmatpush1.bf16.msra.mxu0 %v604
    %1137 = vmatprep.subr.bf16.mxu0 %v609
    %1138 = vmatpush1.bf16.msra.mxu0 %v608
    %1139 = vmatprep.subr.bf16.mxu0 %v613
    %1140 = vmatpush1.bf16.msra.mxu0 %v612
    %1141 = vmatprep.subr.bf16.mxu0 %v617
    %1142 = vmatpush1.bf16.msra.mxu0 %v616
    %1143 = vmatprep.subr.bf16.mxu0 %v621
    %1144 = vmatpush1.bf16.msra.mxu0 %v620
    %1145 = vmatprep.subr.bf16.mxu0 %v625
    %1146 = vmatpush1.bf16.msra.mxu0 %v624
    %1147 = vmatprep.subr.bf16.mxu0 0
    %1148 = vmatpush1.bf16.msra.mxu0 0
    %1149 = vmatprep.subr.bf16.mxu0 0
    %1150 = vmatpush1.bf16.msra.mxu0 0
    %1151 = vmatprep.subr.bf16.mxu0 0
    %1152 = vmatpush1.bf16.msra.mxu0 0
    %1153 = vmatprep.subr.bf16.mxu0 0
    %1154 = vmatpush1.bf16.msra.mxu0 0
    %1155 = vmatprep.subr.bf16.mxu0 0
    %1156 = vmatpush1.bf16.msra.mxu0 0
    %1157 = vmatprep.subr.bf16.mxu0 0
    %1158 = vmatpush1.bf16.msra.mxu0 0
    %1159 = vmatprep.subr.bf16.mxu0 0
    %1160 = vmatpush1.bf16.msra.mxu0 0
    %1161 = vmatprep.subr.bf16.mxu0 0
    %1162 = vmatpush1.bf16.msra.mxu0 0
    %1163 = vmatprep.mubr.bf16.mxu0 0
    %1164 = vmatmul.mubr.bf16.gmra.mrb[0].mxu0 %v1130
    %v1165 = vpop.f32.mrb[0].mxu0
    %v1166 = vadd.f32 0.0, %v1165
    %v1167 = vpop.f32.mrb[0].mxu0
    %v1168 = vadd.f32 0.0, %v1167
    %v1169 = vpop.f32.mrb[0].mxu0
    %v1170 = vpop.f32.mrb[0].mxu0
    %1171 = vdwg.mxu0
    %1172 = vmatprep.subr.bf16.mxu0 %v599
    %1173 = vmatpush1.bf16.msra.mxu0 %v598
    %1174 = vmatprep.subr.bf16.mxu0 %v603
    %1175 = vmatpush1.bf16.msra.mxu0 %v602
    %1176 = vmatprep.subr.bf16.mxu0 %v607
    %1177 = vmatpush1.bf16.msra.mxu0 %v606
    %1178 = vmatprep.subr.bf16.mxu0 %v611
    %1179 = vmatpush1.bf16.msra.mxu0 %v610
    %1180 = vmatprep.subr.bf16.mxu0 %v615
    %1181 = vmatpush1.bf16.msra.mxu0 %v614
    %1182 = vmatprep.subr.bf16.mxu0 %v619
    %1183 = vmatpush1.bf16.msra.mxu0 %v618
    %1184 = vmatprep.subr.bf16.mxu0 %v623
    %1185 = vmatpush1.bf16.msra.mxu0 %v622
    %1186 = vmatprep.subr.bf16.mxu0 %v627
    %1187 = vmatpush1.bf16.msra.mxu0 %v626
    %1188 = vmatprep.subr.bf16.mxu0 0
    %1189 = vmatpush1.bf16.msra.mxu0 0
    %1190 = vmatprep.subr.bf16.mxu0 0
    %1191 = vmatpush1.bf16.msra.mxu0 0
    %1192 = vmatprep.subr.bf16.mxu0 0
    %1193 = vmatpush1.bf16.msra.mxu0 0
    %1194 = vmatprep.subr.bf16.mxu0 0
    %1195 = vmatpush1.bf16.msra.mxu0 0
    %1196 = vmatprep.subr.bf16.mxu0 0
    %1197 = vmatpush1.bf16.msra.mxu0 0
    %1198 = vmatprep.subr.bf16.mxu0 0
    %1199 = vmatpush1.bf16.msra.mxu0 0
    %1200 = vmatprep.subr.bf16.mxu0 0
    %1201 = vmatpush1.bf16.msra.mxu0 0
    %1202 = vmatprep.subr.bf16.mxu0 0
    %1203 = vmatpush1.bf16.msra.mxu0 0
    %1204 = vmatprep.mubr.bf16.mxu0 0
    %1205 = vmatmul.mubr.bf16.gmra.mrb[0].mxu0 %v1130
    %v1206 = vpop.f32.mrb[0].mxu0
    %v1207 = vadd.f32 0.0, %v1206
    %v1208 = vpop.f32.mrb[0].mxu0
    %v1209 = vadd.f32 0.0, %v1208
    %v1210 = vpop.f32.mrb[0].mxu0
    %v1211 = vpop.f32.mrb[0].mxu0
    %1212 = vdwg.mxu0
    %v1213 = vadd.f32 %v1126, %v1166
    %v1214 = vadd.f32 %v1127, %v1168
    %v1215 = vadd.f32 %v1128, %v1207
    %v1216 = vadd.f32 %v1129, %v1209
    %v1217 = vxor.u32 %v1213, 2147483648
    %v1218 = vmul.f32 %v1217, 1.442695
    %v1219 = vpow.pop %v1218
    %v1220 = vadd.f32 %v1219, 1.0
    %v1221 = vrcp.pop %v1220
    %v1222 = vmul.f32 1.0, %v1221
    %v1223 = vxor.u32 %v1214, 2147483648
    %v1224 = vmul.f32 %v1223, 1.442695
    %v1225 = vpow.pop %v1224
    %v1226 = vadd.f32 %v1225, 1.0
    %v1227 = vrcp.pop %v1226
    %v1228 = vmul.f32 1.0, %v1227
    %v1229 = vtanh.pop %v1215
    %v1230 = vxor.u32 %v1216, 2147483648
    %v1231 = vmul.f32 %v1230, 1.442695
    %v1232 = vpow.pop %v1231
    %v1233 = vadd.f32 %v1232, 1.0
    %v1234 = vrcp.pop %v1233
    %v1235 = vmul.f32 1.0, %v1234
    %v1236 = vmul.f32 %v1228, %v1120
    %v1237 = vmul.f32 %v1222, %v1229
    %v1238 = vadd.f32 %v1236, %v1237
    %v1239 = vtanh.pop %v1238
    %v1240 = vmul.f32 %v1235, %v1239
    %s1241 = scalar_lea.vmem [#allocation3], 32
    %1242 = vst [vmem:[%s1241] sm:$0xff] %v1240
    %s1243 = scalar_lea.vmem [#allocation2], 160
    %v1244 = vld [vmem:[%s1243] sm:$0xff]
    %v1245 = vld [vmem:[%s1243 + $0x8] sm:$0xff]
    %v1246 = vld [vmem:[%s1243 + $0x10] sm:$0xff]
    %v1247 = vld [vmem:[%s1243 + $0x18] sm:$0xff]
    %v1248 = vpack.c.bf16 %v1240, %v1240
    %1249 = vmatprep.subr.bf16.mxu0 %v597
    %1250 = vmatpush1.bf16.msra.mxu0 %v596
    %1251 = vmatprep.subr.bf16.mxu0 %v601
    %1252 = vmatpush1.bf16.msra.mxu0 %v600
    %1253 = vmatprep.subr.bf16.mxu0 %v605
    %1254 = vmatpush1.bf16.msra.mxu0 %v604
    %1255 = vmatprep.subr.bf16.mxu0 %v609
    %1256 = vmatpush1.bf16.msra.mxu0 %v608
    %1257 = vmatprep.subr.bf16.mxu0 %v613
    %1258 = vmatpush1.bf16.msra.mxu0 %v612
    %1259 = vmatprep.subr.bf16.mxu0 %v617
    %1260 = vmatpush1.bf16.msra.mxu0 %v616
    %1261 = vmatprep.subr.bf16.mxu0 %v621
    %1262 = vmatpush1.bf16.msra.mxu0 %v620
    %1263 = vmatprep.subr.bf16.mxu0 %v625
    %1264 = vmatpush1.bf16.msra.mxu0 %v624
    %1265 = vmatprep.subr.bf16.mxu0 0
    %1266 = vmatpush1.bf16.msra.mxu0 0
    %1267 = vmatprep.subr.bf16.mxu0 0
    %1268 = vmatpush1.bf16.msra.mxu0 0
    %1269 = vmatprep.subr.bf16.mxu0 0
    %1270 = vmatpush1.bf16.msra.mxu0 0
    %1271 = vmatprep.subr.bf16.mxu0 0
    %1272 = vmatpush1.bf16.msra.mxu0 0
    %1273 = vmatprep.subr.bf16.mxu0 0
    %1274 = vmatpush1.bf16.msra.mxu0 0
    %1275 = vmatprep.subr.bf16.mxu0 0
    %1276 = vmatpush1.bf16.msra.mxu0 0
    %1277 = vmatprep.subr.bf16.mxu0 0
    %1278 = vmatpush1.bf16.msra.mxu0 0
    %1279 = vmatprep.subr.bf16.mxu0 0
    %1280 = vmatpush1.bf16.msra.mxu0 0
    %1281 = vmatprep.mubr.bf16.mxu0 0
    %1282 = vmatmul.mubr.bf16.gmra.mrb[0].mxu0 %v1248
    %v1283 = vpop.f32.mrb[0].mxu0
    %v1284 = vadd.f32 0.0, %v1283
    %v1285 = vpop.f32.mrb[0].mxu0
    %v1286 = vadd.f32 0.0, %v1285
    %v1287 = vpop.f32.mrb[0].mxu0
    %v1288 = vpop.f32.mrb[0].mxu0
    %1289 = vdwg.mxu0
    %1290 = vmatprep.subr.bf16.mxu0 %v599
    %1291 = vmatpush1.bf16.msra.mxu0 %v598
    %1292 = vmatprep.subr.bf16.mxu0 %v603
    %1293 = vmatpush1.bf16.msra.mxu0 %v602
    %1294 = vmatprep.subr.bf16.mxu0 %v607
    %1295 = vmatpush1.bf16.msra.mxu0 %v606
    %1296 = vmatprep.subr.bf16.mxu0 %v611
    %1297 = vmatpush1.bf16.msra.mxu0 %v610
    %1298 = vmatprep.subr.bf16.mxu0 %v615
    %1299 = vmatpush1.bf16.msra.mxu0 %v614
    %1300 = vmatprep.subr.bf16.mxu0 %v619
    %1301 = vmatpush1.bf16.msra.mxu0 %v618
    %1302 = vmatprep.subr.bf16.mxu0 %v623
    %1303 = vmatpush1.bf16.msra.mxu0 %v622
    %1304 = vmatprep.subr.bf16.mxu0 %v627
    %1305 = vmatpush1.bf16.msra.mxu0 %v626
    %1306 = vmatprep.subr.bf16.mxu0 0
    %1307 = vmatpush1.bf16.msra.mxu0 0
    %1308 = vmatprep.subr.bf16.mxu0 0
    %1309 = vmatpush1.bf16.msra.mxu0 0
    %1310 = vmatprep.subr.bf16.mxu0 0
    %1311 = vmatpush1.bf16.msra.mxu0 0
    %1312 = vmatprep.subr.bf16.mxu0 0
    %1313 = vmatpush1.bf16.msra.mxu0 0
    %1314 = vmatprep.subr.bf16.mxu0 0
    %1315 = vmatpush1.bf16.msra.mxu0 0
    %1316 = vmatprep.subr.bf16.mxu0 0
    %1317 = vmatpush1.bf16.msra.mxu0 0
    %1318 = vmatprep.subr.bf16.mxu0 0
    %1319 = vmatpush1.bf16.msra.mxu0 0
    %1320 = vmatprep.subr.bf16.mxu0 0
    %1321 = vmatpush1.bf16.msra.mxu0 0
    %1322 = vmatprep.mubr.bf16.mxu0 0
    %1323 = vmatmul.mubr.bf16.gmra.mrb[0].mxu0 %v1248
    %v1324 = vpop.f32.mrb[0].mxu0
    %v1325 = vadd.f32 0.0, %v1324
    %v1326 = vpop.f32.mrb[0].mxu0
    %v1327 = vadd.f32 0.0, %v1326
    %v1328 = vpop.f32.mrb[0].mxu0
    %v1329 = vpop.f32.mrb[0].mxu0
    %1330 = vdwg.mxu0
    %v1331 = vadd.f32 %v1244, %v1284
    %v1332 = vadd.f32 %v1245, %v1286
    %v1333 = vadd.f32 %v1246, %v1325
    %v1334 = vadd.f32 %v1247, %v1327
    %v1335 = vxor.u32 %v1331, 2147483648
    %v1336 = vmul.f32 %v1335, 1.442695
    %v1337 = vpow.pop %v1336
    %v1338 = vadd.f32 %v1337, 1.0
    %v1339 = vrcp.pop %v1338
    %v1340 = vmul.f32 1.0, %v1339
    %v1341 = vxor.u32 %v1332, 2147483648
    %v1342 = vmul.f32 %v1341, 1.442695
    %v1343 = vpow.pop %v1342
    %v1344 = vadd.f32 %v1343, 1.0
    %v1345 = vrcp.pop %v1344
    %v1346 = vmul.f32 1.0, %v1345
    %v1347 = vtanh.pop %v1333
    %v1348 = vxor.u32 %v1334, 2147483648
    %v1349 = vmul.f32 %v1348, 1.442695
    %v1350 = vpow.pop %v1349
    %v1351 = vadd.f32 %v1350, 1.0
    %v1352 = vrcp.pop %v1351
    %v1353 = vmul.f32 1.0, %v1352
    %v1354 = vmul.f32 %v1346, %v1238
    %v1355 = vmul.f32 %v1340, %v1347
    %v1356 = vadd.f32 %v1354, %v1355
    %v1357 = vtanh.pop %v1356
    %v1358 = vmul.f32 %v1353, %v1357
    %s1359 = scalar_lea.vmem [#allocation3], 40
    %1360 = vst [vmem:[%s1359] sm:$0xff] %v1358
    %s1361 = scalar_lea.vmem [#allocation2], 192
    %v1362 = vld [vmem:[%s1361] sm:$0xff]
    %v1363 = vld [vmem:[%s1361 + $0x8] sm:$0xff]
    %v1364 = vld [vmem:[%s1361 + $0x10] sm:$0xff]
    %v1365 = vld [vmem:[%s1361 + $0x18] sm:$0xff]
    %v1366 = vpack.c.bf16 %v1358, %v1358
    %1367 = vmatprep.subr.bf16.mxu0 %v597
    %1368 = vmatpush1.bf16.msra.mxu0 %v596
    %1369 = vmatprep.subr.bf16.mxu0 %v601
    %1370 = vmatpush1.bf16.msra.mxu0 %v600
    %1371 = vmatprep.subr.bf16.mxu0 %v605
    %1372 = vmatpush1.bf16.msra.mxu0 %v604
    %1373 = vmatprep.subr.bf16.mxu0 %v609
    %1374 = vmatpush1.bf16.msra.mxu0 %v608
    %1375 = vmatprep.subr.bf16.mxu0 %v613
    %1376 = vmatpush1.bf16.msra.mxu0 %v612
    %1377 = vmatprep.subr.bf16.mxu0 %v617
    %1378 = vmatpush1.bf16.msra.mxu0 %v616
    %1379 = vmatprep.subr.bf16.mxu0 %v621
    %1380 = vmatpush1.bf16.msra.mxu0 %v620
    %1381 = vmatprep.subr.bf16.mxu0 %v625
    %1382 = vmatpush1.bf16.msra.mxu0 %v624
    %1383 = vmatprep.subr.bf16.mxu0 0
    %1384 = vmatpush1.bf16.msra.mxu0 0
    %1385 = vmatprep.subr.bf16.mxu0 0
    %1386 = vmatpush1.bf16.msra.mxu0 0
    %1387 = vmatprep.subr.bf16.mxu0 0
    %1388 = vmatpush1.bf16.msra.mxu0 0
    %1389 = vmatprep.subr.bf16.mxu0 0
    %1390 = vmatpush1.bf16.msra.mxu0 0
    %1391 = vmatprep.subr.bf16.mxu0 0
    %1392 = vmatpush1.bf16.msra.mxu0 0
    %1393 = vmatprep.subr.bf16.mxu0 0
    %1394 = vmatpush1.bf16.msra.mxu0 0
    %1395 = vmatprep.subr.bf16.mxu0 0
    %1396 = vmatpush1.bf16.msra.mxu0 0
    %1397 = vmatprep.subr.bf16.mxu0 0
    %1398 = vmatpush1.bf16.msra.mxu0 0
    %1399 = vmatprep.mubr.bf16.mxu0 0
    %1400 = vmatmul.mubr.bf16.gmra.mrb[0].mxu0 %v1366
    %v1401 = vpop.f32.mrb[0].mxu0
    %v1402 = vadd.f32 0.0, %v1401
    %v1403 = vpop.f32.mrb[0].mxu0
    %v1404 = vadd.f32 0.0, %v1403
    %v1405 = vpop.f32.mrb[0].mxu0
    %v1406 = vpop.f32.mrb[0].mxu0
    %1407 = vdwg.mxu0
    %1408 = vmatprep.subr.bf16.mxu0 %v599
    %1409 = vmatpush1.bf16.msra.mxu0 %v598
    %1410 = vmatprep.subr.bf16.mxu0 %v603
    %1411 = vmatpush1.bf16.msra.mxu0 %v602
    %1412 = vmatprep.subr.bf16.mxu0 %v607
    %1413 = vmatpush1.bf16.msra.mxu0 %v606
    %1414 = vmatprep.subr.bf16.mxu0 %v611
    %1415 = vmatpush1.bf16.msra.mxu0 %v610
    %1416 = vmatprep.subr.bf16.mxu0 %v615
    %1417 = vmatpush1.bf16.msra.mxu0 %v614
    %1418 = vmatprep.subr.bf16.mxu0 %v619
    %1419 = vmatpush1.bf16.msra.mxu0 %v618
    %1420 = vmatprep.subr.bf16.mxu0 %v623
    %1421 = vmatpush1.bf16.msra.mxu0 %v622
    %1422 = vmatprep.subr.bf16.mxu0 %v627
    %1423 = vmatpush1.bf16.msra.mxu0 %v626
    %1424 = vmatprep.subr.bf16.mxu0 0
    %1425 = vmatpush1.bf16.msra.mxu0 0
    %1426 = vmatprep.subr.bf16.mxu0 0
    %1427 = vmatpush1.bf16.msra.mxu0 0
    %1428 = vmatprep.subr.bf16.mxu0 0
    %1429 = vmatpush1.bf16.msra.mxu0 0
    %1430 = vmatprep.subr.bf16.mxu0 0
    %1431 = vmatpush1.bf16.msra.mxu0 0
    %1432 = vmatprep.subr.bf16.mxu0 0
    %1433 = vmatpush1.bf16.msra.mxu0 0
    %1434 = vmatprep.subr.bf16.mxu0 0
    %1435 = vmatpush1.bf16.msra.mxu0 0
    %1436 = vmatprep.subr.bf16.mxu0 0
    %1437 = vmatpush1.bf16.msra.mxu0 0
    %1438 = vmatprep.subr.bf16.mxu0 0
    %1439 = vmatpush1.bf16.msra.mxu0 0
    %1440 = vmatprep.mubr.bf16.mxu0 0
    %1441 = vmatmul.mubr.bf16.gmra.mrb[0].mxu0 %v1366
    %v1442 = vpop.f32.mrb[0].mxu0
    %v1443 = vadd.f32 0.0, %v1442
    %v1444 = vpop.f32.mrb[0].mxu0
    %v1445 = vadd.f32 0.0, %v1444
    %v1446 = vpop.f32.mrb[0].mxu0
    %v1447 = vpop.f32.mrb[0].mxu0
    %1448 = vdwg.mxu0
    %v1449 = vadd.f32 %v1362, %v1402
    %v1450 = vadd.f32 %v1363, %v1404
    %v1451 = vadd.f32 %v1364, %v1443
    %v1452 = vadd.f32 %v1365, %v1445
    %v1453 = vxor.u32 %v1449, 2147483648
    %v1454 = vmul.f32 %v1453, 1.442695
    %v1455 = vpow.pop %v1454
    %v1456 = vadd.f32 %v1455, 1.0
    %v1457 = vrcp.pop %v1456
    %v1458 = vmul.f32 1.0, %v1457
    %v1459 = vxor.u32 %v1450, 2147483648
    %v1460 = vmul.f32 %v1459, 1.442695
    %v1461 = vpow.pop %v1460
    %v1462 = vadd.f32 %v1461, 1.0
    %v1463 = vrcp.pop %v1462
    %v1464 = vmul.f32 1.0, %v1463
    %v1465 = vtanh.pop %v1451
    %v1466 = vxor.u32 %v1452, 2147483648
    %v1467 = vmul.f32 %v1466, 1.442695
    %v1468 = vpow.pop %v1467
    %v1469 = vadd.f32 %v1468, 1.0
    %v1470 = vrcp.pop %v1469
    %v1471 = vmul.f32 1.0, %v1470
    %v1472 = vmul.f32 %v1464, %v1356
    %v1473 = vmul.f32 %v1458, %v1465
    %v1474 = vadd.f32 %v1472, %v1473
    %v1475 = vtanh.pop %v1474
    %v1476 = vmul.f32 %v1471, %v1475
    %s1477 = scalar_lea.vmem [#allocation3], 48
    %1478 = vst [vmem:[%s1477] sm:$0xff] %v1476
    %s1479 = scalar_lea.vmem [#allocation2], 224
    %v1480 = vld [vmem:[%s1479] sm:$0xff]
    %v1481 = vld [vmem:[%s1479 + $0x8] sm:$0xff]
    %v1482 = vld [vmem:[%s1479 + $0x10] sm:$0xff]
    %v1483 = vld [vmem:[%s1479 + $0x18] sm:$0xff]
    %v1484 = vpack.c.bf16 %v1476, %v1476
    %1485 = vmatprep.subr.bf16.mxu0 %v597
    %1486 = vmatpush1.bf16.msra.mxu0 %v596
    %1487 = vmatprep.subr.bf16.mxu0 %v601
    %1488 = vmatpush1.bf16.msra.mxu0 %v600
    %1489 = vmatprep.subr.bf16.mxu0 %v605
    %1490 = vmatpush1.bf16.msra.mxu0 %v604
    %1491 = vmatprep.subr.bf16.mxu0 %v609
    %1492 = vmatpush1.bf16.msra.mxu0 %v608
    %1493 = vmatprep.subr.bf16.mxu0 %v613
    %1494 = vmatpush1.bf16.msra.mxu0 %v612
    %1495 = vmatprep.subr.bf16.mxu0 %v617
    %1496 = vmatpush1.bf16.msra.mxu0 %v616
    %1497 = vmatprep.subr.bf16.mxu0 %v621
    %1498 = vmatpush1.bf16.msra.mxu0 %v620
    %1499 = vmatprep.subr.bf16.mxu0 %v625
    %1500 = vmatpush1.bf16.msra.mxu0 %v624
    %1501 = vmatprep.subr.bf16.mxu0 0
    %1502 = vmatpush1.bf16.msra.mxu0 0
    %1503 = vmatprep.subr.bf16.mxu0 0
    %1504 = vmatpush1.bf16.msra.mxu0 0
    %1505 = vmatprep.subr.bf16.mxu0 0
    %1506 = vmatpush1.bf16.msra.mxu0 0
    %1507 = vmatprep.subr.bf16.mxu0 0
    %1508 = vmatpush1.bf16.msra.mxu0 0
    %1509 = vmatprep.subr.bf16.mxu0 0
    %1510 = vmatpush1.bf16.msra.mxu0 0
    %1511 = vmatprep.subr.bf16.mxu0 0
    %1512 = vmatpush1.bf16.msra.mxu0 0
    %1513 = vmatprep.subr.bf16.mxu0 0
    %1514 = vmatpush1.bf16.msra.mxu0 0
    %1515 = vmatprep.subr.bf16.mxu0 0
    %1516 = vmatpush1.bf16.msra.mxu0 0
    %1517 = vmatprep.mubr.bf16.mxu0 0
    %1518 = vmatmul.mubr.bf16.gmra.mrb[0].mxu0 %v1484
    %v1519 = vpop.f32.mrb[0].mxu0
    %v1520 = vadd.f32 0.0, %v1519
    %v1521 = vpop.f32.mrb[0].mxu0
    %v1522 = vadd.f32 0.0, %v1521
    %v1523 = vpop.f32.mrb[0].mxu0
    %v1524 = vpop.f32.mrb[0].mxu0
    %1525 = vdwg.mxu0
    %1526 = vmatprep.subr.bf16.mxu0 %v599
    %1527 = vmatpush1.bf16.msra.mxu0 %v598
    %1528 = vmatprep.subr.bf16.mxu0 %v603
    %1529 = vmatpush1.bf16.msra.mxu0 %v602
    %1530 = vmatprep.subr.bf16.mxu0 %v607
    %1531 = vmatpush1.bf16.msra.mxu0 %v606
    %1532 = vmatprep.subr.bf16.mxu0 %v611
    %1533 = vmatpush1.bf16.msra.mxu0 %v610
    %1534 = vmatprep.subr.bf16.mxu0 %v615
    %1535 = vmatpush1.bf16.msra.mxu0 %v614
    %1536 = vmatprep.subr.bf16.mxu0 %v619
    %1537 = vmatpush1.bf16.msra.mxu0 %v618
    %1538 = vmatprep.subr.bf16.mxu0 %v623
    %1539 = vmatpush1.bf16.msra.mxu0 %v622
    %1540 = vmatprep.subr.bf16.mxu0 %v627
    %1541 = vmatpush1.bf16.msra.mxu0 %v626
    %1542 = vmatprep.subr.bf16.mxu0 0
    %1543 = vmatpush1.bf16.msra.mxu0 0
    %1544 = vmatprep.subr.bf16.mxu0 0
    %1545 = vmatpush1.bf16.msra.mxu0 0
    %1546 = vmatprep.subr.bf16.mxu0 0
    %1547 = vmatpush1.bf16.msra.mxu0 0
    %1548 = vmatprep.subr.bf16.mxu0 0
    %1549 = vmatpush1.bf16.msra.mxu0 0
    %1550 = vmatprep.subr.bf16.mxu0 0
    %1551 = vmatpush1.bf16.msra.mxu0 0
    %1552 = vmatprep.subr.bf16.mxu0 0
    %1553 = vmatpush1.bf16.msra.mxu0 0
    %1554 = vmatprep.subr.bf16.mxu0 0
    %1555 = vmatpush1.bf16.msra.mxu0 0
    %1556 = vmatprep.subr.bf16.mxu0 0
    %1557 = vmatpush1.bf16.msra.mxu0 0
    %1558 = vmatprep.mubr.bf16.mxu0 0
    %1559 = vmatmul.mubr.bf16.gmra.mrb[0].mxu0 %v1484
    %v1560 = vpop.f32.mrb[0].mxu0
    %v1561 = vadd.f32 0.0, %v1560
    %v1562 = vpop.f32.mrb[0].mxu0
    %v1563 = vadd.f32 0.0, %v1562
    %v1564 = vpop.f32.mrb[0].mxu0
    %v1565 = vpop.f32.mrb[0].mxu0
    %1566 = vdwg.mxu0
    %v1567 = vadd.f32 %v1480, %v1520
    %v1568 = vadd.f32 %v1481, %v1522
    %v1569 = vadd.f32 %v1482, %v1561
    %v1570 = vadd.f32 %v1483, %v1563
    %v1571 = vxor.u32 %v1567, 2147483648
    %v1572 = vmul.f32 %v1571, 1.442695
    %v1573 = vpow.pop %v1572
    %v1574 = vadd.f32 %v1573, 1.0
    %v1575 = vrcp.pop %v1574
    %v1576 = vmul.f32 1.0, %v1575
    %v1577 = vxor.u32 %v1568, 2147483648
    %v1578 = vmul.f32 %v1577, 1.442695
    %v1579 = vpow.pop %v1578
    %v1580 = vadd.f32 %v1579, 1.0
    %v1581 = vrcp.pop %v1580
    %v1582 = vmul.f32 1.0, %v1581
    %v1583 = vtanh.pop %v1569
    %v1584 = vxor.u32 %v1570, 2147483648
    %v1585 = vmul.f32 %v1584, 1.442695
    %v1586 = vpow.pop %v1585
    %v1587 = vadd.f32 %v1586, 1.0
    %v1588 = vrcp.pop %v1587
    %v1589 = vmul.f32 1.0, %v1588
    %v1590 = vmul.f32 %v1582, %v1474
    %v1591 = vmul.f32 %v1576, %v1583
    %v1592 = vadd.f32 %v1590, %v1591
    %v1593 = vtanh.pop %v1592
    %v1594 = vmul.f32 %v1589, %v1593
    %s1595 = scalar_lea.vmem [#allocation3], 56
    %1596 = vst [vmem:[%s1595] sm:$0xff] %v1594
    %v1597 = vld [vmem:[#allocation3] sm:$0xff]
    %v1598 = vld [vmem:[#allocation3 + $0x8] sm:$0xff]
    %v1599 = vld [vmem:[#allocation3 + $0x10] sm:$0xff]
    %v1600 = vld [vmem:[#allocation3 + $0x18] sm:$0xff]
    %v1601 = vld [vmem:[#allocation3 + $0x20] sm:$0xff]
    %v1602 = vld [vmem:[#allocation3 + $0x28] sm:$0xff]
    %v1603 = vld [vmem:[#allocation3 + $0x30] sm:$0xff]
    %v1604 = vld [vmem:[#allocation3 + $0x38] sm:$0xff]
    %v1605 = vpack.c.bf16 %v1597, %v1597
    %v1606 = vpack.c.bf16 %v1598, %v1598
    %v1607 = vpack.c.bf16 %v1599, %v1599
    %v1608 = vpack.c.bf16 %v1600, %v1600
    %v1609 = vpack.c.bf16 %v1601, %v1601
    %v1610 = vpack.c.bf16 %v1602, %v1602
    %v1611 = vpack.c.bf16 %v1603, %v1603
    %v1612 = vpack.c.bf16 %v1604, %v1604
    %s1613 = scalar_lea.vmem %s1, 256
    %v1614 = vld [vmem:[%s1613] sm:$0xff]
    %v1615 = vld [vmem:[%s1613 + $0x8] sm:$0xff]
    %v1616 = vld [vmem:[%s1613 + $0x10] sm:$0xff]
    %v1617 = vld [vmem:[%s1613 + $0x18] sm:$0xff]
    %v1618 = vld [vmem:[%s1613 + $0x20] sm:$0xff]
    %v1619 = vld [vmem:[%s1613 + $0x28] sm:$0xff]
    %v1620 = vld [vmem:[%s1613 + $0x30] sm:$0xff]
    %v1621 = vld [vmem:[%s1613 + $0x38] sm:$0xff]
    %v1622 = vld [vmem:[%s1613 + $0x40] sm:$0xff]
    %v1623 = vld [vmem:[%s1613 + $0x48] sm:$0xff]
    %v1624 = vld [vmem:[%s1613 + $0x50] sm:$0xff]
    %v1625 = vld [vmem:[%s1613 + $0x58] sm:$0xff]
    %v1626 = vld [vmem:[%s1613 + $0x60] sm:$0xff]
    %v1627 = vld [vmem:[%s1613 + $0x68] sm:$0xff]
    %v1628 = vld [vmem:[%s1613 + $0x70] sm:$0xff]
    %v1629 = vld [vmem:[%s1613 + $0x78] sm:$0xff]
    %v1630 = vld [vmem:[%s1613 + $0x80] sm:$0xff]
    %v1631 = vld [vmem:[%s1613 + $0x88] sm:$0xff]
    %v1632 = vld [vmem:[%s1613 + $0x90] sm:$0xff]
    %v1633 = vld [vmem:[%s1613 + $0x98] sm:$0xff]
    %v1634 = vld [vmem:[%s1613 + $0xa0] sm:$0xff]
    %v1635 = vld [vmem:[%s1613 + $0xa8] sm:$0xff]
    %v1636 = vld [vmem:[%s1613 + $0xb0] sm:$0xff]
    %v1637 = vld [vmem:[%s1613 + $0xb8] sm:$0xff]
    %v1638 = vld [vmem:[%s1613 + $0xc0] sm:$0xff]
    %v1639 = vld [vmem:[%s1613 + $0xc8] sm:$0xff]
    %v1640 = vld [vmem:[%s1613 + $0xd0] sm:$0xff]
    %v1641 = vld [vmem:[%s1613 + $0xd8] sm:$0xff]
    %v1642 = vld [vmem:[%s1613 + $0xe0] sm:$0xff]
    %v1643 = vld [vmem:[%s1613 + $0xe8] sm:$0xff]
    %v1644 = vld [vmem:[%s1613 + $0xf0] sm:$0xff]
    %v1645 = vld [vmem:[%s1613 + $0xf8] sm:$0xff]
    %s1646 = scalar_lea.vmem %s3, 4
    %v1647 = vld [vmem:[%s1646] sm:$0xf]
    %v1649 = vlaneseq
    %v1650 = vshrl.u32 %v1649, 7
    %v1651 = vsub.s32 0, %v1650
    %v1652 = vrot.slane %v1647, %v1651
    %v1653 = vlaneseq
    %v1654 = vshrl.u32 %v1653, 7
    %v1655 = vsub.s32 1, %v1654
    %v1656 = vrot.slane %v1647, %v1655
    %v1657 = vlaneseq
    %v1658 = vshrl.u32 %v1657, 7
    %v1659 = vsub.s32 2, %v1658
    %v1660 = vrot.slane %v1647, %v1659
    %v1661 = vlaneseq
    %v1662 = vshrl.u32 %v1661, 7
    %v1663 = vsub.s32 3, %v1662
    %v1664 = vrot.slane %v1647, %v1663
    %v1677 = vunpack.c.l.b16 %v1605
    %v1678 = vunpack.c.l.b16 %v1606
    %v1679 = vunpack.c.l.b16 %v1607
    %v1680 = vunpack.c.l.b16 %v1608
    %v1681 = vunpack.c.l.b16 %v1609
    %v1682 = vunpack.c.l.b16 %v1610
    %v1683 = vunpack.c.l.b16 %v1611
    %v1684 = vunpack.c.l.b16 %v1612
    %v1685 = vpack.c.b16 %v1678, %v1677
    %v1686 = vpack.c.b16 %v1680, %v1679
    %v1687 = vpack.c.b16 %v1682, %v1681
    %v1688 = vpack.c.b16 %v1684, %v1683
    %v1725 = vunpack.c.l.b16 %v1614
    %v1726 = vunpack.c.h.b16 %v1614
    %v1727 = vunpack.c.l.b16 %v1615
    %v1728 = vunpack.c.h.b16 %v1615
    %v1729 = vunpack.c.l.b16 %v1616
    %v1730 = vunpack.c.h.b16 %v1616
    %v1731 = vunpack.c.l.b16 %v1617
    %v1732 = vunpack.c.h.b16 %v1617
    %v1733 = vunpack.c.l.b16 %v1618
    %v1734 = vunpack.c.h.b16 %v1618
    %v1735 = vunpack.c.l.b16 %v1619
    %v1736 = vunpack.c.h.b16 %v1619
    %v1737 = vunpack.c.l.b16 %v1620
    %v1738 = vunpack.c.h.b16 %v1620
    %v1739 = vunpack.c.l.b16 %v1621
    %v1740 = vunpack.c.h.b16 %v1621
    %v1741 = vunpack.c.l.b16 %v1622
    %v1742 = vunpack.c.h.b16 %v1622
    %v1743 = vunpack.c.l.b16 %v1623
    %v1744 = vunpack.c.h.b16 %v1623
    %v1745 = vunpack.c.l.b16 %v1624
    %v1746 = vunpack.c.h.b16 %v1624
    %v1747 = vunpack.c.l.b16 %v1625
    %v1748 = vunpack.c.h.b16 %v1625
    %v1749 = vunpack.c.l.b16 %v1626
    %v1750 = vunpack.c.h.b16 %v1626
    %v1751 = vunpack.c.l.b16 %v1627
    %v1752 = vunpack.c.h.b16 %v1627
    %v1753 = vunpack.c.l.b16 %v1628
    %v1754 = vunpack.c.h.b16 %v1628
    %v1755 = vunpack.c.l.b16 %v1629
    %v1756 = vunpack.c.h.b16 %v1629
    %v1757 = vunpack.c.l.b16 %v1630
    %v1758 = vunpack.c.h.b16 %v1630
    %v1759 = vunpack.c.l.b16 %v1631
    %v1760 = vunpack.c.h.b16 %v1631
    %v1761 = vunpack.c.l.b16 %v1632
    %v1762 = vunpack.c.h.b16 %v1632
    %v1763 = vunpack.c.l.b16 %v1633
    %v1764 = vunpack.c.h.b16 %v1633
    %v1765 = vunpack.c.l.b16 %v1634
    %v1766 = vunpack.c.h.b16 %v1634
    %v1767 = vunpack.c.l.b16 %v1635
    %v1768 = vunpack.c.h.b16 %v1635
    %v1769 = vunpack.c.l.b16 %v1636
    %v1770 = vunpack.c.h.b16 %v1636
    %v1771 = vunpack.c.l.b16 %v1637
    %v1772 = vunpack.c.h.b16 %v1637
    %v1773 = vunpack.c.l.b16 %v1638
    %v1774 = vunpack.c.h.b16 %v1638
    %v1775 = vunpack.c.l.b16 %v1639
    %v1776 = vunpack.c.h.b16 %v1639
    %v1777 = vunpack.c.l.b16 %v1640
    %v1778 = vunpack.c.h.b16 %v1640
    %v1779 = vunpack.c.l.b16 %v1641
    %v1780 = vunpack.c.h.b16 %v1641
    %v1781 = vunpack.c.l.b16 %v1642
    %v1782 = vunpack.c.h.b16 %v1642
    %v1783 = vunpack.c.l.b16 %v1643
    %v1784 = vunpack.c.h.b16 %v1643
    %v1785 = vunpack.c.l.b16 %v1644
    %v1786 = vunpack.c.h.b16 %v1644
    %v1787 = vunpack.c.l.b16 %v1645
    %v1788 = vunpack.c.h.b16 %v1645
    %v1789 = vpack.c.b16 %v1729, %v1725
    %v1790 = vpack.c.b16 %v1730, %v1726
    %v1791 = vpack.c.b16 %v1731, %v1727
    %v1792 = vpack.c.b16 %v1732, %v1728
    %v1793 = vpack.c.b16 %v1737, %v1733
    %v1794 = vpack.c.b16 %v1738, %v1734
    %v1795 = vpack.c.b16 %v1739, %v1735
    %v1796 = vpack.c.b16 %v1740, %v1736
    %v1797 = vpack.c.b16 %v1745, %v1741
    %v1798 = vpack.c.b16 %v1746, %v1742
    %v1799 = vpack.c.b16 %v1747, %v1743
    %v1800 = vpack.c.b16 %v1748, %v1744
    %v1801 = vpack.c.b16 %v1753, %v1749
    %v1802 = vpack.c.b16 %v1754, %v1750
    %v1803 = vpack.c.b16 %v1755, %v1751
    %v1804 = vpack.c.b16 %v1756, %v1752
    %v1805 = vpack.c.b16 %v1761, %v1757
    %v1806 = vpack.c.b16 %v1762, %v1758
    %v1807 = vpack.c.b16 %v1763, %v1759
    %v1808 = vpack.c.b16 %v1764, %v1760
    %v1809 = vpack.c.b16 %v1769, %v1765
    %v1810 = vpack.c.b16 %v1770, %v1766
    %v1811 = vpack.c.b16 %v1771, %v1767
    %v1812 = vpack.c.b16 %v1772, %v1768
    %v1813 = vpack.c.b16 %v1777, %v1773
    %v1814 = vpack.c.b16 %v1778, %v1774
    %v1815 = vpack.c.b16 %v1779, %v1775
    %v1816 = vpack.c.b16 %v1780, %v1776
    %v1817 = vpack.c.b16 %v1785, %v1781
    %v1818 = vpack.c.b16 %v1786, %v1782
    %v1819 = vpack.c.b16 %v1787, %v1783
    %v1820 = vpack.c.b16 %v1788, %v1784
    %1853 = vmatprep.subr.bf16.mxu0 %v1790
    %1854 = vmatpush1.bf16.msra.mxu0 %v1789
    %1855 = vmatprep.subr.bf16.mxu0 %v1794
    %1856 = vmatpush1.bf16.msra.mxu0 %v1793
    %1857 = vmatprep.subr.bf16.mxu0 %v1798
    %1858 = vmatpush1.bf16.msra.mxu0 %v1797
    %1859 = vmatprep.subr.bf16.mxu0 %v1802
    %1860 = vmatpush1.bf16.msra.mxu0 %v1801
    %1861 = vmatprep.subr.bf16.mxu0 %v1806
    %1862 = vmatpush1.bf16.msra.mxu0 %v1805
    %1863 = vmatprep.subr.bf16.mxu0 %v1810
    %1864 = vmatpush1.bf16.msra.mxu0 %v1809
    %1865 = vmatprep.subr.bf16.mxu0 %v1814
    %1866 = vmatpush1.bf16.msra.mxu0 %v1813
    %1867 = vmatprep.subr.bf16.mxu0 %v1818
    %1868 = vmatpush1.bf16.msra.mxu0 %v1817
    %1869 = vmatprep.subr.bf16.mxu0 0
    %1870 = vmatpush1.bf16.msra.mxu0 0
    %1871 = vmatprep.subr.bf16.mxu0 0
    %1872 = vmatpush1.bf16.msra.mxu0 0
    %1873 = vmatprep.subr.bf16.mxu0 0
    %1874 = vmatpush1.bf16.msra.mxu0 0
    %1875 = vmatprep.subr.bf16.mxu0 0
    %1876 = vmatpush1.bf16.msra.mxu0 0
    %1877 = vmatprep.subr.bf16.mxu0 0
    %1878 = vmatpush1.bf16.msra.mxu0 0
    %1879 = vmatprep.subr.bf16.mxu0 0
    %1880 = vmatpush1.bf16.msra.mxu0 0
    %1881 = vmatprep.subr.bf16.mxu0 0
    %1882 = vmatpush1.bf16.msra.mxu0 0
    %1883 = vmatprep.subr.bf16.mxu0 0
    %1884 = vmatpush1.bf16.msra.mxu0 0
    %1885 = vmatprep.mubr.bf16.mxu0 0
    %1886 = vmatmul.mubr.bf16.gmra.mrb[0].mxu0 %v1685
    %v1887 = vpop.f32.mrb[0].mxu0
    %v1888 = vadd.f32 %v1652, %v1887
    %v1889 = vpop.f32.mrb[0].mxu0
    %v1890 = vadd.f32 %v1656, %v1889
    %v1891 = vpop.f32.mrb[0].mxu0
    %v1892 = vadd.f32 %v1652, %v1891
    %v1893 = vpop.f32.mrb[0].mxu0
    %v1894 = vadd.f32 %v1656, %v1893
    %1895 = vmatprep.mubr.bf16.mxu0 0
    %1896 = vmatmul.mubr.bf16.gmra.mrb[0].mxu0 %v1686
    %v1897 = vpop.f32.mrb[0].mxu0
    %v1898 = vadd.f32 %v1652, %v1897
    %v1899 = vpop.f32.mrb[0].mxu0
    %v1900 = vadd.f32 %v1656, %v1899
    %v1901 = vpop.f32.mrb[0].mxu0
    %v1902 = vadd.f32 %v1652, %v1901
    %v1903 = vpop.f32.mrb[0].mxu0
    %v1904 = vadd.f32 %v1656, %v1903
    %1905 = vmatprep.mubr.bf16.mxu0 0
    %1906 = vmatmul.mubr.bf16.gmra.mrb[0].mxu0 %v1687
    %v1907 = vpop.f32.mrb[0].mxu0
    %v1908 = vadd.f32 %v1652, %v1907
    %v1909 = vpop.f32.mrb[0].mxu0
    %v1910 = vadd.f32 %v1656, %v1909
    %v1911 = vpop.f32.mrb[0].mxu0
    %v1912 = vadd.f32 %v1652, %v1911
    %v1913 = vpop.f32.mrb[0].mxu0
    %v1914 = vadd.f32 %v1656, %v1913
    %1915 = vmatprep.mubr.bf16.mxu0 0
    %1916 = vmatmul.mubr.bf16.gmra.mrb[0].mxu0 %v1688
    %v1917 = vpop.f32.mrb[0].mxu0
    %v1918 = vadd.f32 %v1652, %v1917
    %v1919 = vpop.f32.mrb[0].mxu0
    %v1920 = vadd.f32 %v1656, %v1919
    %v1921 = vpop.f32.mrb[0].mxu0
    %v1922 = vadd.f32 %v1652, %v1921
    %v1923 = vpop.f32.mrb[0].mxu0
    %v1924 = vadd.f32 %v1656, %v1923
    %1925 = vdwg.mxu0
    %1926 = vmatprep.subr.bf16.mxu0 %v1792
    %1927 = vmatpush1.bf16.msra.mxu0 %v1791
    %1928 = vmatprep.subr.bf16.mxu0 %v1796
    %1929 = vmatpush1.bf16.msra.mxu0 %v1795
    %1930 = vmatprep.subr.bf16.mxu0 %v1800
    %1931 = vmatpush1.bf16.msra.mxu0 %v1799
    %1932 = vmatprep.subr.bf16.mxu0 %v1804
    %1933 = vmatpush1.bf16.msra.mxu0 %v1803
    %1934 = vmatprep.subr.bf16.mxu0 %v1808
    %1935 = vmatpush1.bf16.msra.mxu0 %v1807
    %1936 = vmatprep.subr.bf16.mxu0 %v1812
    %1937 = vmatpush1.bf16.msra.mxu0 %v1811
    %1938 = vmatprep.subr.bf16.mxu0 %v1816
    %1939 = vmatpush1.bf16.msra.mxu0 %v1815
    %1940 = vmatprep.subr.bf16.mxu0 %v1820
    %1941 = vmatpush1.bf16.msra.mxu0 %v1819
    %1942 = vmatprep.subr.bf16.mxu0 0
    %1943 = vmatpush1.bf16.msra.mxu0 0
    %1944 = vmatprep.subr.bf16.mxu0 0
    %1945 = vmatpush1.bf16.msra.mxu0 0
    %1946 = vmatprep.subr.bf16.mxu0 0
    %1947 = vmatpush1.bf16.msra.mxu0 0
    %1948 = vmatprep.subr.bf16.mxu0 0
    %1949 = vmatpush1.bf16.msra.mxu0 0
    %1950 = vmatprep.subr.bf16.mxu0 0
    %1951 = vmatpush1.bf16.msra.mxu0 0
    %1952 = vmatprep.subr.bf16.mxu0 0
    %1953 = vmatpush1.bf16.msra.mxu0 0
    %1954 = vmatprep.subr.bf16.mxu0 0
    %1955 = vmatpush1.bf16.msra.mxu0 0
    %1956 = vmatprep.subr.bf16.mxu0 0
    %1957 = vmatpush1.bf16.msra.mxu0 0
    %1958 = vmatprep.mubr.bf16.mxu0 0
    %1959 = vmatmul.mubr.bf16.gmra.mrb[0].mxu0 %v1685
    %v1960 = vpop.f32.mrb[0].mxu0
    %v1961 = vadd.f32 %v1660, %v1960
    %v1962 = vpop.f32.mrb[0].mxu0
    %v1963 = vadd.f32 %v1664, %v1962
    %v1964 = vpop.f32.mrb[0].mxu0
    %v1965 = vadd.f32 %v1660, %v1964
    %v1966 = vpop.f32.mrb[0].mxu0
    %v1967 = vadd.f32 %v1664, %v1966
    %1968 = vmatprep.mubr.bf16.mxu0 0
    %1969 = vmatmul.mubr.bf16.gmra.mrb[0].mxu0 %v1686
    %v1970 = vpop.f32.mrb[0].mxu0
    %v1971 = vadd.f32 %v1660, %v1970
    %v1972 = vpop.f32.mrb[0].mxu0
    %v1973 = vadd.f32 %v1664, %v1972
    %v1974 = vpop.f32.mrb[0].mxu0
    %v1975 = vadd.f32 %v1660, %v1974
    %v1976 = vpop.f32.mrb[0].mxu0
    %v1977 = vadd.f32 %v1664, %v1976
    %1978 = vmatprep.mubr.bf16.mxu0 0
    %1979 = vmatmul.mubr.bf16.gmra.mrb[0].mxu0 %v1687
    %v1980 = vpop.f32.mrb[0].mxu0
    %v1981 = vadd.f32 %v1660, %v1980
    %v1982 = vpop.f32.mrb[0].mxu0
    %v1983 = vadd.f32 %v1664, %v1982
    %v1984 = vpop.f32.mrb[0].mxu0
    %v1985 = vadd.f32 %v1660, %v1984
    %v1986 = vpop.f32.mrb[0].mxu0
    %v1987 = vadd.f32 %v1664, %v1986
    %1988 = vmatprep.mubr.bf16.mxu0 0
    %1989 = vmatmul.mubr.bf16.gmra.mrb[0].mxu0 %v1688
    %v1990 = vpop.f32.mrb[0].mxu0
    %v1991 = vadd.f32 %v1660, %v1990
    %v1992 = vpop.f32.mrb[0].mxu0
    %v1993 = vadd.f32 %v1664, %v1992
    %v1994 = vpop.f32.mrb[0].mxu0
    %v1995 = vadd.f32 %v1660, %v1994
    %v1996 = vpop.f32.mrb[0].mxu0
    %v1997 = vadd.f32 %v1664, %v1996
    %1998 = vdwg.mxu0
    %1999 = vst [vmem:[#allocation2] sm:$0xff] %v1888
    %2000 = vst [vmem:[#allocation2 + $0x8] sm:$0xff] %v1890
    %2001 = vst [vmem:[#allocation2 + $0x10] sm:$0xff] %v1961
    %2002 = vst [vmem:[#allocation2 + $0x18] sm:$0xff] %v1963
    %2003 = vst [vmem:[#allocation2 + $0x20] sm:$0xff] %v1892
    %2004 = vst [vmem:[#allocation2 + $0x28] sm:$0xff] %v1894
    %2005 = vst [vmem:[#allocation2 + $0x30] sm:$0xff] %v1965
    %2006 = vst [vmem:[#allocation2 + $0x38] sm:$0xff] %v1967
    %2007 = vst [vmem:[#allocation2 + $0x40] sm:$0xff] %v1898
    %2008 = vst [vmem:[#allocation2 + $0x48] sm:$0xff] %v1900
    %2009 = vst [vmem:[#allocation2 + $0x50] sm:$0xff] %v1971
    %2010 = vst [vmem:[#allocation2 + $0x58] sm:$0xff] %v1973
    %2011 = vst [vmem:[#allocation2 + $0x60] sm:$0xff] %v1902
    %2012 = vst [vmem:[#allocation2 + $0x68] sm:$0xff] %v1904
    %2013 = vst [vmem:[#allocation2 + $0x70] sm:$0xff] %v1975
    %2014 = vst [vmem:[#allocation2 + $0x78] sm:$0xff] %v1977
    %2015 = vst [vmem:[#allocation2 + $0x80] sm:$0xff] %v1908
    %2016 = vst [vmem:[#allocation2 + $0x88] sm:$0xff] %v1910
    %2017 = vst [vmem:[#allocation2 + $0x90] sm:$0xff] %v1981
    %2018 = vst [vmem:[#allocation2 + $0x98] sm:$0xff] %v1983
    %2019 = vst [vmem:[#allocation2 + $0xa0] sm:$0xff] %v1912
    %2020 = vst [vmem:[#allocation2 + $0xa8] sm:$0xff] %v1914
    %2021 = vst [vmem:[#allocation2 + $0xb0] sm:$0xff] %v1985
    %2022 = vst [vmem:[#allocation2 + $0xb8] sm:$0xff] %v1987
    %2023 = vst [vmem:[#allocation2 + $0xc0] sm:$0xff] %v1918
    %2024 = vst [vmem:[#allocation2 + $0xc8] sm:$0xff] %v1920
    %2025 = vst [vmem:[#allocation2 + $0xd0] sm:$0xff] %v1991
    %2026 = vst [vmem:[#allocation2 + $0xd8] sm:$0xff] %v1993
    %2027 = vst [vmem:[#allocation2 + $0xe0] sm:$0xff] %v1922
    %2028 = vst [vmem:[#allocation2 + $0xe8] sm:$0xff] %v1924
    %2029 = vst [vmem:[#allocation2 + $0xf0] sm:$0xff] %v1995
    %2030 = vst [vmem:[#allocation2 + $0xf8] sm:$0xff] %v1997
    %s2031 = scalar_lea.vmem %s2, 256
    %v2032 = vld [vmem:[%s2031] sm:$0xff]
    %v2033 = vld [vmem:[%s2031 + $0x8] sm:$0xff]
    %v2034 = vld [vmem:[%s2031 + $0x10] sm:$0xff]
    %v2035 = vld [vmem:[%s2031 + $0x18] sm:$0xff]
    %v2036 = vld [vmem:[%s2031 + $0x20] sm:$0xff]
    %v2037 = vld [vmem:[%s2031 + $0x28] sm:$0xff]
    %v2038 = vld [vmem:[%s2031 + $0x30] sm:$0xff]
    %v2039 = vld [vmem:[%s2031 + $0x38] sm:$0xff]
    %v2040 = vld [vmem:[%s2031 + $0x40] sm:$0xff]
    %v2041 = vld [vmem:[%s2031 + $0x48] sm:$0xff]
    %v2042 = vld [vmem:[%s2031 + $0x50] sm:$0xff]
    %v2043 = vld [vmem:[%s2031 + $0x58] sm:$0xff]
    %v2044 = vld [vmem:[%s2031 + $0x60] sm:$0xff]
    %v2045 = vld [vmem:[%s2031 + $0x68] sm:$0xff]
    %v2046 = vld [vmem:[%s2031 + $0x70] sm:$0xff]
    %v2047 = vld [vmem:[%s2031 + $0x78] sm:$0xff]
    %v2048 = vld [vmem:[%s2031 + $0x80] sm:$0xff]
    %v2049 = vld [vmem:[%s2031 + $0x88] sm:$0xff]
    %v2050 = vld [vmem:[%s2031 + $0x90] sm:$0xff]
    %v2051 = vld [vmem:[%s2031 + $0x98] sm:$0xff]
    %v2052 = vld [vmem:[%s2031 + $0xa0] sm:$0xff]
    %v2053 = vld [vmem:[%s2031 + $0xa8] sm:$0xff]
    %v2054 = vld [vmem:[%s2031 + $0xb0] sm:$0xff]
    %v2055 = vld [vmem:[%s2031 + $0xb8] sm:$0xff]
    %v2056 = vld [vmem:[%s2031 + $0xc0] sm:$0xff]
    %v2057 = vld [vmem:[%s2031 + $0xc8] sm:$0xff]
    %v2058 = vld [vmem:[%s2031 + $0xd0] sm:$0xff]
    %v2059 = vld [vmem:[%s2031 + $0xd8] sm:$0xff]
    %v2060 = vld [vmem:[%s2031 + $0xe0] sm:$0xff]
    %v2061 = vld [vmem:[%s2031 + $0xe8] sm:$0xff]
    %v2062 = vld [vmem:[%s2031 + $0xf0] sm:$0xff]
    %v2063 = vld [vmem:[%s2031 + $0xf8] sm:$0xff]
    %v2064 = vld [vmem:[#allocation2] sm:$0xff]
    %v2065 = vld [vmem:[#allocation2 + $0x8] sm:$0xff]
    %v2066 = vld [vmem:[#allocation2 + $0x10] sm:$0xff]
    %v2067 = vld [vmem:[#allocation2 + $0x18] sm:$0xff]
    %v2068 = vpack.c.bf16 %v1594, %v1594
    %v2101 = vunpack.c.l.b16 %v2032
    %v2102 = vunpack.c.h.b16 %v2032
    %v2103 = vunpack.c.l.b16 %v2033
    %v2104 = vunpack.c.h.b16 %v2033
    %v2105 = vunpack.c.l.b16 %v2034
    %v2106 = vunpack.c.h.b16 %v2034
    %v2107 = vunpack.c.l.b16 %v2035
    %v2108 = vunpack.c.h.b16 %v2035
    %v2109 = vunpack.c.l.b16 %v2036
    %v2110 = vunpack.c.h.b16 %v2036
    %v2111 = vunpack.c.l.b16 %v2037
    %v2112 = vunpack.c.h.b16 %v2037
    %v2113 = vunpack.c.l.b16 %v2038
    %v2114 = vunpack.c.h.b16 %v2038
    %v2115 = vunpack.c.l.b16 %v2039
    %v2116 = vunpack.c.h.b16 %v2039
    %v2117 = vunpack.c.l.b16 %v2040
    %v2118 = vunpack.c.h.b16 %v2040
    %v2119 = vunpack.c.l.b16 %v2041
    %v2120 = vunpack.c.h.b16 %v2041
    %v2121 = vunpack.c.l.b16 %v2042
    %v2122 = vunpack.c.h.b16 %v2042
    %v2123 = vunpack.c.l.b16 %v2043
    %v2124 = vunpack.c.h.b16 %v2043
    %v2125 = vunpack.c.l.b16 %v2044
    %v2126 = vunpack.c.h.b16 %v2044
    %v2127 = vunpack.c.l.b16 %v2045
    %v2128 = vunpack.c.h.b16 %v2045
    %v2129 = vunpack.c.l.b16 %v2046
    %v2130 = vunpack.c.h.b16 %v2046
    %v2131 = vunpack.c.l.b16 %v2047
    %v2132 = vunpack.c.h.b16 %v2047
    %v2133 = vunpack.c.l.b16 %v2048
    %v2134 = vunpack.c.h.b16 %v2048
    %v2135 = vunpack.c.l.b16 %v2049
    %v2136 = vunpack.c.h.b16 %v2049
    %v2137 = vunpack.c.l.b16 %v2050
    %v2138 = vunpack.c.h.b16 %v2050
    %v2139 = vunpack.c.l.b16 %v2051
    %v2140 = vunpack.c.h.b16 %v2051
    %v2141 = vunpack.c.l.b16 %v2052
    %v2142 = vunpack.c.h.b16 %v2052
    %v2143 = vunpack.c.l.b16 %v2053
    %v2144 = vunpack.c.h.b16 %v2053
    %v2145 = vunpack.c.l.b16 %v2054
    %v2146 = vunpack.c.h.b16 %v2054
    %v2147 = vunpack.c.l.b16 %v2055
    %v2148 = vunpack.c.h.b16 %v2055
    %v2149 = vunpack.c.l.b16 %v2056
    %v2150 = vunpack.c.h.b16 %v2056
    %v2151 = vunpack.c.l.b16 %v2057
    %v2152 = vunpack.c.h.b16 %v2057
    %v2153 = vunpack.c.l.b16 %v2058
    %v2154 = vunpack.c.h.b16 %v2058
    %v2155 = vunpack.c.l.b16 %v2059
    %v2156 = vunpack.c.h.b16 %v2059
    %v2157 = vunpack.c.l.b16 %v2060
    %v2158 = vunpack.c.h.b16 %v2060
    %v2159 = vunpack.c.l.b16 %v2061
    %v2160 = vunpack.c.h.b16 %v2061
    %v2161 = vunpack.c.l.b16 %v2062
    %v2162 = vunpack.c.h.b16 %v2062
    %v2163 = vunpack.c.l.b16 %v2063
    %v2164 = vunpack.c.h.b16 %v2063
    %v2165 = vpack.c.b16 %v2105, %v2101
    %v2166 = vpack.c.b16 %v2106, %v2102
    %v2167 = vpack.c.b16 %v2107, %v2103
    %v2168 = vpack.c.b16 %v2108, %v2104
    %v2169 = vpack.c.b16 %v2113, %v2109
    %v2170 = vpack.c.b16 %v2114, %v2110
    %v2171 = vpack.c.b16 %v2115, %v2111
    %v2172 = vpack.c.b16 %v2116, %v2112
    %v2173 = vpack.c.b16 %v2121, %v2117
    %v2174 = vpack.c.b16 %v2122, %v2118
    %v2175 = vpack.c.b16 %v2123, %v2119
    %v2176 = vpack.c.b16 %v2124, %v2120
    %v2177 = vpack.c.b16 %v2129, %v2125
    %v2178 = vpack.c.b16 %v2130, %v2126
    %v2179 = vpack.c.b16 %v2131, %v2127
    %v2180 = vpack.c.b16 %v2132, %v2128
    %v2181 = vpack.c.b16 %v2137, %v2133
    %v2182 = vpack.c.b16 %v2138, %v2134
    %v2183 = vpack.c.b16 %v2139, %v2135
    %v2184 = vpack.c.b16 %v2140, %v2136
    %v2185 = vpack.c.b16 %v2145, %v2141
    %v2186 = vpack.c.b16 %v2146, %v2142
    %v2187 = vpack.c.b16 %v2147, %v2143
    %v2188 = vpack.c.b16 %v2148, %v2144
    %v2189 = vpack.c.b16 %v2153, %v2149
    %v2190 = vpack.c.b16 %v2154, %v2150
    %v2191 = vpack.c.b16 %v2155, %v2151
    %v2192 = vpack.c.b16 %v2156, %v2152
    %v2193 = vpack.c.b16 %v2161, %v2157
    %v2194 = vpack.c.b16 %v2162, %v2158
    %v2195 = vpack.c.b16 %v2163, %v2159
    %v2196 = vpack.c.b16 %v2164, %v2160
    %2229 = vmatprep.subr.bf16.mxu0 %v2166
    %2230 = vmatpush1.bf16.msra.mxu0 %v2165
    %2231 = vmatprep.subr.bf16.mxu0 %v2170
    %2232 = vmatpush1.bf16.msra.mxu0 %v2169
    %2233 = vmatprep.subr.bf16.mxu0 %v2174
    %2234 = vmatpush1.bf16.msra.mxu0 %v2173
    %2235 = vmatprep.subr.bf16.mxu0 %v2178
    %2236 = vmatpush1.bf16.msra.mxu0 %v2177
    %2237 = vmatprep.subr.bf16.mxu0 %v2182
    %2238 = vmatpush1.bf16.msra.mxu0 %v2181
    %2239 = vmatprep.subr.bf16.mxu0 %v2186
    %2240 = vmatpush1.bf16.msra.mxu0 %v2185
    %2241 = vmatprep.subr.bf16.mxu0 %v2190
    %2242 = vmatpush1.bf16.msra.mxu0 %v2189
    %2243 = vmatprep.subr.bf16.mxu0 %v2194
    %2244 = vmatpush1.bf16.msra.mxu0 %v2193
    %2245 = vmatprep.subr.bf16.mxu0 0
    %2246 = vmatpush1.bf16.msra.mxu0 0
    %2247 = vmatprep.subr.bf16.mxu0 0
    %2248 = vmatpush1.bf16.msra.mxu0 0
    %2249 = vmatprep.subr.bf16.mxu0 0
    %2250 = vmatpush1.bf16.msra.mxu0 0
    %2251 = vmatprep.subr.bf16.mxu0 0
    %2252 = vmatpush1.bf16.msra.mxu0 0
    %2253 = vmatprep.subr.bf16.mxu0 0
    %2254 = vmatpush1.bf16.msra.mxu0 0
    %2255 = vmatprep.subr.bf16.mxu0 0
    %2256 = vmatpush1.bf16.msra.mxu0 0
    %2257 = vmatprep.subr.bf16.mxu0 0
    %2258 = vmatpush1.bf16.msra.mxu0 0
    %2259 = vmatprep.subr.bf16.mxu0 0
    %2260 = vmatpush1.bf16.msra.mxu0 0
    %2261 = vmatprep.mubr.bf16.mxu0 0
    %2262 = vmatmul.mubr.bf16.gmra.mrb[0].mxu0 %v2068
    %v2263 = vpop.f32.mrb[0].mxu0
    %v2264 = vadd.f32 0.0, %v2263
    %v2265 = vpop.f32.mrb[0].mxu0
    %v2266 = vadd.f32 0.0, %v2265
    %v2267 = vpop.f32.mrb[0].mxu0
    %v2268 = vpop.f32.mrb[0].mxu0
    %2269 = vdwg.mxu0
    %2270 = vmatprep.subr.bf16.mxu0 %v2168
    %2271 = vmatpush1.bf16.msra.mxu0 %v2167
    %2272 = vmatprep.subr.bf16.mxu0 %v2172
    %2273 = vmatpush1.bf16.msra.mxu0 %v2171
    %2274 = vmatprep.subr.bf16.mxu0 %v2176
    %2275 = vmatpush1.bf16.msra.mxu0 %v2175
    %2276 = vmatprep.subr.bf16.mxu0 %v2180
    %2277 = vmatpush1.bf16.msra.mxu0 %v2179
    %2278 = vmatprep.subr.bf16.mxu0 %v2184
    %2279 = vmatpush1.bf16.msra.mxu0 %v2183
    %2280 = vmatprep.subr.bf16.mxu0 %v2188
    %2281 = vmatpush1.bf16.msra.mxu0 %v2187
    %2282 = vmatprep.subr.bf16.mxu0 %v2192
    %2283 = vmatpush1.bf16.msra.mxu0 %v2191
    %2284 = vmatprep.subr.bf16.mxu0 %v2196
    %2285 = vmatpush1.bf16.msra.mxu0 %v2195
    %2286 = vmatprep.subr.bf16.mxu0 0
    %2287 = vmatpush1.bf16.msra.mxu0 0
    %2288 = vmatprep.subr.bf16.mxu0 0
    %2289 = vmatpush1.bf16.msra.mxu0 0
    %2290 = vmatprep.subr.bf16.mxu0 0
    %2291 = vmatpush1.bf16.msra.mxu0 0
    %2292 = vmatprep.subr.bf16.mxu0 0
    %2293 = vmatpush1.bf16.msra.mxu0 0
    %2294 = vmatprep.subr.bf16.mxu0 0
    %2295 = vmatpush1.bf16.msra.mxu0 0
    %2296 = vmatprep.subr.bf16.mxu0 0
    %2297 = vmatpush1.bf16.msra.mxu0 0
    %2298 = vmatprep.subr.bf16.mxu0 0
    %2299 = vmatpush1.bf16.msra.mxu0 0
    %2300 = vmatprep.subr.bf16.mxu0 0
    %2301 = vmatpush1.bf16.msra.mxu0 0
    %2302 = vmatprep.mubr.bf16.mxu0 0
    %2303 = vmatmul.mubr.bf16.gmra.mrb[0].mxu0 %v2068
    %v2304 = vpop.f32.mrb[0].mxu0
    %v2305 = vadd.f32 0.0, %v2304
    %v2306 = vpop.f32.mrb[0].mxu0
    %v2307 = vadd.f32 0.0, %v2306
    %v2308 = vpop.f32.mrb[0].mxu0
    %v2309 = vpop.f32.mrb[0].mxu0
    %2310 = vdwg.mxu0
    %v2311 = vadd.f32 %v2064, %v2264
    %v2312 = vadd.f32 %v2065, %v2266
    %v2313 = vadd.f32 %v2066, %v2305
    %v2314 = vadd.f32 %v2067, %v2307
    %v2315 = vxor.u32 %v2311, 2147483648
    %v2316 = vmul.f32 %v2315, 1.442695
    %v2317 = vpow.pop %v2316
    %v2318 = vadd.f32 %v2317, 1.0
    %v2319 = vrcp.pop %v2318
    %v2320 = vmul.f32 1.0, %v2319
    %v2321 = vxor.u32 %v2312, 2147483648
    %v2322 = vmul.f32 %v2321, 1.442695
    %v2323 = vpow.pop %v2322
    %v2324 = vadd.f32 %v2323, 1.0
    %v2325 = vrcp.pop %v2324
    %v2326 = vmul.f32 1.0, %v2325
    %v2327 = vtanh.pop %v2313
    %v2328 = vxor.u32 %v2314, 2147483648
    %v2329 = vmul.f32 %v2328, 1.442695
    %v2330 = vpow.pop %v2329
    %v2331 = vadd.f32 %v2330, 1.0
    %v2332 = vrcp.pop %v2331
    %v2333 = vmul.f32 1.0, %v2332
    %v2334 = vmul.f32 %v2326, %v1592
    %v2335 = vmul.f32 %v2320, %v2327
    %v2336 = vadd.f32 %v2334, %v2335
    %v2337 = vtanh.pop %v2336
    %v2338 = vmul.f32 %v2333, %v2337
    %2339 = vst [vmem:[#allocation3] sm:$0xff] %v2338
    %v2340 = vld [vmem:[%s771] sm:$0xff]
    %v2341 = vld [vmem:[%s771 + $0x8] sm:$0xff]
    %v2342 = vld [vmem:[%s771 + $0x10] sm:$0xff]
    %v2343 = vld [vmem:[%s771 + $0x18] sm:$0xff]
    %v2344 = vpack.c.bf16 %v2338, %v2338
    %2345 = vmatprep.subr.bf16.mxu0 %v2166
    %2346 = vmatpush1.bf16.msra.mxu0 %v2165
    %2347 = vmatprep.subr.bf16.mxu0 %v2170
    %2348 = vmatpush1.bf16.msra.mxu0 %v2169
    %2349 = vmatprep.subr.bf16.mxu0 %v2174
    %2350 = vmatpush1.bf16.msra.mxu0 %v2173
    %2351 = vmatprep.subr.bf16.mxu0 %v2178
    %2352 = vmatpush1.bf16.msra.mxu0 %v2177
    %2353 = vmatprep.subr.bf16.mxu0 %v2182
    %2354 = vmatpush1.bf16.msra.mxu0 %v2181
    %2355 = vmatprep.subr.bf16.mxu0 %v2186
    %2356 = vmatpush1.bf16.msra.mxu0 %v2185
    %2357 = vmatprep.subr.bf16.mxu0 %v2190
    %2358 = vmatpush1.bf16.msra.mxu0 %v2189
    %2359 = vmatprep.subr.bf16.mxu0 %v2194
    %2360 = vmatpush1.bf16.msra.mxu0 %v2193
    %2361 = vmatprep.subr.bf16.mxu0 0
    %2362 = vmatpush1.bf16.msra.mxu0 0
    %2363 = vmatprep.subr.bf16.mxu0 0
    %2364 = vmatpush1.bf16.msra.mxu0 0
    %2365 = vmatprep.subr.bf16.mxu0 0
    %2366 = vmatpush1.bf16.msra.mxu0 0
    %2367 = vmatprep.subr.bf16.mxu0 0
    %2368 = vmatpush1.bf16.msra.mxu0 0
    %2369 = vmatprep.subr.bf16.mxu0 0
    %2370 = vmatpush1.bf16.msra.mxu0 0
    %2371 = vmatprep.subr.bf16.mxu0 0
    %2372 = vmatpush1.bf16.msra.mxu0 0
    %2373 = vmatprep.subr.bf16.mxu0 0
    %2374 = vmatpush1.bf16.msra.mxu0 0
    %2375 = vmatprep.subr.bf16.mxu0 0
    %2376 = vmatpush1.bf16.msra.mxu0 0
    %2377 = vmatprep.mubr.bf16.mxu0 0
    %2378 = vmatmul.mubr.bf16.gmra.mrb[0].mxu0 %v2344
    %v2379 = vpop.f32.mrb[0].mxu0
    %v2380 = vadd.f32 0.0, %v2379
    %v2381 = vpop.f32.mrb[0].mxu0
    %v2382 = vadd.f32 0.0, %v2381
    %v2383 = vpop.f32.mrb[0].mxu0
    %v2384 = vpop.f32.mrb[0].mxu0
    %2385 = vdwg.mxu0
    %2386 = vmatprep.subr.bf16.mxu0 %v2168
    %2387 = vmatpush1.bf16.msra.mxu0 %v2167
    %2388 = vmatprep.subr.bf16.mxu0 %v2172
    %2389 = vmatpush1.bf16.msra.mxu0 %v2171
    %2390 = vmatprep.subr.bf16.mxu0 %v2176
    %2391 = vmatpush1.bf16.msra.mxu0 %v2175
    %2392 = vmatprep.subr.bf16.mxu0 %v2180
    %2393 = vmatpush1.bf16.msra.mxu0 %v2179
    %2394 = vmatprep.subr.bf16.mxu0 %v2184
    %2395 = vmatpush1.bf16.msra.mxu0 %v2183
    %2396 = vmatprep.subr.bf16.mxu0 %v2188
    %2397 = vmatpush1.bf16.msra.mxu0 %v2187
    %2398 = vmatprep.subr.bf16.mxu0 %v2192
    %2399 = vmatpush1.bf16.msra.mxu0 %v2191
    %2400 = vmatprep.subr.bf16.mxu0 %v2196
    %2401 = vmatpush1.bf16.msra.mxu0 %v2195
    %2402 = vmatprep.subr.bf16.mxu0 0
    %2403 = vmatpush1.bf16.msra.mxu0 0
    %2404 = vmatprep.subr.bf16.mxu0 0
    %2405 = vmatpush1.bf16.msra.mxu0 0
    %2406 = vmatprep.subr.bf16.mxu0 0
    %2407 = vmatpush1.bf16.msra.mxu0 0
    %2408 = vmatprep.subr.bf16.mxu0 0
    %2409 = vmatpush1.bf16.msra.mxu0 0
    %2410 = vmatprep.subr.bf16.mxu0 0
    %2411 = vmatpush1.bf16.msra.mxu0 0
    %2412 = vmatprep.subr.bf16.mxu0 0
    %2413 = vmatpush1.bf16.msra.mxu0 0
    %2414 = vmatprep.subr.bf16.mxu0 0
    %2415 = vmatpush1.bf16.msra.mxu0 0
    %2416 = vmatprep.subr.bf16.mxu0 0
    %2417 = vmatpush1.bf16.msra.mxu0 0
    %2418 = vmatprep.mubr.bf16.mxu0 0
    %2419 = vmatmul.mubr.bf16.gmra.mrb[0].mxu0 %v2344
    %v2420 = vpop.f32.mrb[0].mxu0
    %v2421 = vadd.f32 0.0, %v2420
    %v2422 = vpop.f32.mrb[0].mxu0
    %v2423 = vadd.f32 0.0, %v2422
    %v2424 = vpop.f32.mrb[0].mxu0
    %v2425 = vpop.f32.mrb[0].mxu0
    %2426 = vdwg.mxu0
    %v2427 = vadd.f32 %v2340, %v2380
    %v2428 = vadd.f32 %v2341, %v2382
    %v2429 = vadd.f32 %v2342, %v2421
    %v2430 = vadd.f32 %v2343, %v2423
    %v2431 = vxor.u32 %v2427, 2147483648
    %v2432 = vmul.f32 %v2431, 1.442695
    %v2433 = vpow.pop %v2432
    %v2434 = vadd.f32 %v2433, 1.0
    %v2435 = vrcp.pop %v2434
    %v2436 = vmul.f32 1.0, %v2435
    %v2437 = vxor.u32 %v2428, 2147483648
    %v2438 = vmul.f32 %v2437, 1.442695
    %v2439 = vpow.pop %v2438
    %v2440 = vadd.f32 %v2439, 1.0
    %v2441 = vrcp.pop %v2440
    %v2442 = vmul.f32 1.0, %v2441
    %v2443 = vtanh.pop %v2429
    %v2444 = vxor.u32 %v2430, 2147483648
    %v2445 = vmul.f32 %v2444, 1.442695
    %v2446 = vpow.pop %v2445
    %v2447 = vadd.f32 %v2446, 1.0
    %v2448 = vrcp.pop %v2447
    %v2449 = vmul.f32 1.0, %v2448
    %v2450 = vmul.f32 %v2442, %v2336
    %v2451 = vmul.f32 %v2436, %v2443
    %v2452 = vadd.f32 %v2450, %v2451
    %v2453 = vtanh.pop %v2452
    %v2454 = vmul.f32 %v2449, %v2453
    %2455 = vst [vmem:[%s887] sm:$0xff] %v2454
    %v2456 = vld [vmem:[%s889] sm:$0xff]
    %v2457 = vld [vmem:[%s889 + $0x8] sm:$0xff]
    %v2458 = vld [vmem:[%s889 + $0x10] sm:$0xff]
    %v2459 = vld [vmem:[%s889 + $0x18] sm:$0xff]
    %v2460 = vpack.c.bf16 %v2454, %v2454
    %2461 = vmatprep.subr.bf16.mxu0 %v2166
    %2462 = vmatpush1.bf16.msra.mxu0 %v2165
    %2463 = vmatprep.subr.bf16.mxu0 %v2170
    %2464 = vmatpush1.bf16.msra.mxu0 %v2169
    %2465 = vmatprep.subr.bf16.mxu0 %v2174
    %2466 = vmatpush1.bf16.msra.mxu0 %v2173
    %2467 = vmatprep.subr.bf16.mxu0 %v2178
    %2468 = vmatpush1.bf16.msra.mxu0 %v2177
    %2469 = vmatprep.subr.bf16.mxu0 %v2182
    %2470 = vmatpush1.bf16.msra.mxu0 %v2181
    %2471 = vmatprep.subr.bf16.mxu0 %v2186
    %2472 = vmatpush1.bf16.msra.mxu0 %v2185
    %2473 = vmatprep.subr.bf16.mxu0 %v2190
    %2474 = vmatpush1.bf16.msra.mxu0 %v2189
    %2475 = vmatprep.subr.bf16.mxu0 %v2194
    %2476 = vmatpush1.bf16.msra.mxu0 %v2193
    %2477 = vmatprep.subr.bf16.mxu0 0
    %2478 = vmatpush1.bf16.msra.mxu0 0
    %2479 = vmatprep.subr.bf16.mxu0 0
    %2480 = vmatpush1.bf16.msra.mxu0 0
    %2481 = vmatprep.subr.bf16.mxu0 0
    %2482 = vmatpush1.bf16.msra.mxu0 0
    %2483 = vmatprep.subr.bf16.mxu0 0
    %2484 = vmatpush1.bf16.msra.mxu0 0
    %2485 = vmatprep.subr.bf16.mxu0 0
    %2486 = vmatpush1.bf16.msra.mxu0 0
    %2487 = vmatprep.subr.bf16.mxu0 0
    %2488 = vmatpush1.bf16.msra.mxu0 0
    %2489 = vmatprep.subr.bf16.mxu0 0
    %2490 = vmatpush1.bf16.msra.mxu0 0
    %2491 = vmatprep.subr.bf16.mxu0 0
    %2492 = vmatpush1.bf16.msra.mxu0 0
    %2493 = vmatprep.mubr.bf16.mxu0 0
    %2494 = vmatmul.mubr.bf16.gmra.mrb[0].mxu0 %v2460
    %v2495 = vpop.f32.mrb[0].mxu0
    %v2496 = vadd.f32 0.0, %v2495
    %v2497 = vpop.f32.mrb[0].mxu0
    %v2498 = vadd.f32 0.0, %v2497
    %v2499 = vpop.f32.mrb[0].mxu0
    %v2500 = vpop.f32.mrb[0].mxu0
    %2501 = vdwg.mxu0
    %2502 = vmatprep.subr.bf16.mxu0 %v2168
    %2503 = vmatpush1.bf16.msra.mxu0 %v2167
    %2504 = vmatprep.subr.bf16.mxu0 %v2172
    %2505 = vmatpush1.bf16.msra.mxu0 %v2171
    %2506 = vmatprep.subr.bf16.mxu0 %v2176
    %2507 = vmatpush1.bf16.msra.mxu0 %v2175
    %2508 = vmatprep.subr.bf16.mxu0 %v2180
    %2509 = vmatpush1.bf16.msra.mxu0 %v2179
    %2510 = vmatprep.subr.bf16.mxu0 %v2184
    %2511 = vmatpush1.bf16.msra.mxu0 %v2183
    %2512 = vmatprep.subr.bf16.mxu0 %v2188
    %2513 = vmatpush1.bf16.msra.mxu0 %v2187
    %2514 = vmatprep.subr.bf16.mxu0 %v2192
    %2515 = vmatpush1.bf16.msra.mxu0 %v2191
    %2516 = vmatprep.subr.bf16.mxu0 %v2196
    %2517 = vmatpush1.bf16.msra.mxu0 %v2195
    %2518 = vmatprep.subr.bf16.mxu0 0
    %2519 = vmatpush1.bf16.msra.mxu0 0
    %2520 = vmatprep.subr.bf16.mxu0 0
    %2521 = vmatpush1.bf16.msra.mxu0 0
    %2522 = vmatprep.subr.bf16.mxu0 0
    %2523 = vmatpush1.bf16.msra.mxu0 0
    %2524 = vmatprep.subr.bf16.mxu0 0
    %2525 = vmatpush1.bf16.msra.mxu0 0
    %2526 = vmatprep.subr.bf16.mxu0 0
    %2527 = vmatpush1.bf16.msra.mxu0 0
    %2528 = vmatprep.subr.bf16.mxu0 0
    %2529 = vmatpush1.bf16.msra.mxu0 0
    %2530 = vmatprep.subr.bf16.mxu0 0
    %2531 = vmatpush1.bf16.msra.mxu0 0
    %2532 = vmatprep.subr.bf16.mxu0 0
    %2533 = vmatpush1.bf16.msra.mxu0 0
    %2534 = vmatprep.mubr.bf16.mxu0 0
    %2535 = vmatmul.mubr.bf16.gmra.mrb[0].mxu0 %v2460
    %v2536 = vpop.f32.mrb[0].mxu0
    %v2537 = vadd.f32 0.0, %v2536
    %v2538 = vpop.f32.mrb[0].mxu0
    %v2539 = vadd.f32 0.0, %v2538
    %v2540 = vpop.f32.mrb[0].mxu0
    %v2541 = vpop.f32.mrb[0].mxu0
    %2542 = vdwg.mxu0
    %v2543 = vadd.f32 %v2456, %v2496
    %v2544 = vadd.f32 %v2457, %v2498
    %v2545 = vadd.f32 %v2458, %v2537
    %v2546 = vadd.f32 %v2459, %v2539
    %v2547 = vxor.u32 %v2543, 2147483648
    %v2548 = vmul.f32 %v2547, 1.442695
    %v2549 = vpow.pop %v2548
    %v2550 = vadd.f32 %v2549, 1.0
    %v2551 = vrcp.pop %v2550
    %v2552 = vmul.f32 1.0, %v2551
    %v2553 = vxor.u32 %v2544, 2147483648
    %v2554 = vmul.f32 %v2553, 1.442695
    %v2555 = vpow.pop %v2554
    %v2556 = vadd.f32 %v2555, 1.0
    %v2557 = vrcp.pop %v2556
    %v2558 = vmul.f32 1.0, %v2557
    %v2559 = vtanh.pop %v2545
    %v2560 = vxor.u32 %v2546, 2147483648
    %v2561 = vmul.f32 %v2560, 1.442695
    %v2562 = vpow.pop %v2561
    %v2563 = vadd.f32 %v2562, 1.0
    %v2564 = vrcp.pop %v2563
    %v2565 = vmul.f32 1.0, %v2564
    %v2566 = vmul.f32 %v2558, %v2452
    %v2567 = vmul.f32 %v2552, %v2559
    %v2568 = vadd.f32 %v2566, %v2567
    %v2569 = vtanh.pop %v2568
    %v2570 = vmul.f32 %v2565, %v2569
    %2571 = vst [vmem:[%s1005] sm:$0xff] %v2570
    %v2572 = vld [vmem:[%s1007] sm:$0xff]
    %v2573 = vld [vmem:[%s1007 + $0x8] sm:$0xff]
    %v2574 = vld [vmem:[%s1007 + $0x10] sm:$0xff]
    %v2575 = vld [vmem:[%s1007 + $0x18] sm:$0xff]
    %v2576 = vpack.c.bf16 %v2570, %v2570
    %2577 = vmatprep.subr.bf16.mxu0 %v2166
    %2578 = vmatpush1.bf16.msra.mxu0 %v2165
    %2579 = vmatprep.subr.bf16.mxu0 %v2170
    %2580 = vmatpush1.bf16.msra.mxu0 %v2169
    %2581 = vmatprep.subr.bf16.mxu0 %v2174
    %2582 = vmatpush1.bf16.msra.mxu0 %v2173
    %2583 = vmatprep.subr.bf16.mxu0 %v2178
    %2584 = vmatpush1.bf16.msra.mxu0 %v2177
    %2585 = vmatprep.subr.bf16.mxu0 %v2182
    %2586 = vmatpush1.bf16.msra.mxu0 %v2181
    %2587 = vmatprep.subr.bf16.mxu0 %v2186
    %2588 = vmatpush1.bf16.msra.mxu0 %v2185
    %2589 = vmatprep.subr.bf16.mxu0 %v2190
    %2590 = vmatpush1.bf16.msra.mxu0 %v2189
    %2591 = vmatprep.subr.bf16.mxu0 %v2194
    %2592 = vmatpush1.bf16.msra.mxu0 %v2193
    %2593 = vmatprep.subr.bf16.mxu0 0
    %2594 = vmatpush1.bf16.msra.mxu0 0
    %2595 = vmatprep.subr.bf16.mxu0 0
    %2596 = vmatpush1.bf16.msra.mxu0 0
    %2597 = vmatprep.subr.bf16.mxu0 0
    %2598 = vmatpush1.bf16.msra.mxu0 0
    %2599 = vmatprep.subr.bf16.mxu0 0
    %2600 = vmatpush1.bf16.msra.mxu0 0
    %2601 = vmatprep.subr.bf16.mxu0 0
    %2602 = vmatpush1.bf16.msra.mxu0 0
    %2603 = vmatprep.subr.bf16.mxu0 0
    %2604 = vmatpush1.bf16.msra.mxu0 0
    %2605 = vmatprep.subr.bf16.mxu0 0
    %2606 = vmatpush1.bf16.msra.mxu0 0
    %2607 = vmatprep.subr.bf16.mxu0 0
    %2608 = vmatpush1.bf16.msra.mxu0 0
    %2609 = vmatprep.mubr.bf16.mxu0 0
    %2610 = vmatmul.mubr.bf16.gmra.mrb[0].mxu0 %v2576
    %v2611 = vpop.f32.mrb[0].mxu0
    %v2612 = vadd.f32 0.0, %v2611
    %v2613 = vpop.f32.mrb[0].mxu0
    %v2614 = vadd.f32 0.0, %v2613
    %v2615 = vpop.f32.mrb[0].mxu0
    %v2616 = vpop.f32.mrb[0].mxu0
    %2617 = vdwg.mxu0
    %2618 = vmatprep.subr.bf16.mxu0 %v2168
    %2619 = vmatpush1.bf16.msra.mxu0 %v2167
    %2620 = vmatprep.subr.bf16.mxu0 %v2172
    %2621 = vmatpush1.bf16.msra.mxu0 %v2171
    %2622 = vmatprep.subr.bf16.mxu0 %v2176
    %2623 = vmatpush1.bf16.msra.mxu0 %v2175
    %2624 = vmatprep.subr.bf16.mxu0 %v2180
    %2625 = vmatpush1.bf16.msra.mxu0 %v2179
    %2626 = vmatprep.subr.bf16.mxu0 %v2184
    %2627 = vmatpush1.bf16.msra.mxu0 %v2183
    %2628 = vmatprep.subr.bf16.mxu0 %v2188
    %2629 = vmatpush1.bf16.msra.mxu0 %v2187
    %2630 = vmatprep.subr.bf16.mxu0 %v2192
    %2631 = vmatpush1.bf16.msra.mxu0 %v2191
    %2632 = vmatprep.subr.bf16.mxu0 %v2196
    %2633 = vmatpush1.bf16.msra.mxu0 %v2195
    %2634 = vmatprep.subr.bf16.mxu0 0
    %2635 = vmatpush1.bf16.msra.mxu0 0
    %2636 = vmatprep.subr.bf16.mxu0 0
    %2637 = vmatpush1.bf16.msra.mxu0 0
    %2638 = vmatprep.subr.bf16.mxu0 0
    %2639 = vmatpush1.bf16.msra.mxu0 0
    %2640 = vmatprep.subr.bf16.mxu0 0
    %2641 = vmatpush1.bf16.msra.mxu0 0
    %2642 = vmatprep.subr.bf16.mxu0 0
    %2643 = vmatpush1.bf16.msra.mxu0 0
    %2644 = vmatprep.subr.bf16.mxu0 0
    %2645 = vmatpush1.bf16.msra.mxu0 0
    %2646 = vmatprep.subr.bf16.mxu0 0
    %2647 = vmatpush1.bf16.msra.mxu0 0
    %2648 = vmatprep.subr.bf16.mxu0 0
    %2649 = vmatpush1.bf16.msra.mxu0 0
    %2650 = vmatprep.mubr.bf16.mxu0 0
    %2651 = vmatmul.mubr.bf16.gmra.mrb[0].mxu0 %v2576
    %v2652 = vpop.f32.mrb[0].mxu0
    %v2653 = vadd.f32 0.0, %v2652
    %v2654 = vpop.f32.mrb[0].mxu0
    %v2655 = vadd.f32 0.0, %v2654
    %v2656 = vpop.f32.mrb[0].mxu0
    %v2657 = vpop.f32.mrb[0].mxu0
    %2658 = vdwg.mxu0
    %v2659 = vadd.f32 %v2572, %v2612
    %v2660 = vadd.f32 %v2573, %v2614
    %v2661 = vadd.f32 %v2574, %v2653
    %v2662 = vadd.f32 %v2575, %v2655
    %v2663 = vxor.u32 %v2659, 2147483648
    %v2664 = vmul.f32 %v2663, 1.442695
    %v2665 = vpow.pop %v2664
    %v2666 = vadd.f32 %v2665, 1.0
    %v2667 = vrcp.pop %v2666
    %v2668 = vmul.f32 1.0, %v2667
    %v2669 = vxor.u32 %v2660, 2147483648
    %v2670 = vmul.f32 %v2669, 1.442695
    %v2671 = vpow.pop %v2670
    %v2672 = vadd.f32 %v2671, 1.0
    %v2673 = vrcp.pop %v2672
    %v2674 = vmul.f32 1.0, %v2673
    %v2675 = vtanh.pop %v2661
    %v2676 = vxor.u32 %v2662, 2147483648
    %v2677 = vmul.f32 %v2676, 1.442695
    %v2678 = vpow.pop %v2677
    %v2679 = vadd.f32 %v2678, 1.0
    %v2680 = vrcp.pop %v2679
    %v2681 = vmul.f32 1.0, %v2680
    %v2682 = vmul.f32 %v2674, %v2568
    %v2683 = vmul.f32 %v2668, %v2675
    %v2684 = vadd.f32 %v2682, %v2683
    %v2685 = vtanh.pop %v2684
    %v2686 = vmul.f32 %v2681, %v2685
    %2687 = vst [vmem:[%s1123] sm:$0xff] %v2686
    %v2688 = vld [vmem:[%s1125] sm:$0xff]
    %v2689 = vld [vmem:[%s1125 + $0x8] sm:$0xff]
    %v2690 = vld [vmem:[%s1125 + $0x10] sm:$0xff]
    %v2691 = vld [vmem:[%s1125 + $0x18] sm:$0xff]
    %v2692 = vpack.c.bf16 %v2686, %v2686
    %2693 = vmatprep.subr.bf16.mxu0 %v2166
    %2694 = vmatpush1.bf16.msra.mxu0 %v2165
    %2695 = vmatprep.subr.bf16.mxu0 %v2170
    %2696 = vmatpush1.bf16.msra.mxu0 %v2169
    %2697 = vmatprep.subr.bf16.mxu0 %v2174
    %2698 = vmatpush1.bf16.msra.mxu0 %v2173
    %2699 = vmatprep.subr.bf16.mxu0 %v2178
    %2700 = vmatpush1.bf16.msra.mxu0 %v2177
    %2701 = vmatprep.subr.bf16.mxu0 %v2182
    %2702 = vmatpush1.bf16.msra.mxu0 %v2181
    %2703 = vmatprep.subr.bf16.mxu0 %v2186
    %2704 = vmatpush1.bf16.msra.mxu0 %v2185
    %2705 = vmatprep.subr.bf16.mxu0 %v2190
    %2706 = vmatpush1.bf16.msra.mxu0 %v2189
    %2707 = vmatprep.subr.bf16.mxu0 %v2194
    %2708 = vmatpush1.bf16.msra.mxu0 %v2193
    %2709 = vmatprep.subr.bf16.mxu0 0
    %2710 = vmatpush1.bf16.msra.mxu0 0
    %2711 = vmatprep.subr.bf16.mxu0 0
    %2712 = vmatpush1.bf16.msra.mxu0 0
    %2713 = vmatprep.subr.bf16.mxu0 0
    %2714 = vmatpush1.bf16.msra.mxu0 0
    %2715 = vmatprep.subr.bf16.mxu0 0
    %2716 = vmatpush1.bf16.msra.mxu0 0
    %2717 = vmatprep.subr.bf16.mxu0 0
    %2718 = vmatpush1.bf16.msra.mxu0 0
    %2719 = vmatprep.subr.bf16.mxu0 0
    %2720 = vmatpush1.bf16.msra.mxu0 0
    %2721 = vmatprep.subr.bf16.mxu0 0
    %2722 = vmatpush1.bf16.msra.mxu0 0
    %2723 = vmatprep.subr.bf16.mxu0 0
    %2724 = vmatpush1.bf16.msra.mxu0 0
    %2725 = vmatprep.mubr.bf16.mxu0 0
    %2726 = vmatmul.mubr.bf16.gmra.mrb[0].mxu0 %v2692
    %v2727 = vpop.f32.mrb[0].mxu0
    %v2728 = vadd.f32 0.0, %v2727
    %v2729 = vpop.f32.mrb[0].mxu0
    %v2730 = vadd.f32 0.0, %v2729
    %v2731 = vpop.f32.mrb[0].mxu0
    %v2732 = vpop.f32.mrb[0].mxu0
    %2733 = vdwg.mxu0
    %2734 = vmatprep.subr.bf16.mxu0 %v2168
    %2735 = vmatpush1.bf16.msra.mxu0 %v2167
    %2736 = vmatprep.subr.bf16.mxu0 %v2172
    %2737 = vmatpush1.bf16.msra.mxu0 %v2171
    %2738 = vmatprep.subr.bf16.mxu0 %v2176
    %2739 = vmatpush1.bf16.msra.mxu0 %v2175
    %2740 = vmatprep.subr.bf16.mxu0 %v2180
    %2741 = vmatpush1.bf16.msra.mxu0 %v2179
    %2742 = vmatprep.subr.bf16.mxu0 %v2184
    %2743 = vmatpush1.bf16.msra.mxu0 %v2183
    %2744 = vmatprep.subr.bf16.mxu0 %v2188
    %2745 = vmatpush1.bf16.msra.mxu0 %v2187
    %2746 = vmatprep.subr.bf16.mxu0 %v2192
    %2747 = vmatpush1.bf16.msra.mxu0 %v2191
    %2748 = vmatprep.subr.bf16.mxu0 %v2196
    %2749 = vmatpush1.bf16.msra.mxu0 %v2195
    %2750 = vmatprep.subr.bf16.mxu0 0
    %2751 = vmatpush1.bf16.msra.mxu0 0
    %2752 = vmatprep.subr.bf16.mxu0 0
    %2753 = vmatpush1.bf16.msra.mxu0 0
    %2754 = vmatprep.subr.bf16.mxu0 0
    %2755 = vmatpush1.bf16.msra.mxu0 0
    %2756 = vmatprep.subr.bf16.mxu0 0
    %2757 = vmatpush1.bf16.msra.mxu0 0
    %2758 = vmatprep.subr.bf16.mxu0 0
    %2759 = vmatpush1.bf16.msra.mxu0 0
    %2760 = vmatprep.subr.bf16.mxu0 0
    %2761 = vmatpush1.bf16.msra.mxu0 0
    %2762 = vmatprep.subr.bf16.mxu0 0
    %2763 = vmatpush1.bf16.msra.mxu0 0
    %2764 = vmatprep.subr.bf16.mxu0 0
    %2765 = vmatpush1.bf16.msra.mxu0 0
    %2766 = vmatprep.mubr.bf16.mxu0 0
    %2767 = vmatmul.mubr.bf16.gmra.mrb[0].mxu0 %v2692
    %v2768 = vpop.f32.mrb[0].mxu0
    %v2769 = vadd.f32 0.0, %v2768
    %v2770 = vpop.f32.mrb[0].mxu0
    %v2771 = vadd.f32 0.0, %v2770
    %v2772 = vpop.f32.mrb[0].mxu0
    %v2773 = vpop.f32.mrb[0].mxu0
    %2774 = vdwg.mxu0
    %v2775 = vadd.f32 %v2688, %v2728
    %v2776 = vadd.f32 %v2689, %v2730
    %v2777 = vadd.f32 %v2690, %v2769
    %v2778 = vadd.f32 %v2691, %v2771
    %v2779 = vxor.u32 %v2775, 2147483648
    %v2780 = vmul.f32 %v2779, 1.442695
    %v2781 = vpow.pop %v2780
    %v2782 = vadd.f32 %v2781, 1.0
    %v2783 = vrcp.pop %v2782
    %v2784 = vmul.f32 1.0, %v2783
    %v2785 = vxor.u32 %v2776, 2147483648
    %v2786 = vmul.f32 %v2785, 1.442695
    %v2787 = vpow.pop %v2786
    %v2788 = vadd.f32 %v2787, 1.0
    %v2789 = vrcp.pop %v2788
    %v2790 = vmul.f32 1.0, %v2789
    %v2791 = vtanh.pop %v2777
    %v2792 = vxor.u32 %v2778, 2147483648
    %v2793 = vmul.f32 %v2792, 1.442695
    %v2794 = vpow.pop %v2793
    %v2795 = vadd.f32 %v2794, 1.0
    %v2796 = vrcp.pop %v2795
    %v2797 = vmul.f32 1.0, %v2796
    %v2798 = vmul.f32 %v2790, %v2684
    %v2799 = vmul.f32 %v2784, %v2791
    %v2800 = vadd.f32 %v2798, %v2799
    %v2801 = vtanh.pop %v2800
    %v2802 = vmul.f32 %v2797, %v2801
    %2803 = vst [vmem:[%s1241] sm:$0xff] %v2802
    %v2804 = vld [vmem:[%s1243] sm:$0xff]
    %v2805 = vld [vmem:[%s1243 + $0x8] sm:$0xff]
    %v2806 = vld [vmem:[%s1243 + $0x10] sm:$0xff]
    %v2807 = vld [vmem:[%s1243 + $0x18] sm:$0xff]
    %v2808 = vpack.c.bf16 %v2802, %v2802
    %2809 = vmatprep.subr.bf16.mxu0 %v2166
    %2810 = vmatpush1.bf16.msra.mxu0 %v2165
    %2811 = vmatprep.subr.bf16.mxu0 %v2170
    %2812 = vmatpush1.bf16.msra.mxu0 %v2169
    %2813 = vmatprep.subr.bf16.mxu0 %v2174
    %2814 = vmatpush1.bf16.msra.mxu0 %v2173
    %2815 = vmatprep.subr.bf16.mxu0 %v2178
    %2816 = vmatpush1.bf16.msra.mxu0 %v2177
    %2817 = vmatprep.subr.bf16.mxu0 %v2182
    %2818 = vmatpush1.bf16.msra.mxu0 %v2181
    %2819 = vmatprep.subr.bf16.mxu0 %v2186
    %2820 = vmatpush1.bf16.msra.mxu0 %v2185
    %2821 = vmatprep.subr.bf16.mxu0 %v2190
    %2822 = vmatpush1.bf16.msra.mxu0 %v2189
    %2823 = vmatprep.subr.bf16.mxu0 %v2194
    %2824 = vmatpush1.bf16.msra.mxu0 %v2193
    %2825 = vmatprep.subr.bf16.mxu0 0
    %2826 = vmatpush1.bf16.msra.mxu0 0
    %2827 = vmatprep.subr.bf16.mxu0 0
    %2828 = vmatpush1.bf16.msra.mxu0 0
    %2829 = vmatprep.subr.bf16.mxu0 0
    %2830 = vmatpush1.bf16.msra.mxu0 0
    %2831 = vmatprep.subr.bf16.mxu0 0
    %2832 = vmatpush1.bf16.msra.mxu0 0
    %2833 = vmatprep.subr.bf16.mxu0 0
    %2834 = vmatpush1.bf16.msra.mxu0 0
    %2835 = vmatprep.subr.bf16.mxu0 0
    %2836 = vmatpush1.bf16.msra.mxu0 0
    %2837 = vmatprep.subr.bf16.mxu0 0
    %2838 = vmatpush1.bf16.msra.mxu0 0
    %2839 = vmatprep.subr.bf16.mxu0 0
    %2840 = vmatpush1.bf16.msra.mxu0 0
    %2841 = vmatprep.mubr.bf16.mxu0 0
    %2842 = vmatmul.mubr.bf16.gmra.mrb[0].mxu0 %v2808
    %v2843 = vpop.f32.mrb[0].mxu0
    %v2844 = vadd.f32 0.0, %v2843
    %v2845 = vpop.f32.mrb[0].mxu0
    %v2846 = vadd.f32 0.0, %v2845
    %v2847 = vpop.f32.mrb[0].mxu0
    %v2848 = vpop.f32.mrb[0].mxu0
    %2849 = vdwg.mxu0
    %2850 = vmatprep.subr.bf16.mxu0 %v2168
    %2851 = vmatpush1.bf16.msra.mxu0 %v2167
    %2852 = vmatprep.subr.bf16.mxu0 %v2172
    %2853 = vmatpush1.bf16.msra.mxu0 %v2171
    %2854 = vmatprep.subr.bf16.mxu0 %v2176
    %2855 = vmatpush1.bf16.msra.mxu0 %v2175
    %2856 = vmatprep.subr.bf16.mxu0 %v2180
    %2857 = vmatpush1.bf16.msra.mxu0 %v2179
    %2858 = vmatprep.subr.bf16.mxu0 %v2184
    %2859 = vmatpush1.bf16.msra.mxu0 %v2183
    %2860 = vmatprep.subr.bf16.mxu0 %v2188
    %2861 = vmatpush1.bf16.msra.mxu0 %v2187
    %2862 = vmatprep.subr.bf16.mxu0 %v2192
    %2863 = vmatpush1.bf16.msra.mxu0 %v2191
    %2864 = vmatprep.subr.bf16.mxu0 %v2196
    %2865 = vmatpush1.bf16.msra.mxu0 %v2195
    %2866 = vmatprep.subr.bf16.mxu0 0
    %2867 = vmatpush1.bf16.msra.mxu0 0
    %2868 = vmatprep.subr.bf16.mxu0 0
    %2869 = vmatpush1.bf16.msra.mxu0 0
    %2870 = vmatprep.subr.bf16.mxu0 0
    %2871 = vmatpush1.bf16.msra.mxu0 0
    %2872 = vmatprep.subr.bf16.mxu0 0
    %2873 = vmatpush1.bf16.msra.mxu0 0
    %2874 = vmatprep.subr.bf16.mxu0 0
    %2875 = vmatpush1.bf16.msra.mxu0 0
    %2876 = vmatprep.subr.bf16.mxu0 0
    %2877 = vmatpush1.bf16.msra.mxu0 0
    %2878 = vmatprep.subr.bf16.mxu0 0
    %2879 = vmatpush1.bf16.msra.mxu0 0
    %2880 = vmatprep.subr.bf16.mxu0 0
    %2881 = vmatpush1.bf16.msra.mxu0 0
    %2882 = vmatprep.mubr.bf16.mxu0 0
    %2883 = vmatmul.mubr.bf16.gmra.mrb[0].mxu0 %v2808
    %v2884 = vpop.f32.mrb[0].mxu0
    %v2885 = vadd.f32 0.0, %v2884
    %v2886 = vpop.f32.mrb[0].mxu0
    %v2887 = vadd.f32 0.0, %v2886
    %v2888 = vpop.f32.mrb[0].mxu0
    %v2889 = vpop.f32.mrb[0].mxu0
    %2890 = vdwg.mxu0
    %v2891 = vadd.f32 %v2804, %v2844
    %v2892 = vadd.f32 %v2805, %v2846
    %v2893 = vadd.f32 %v2806, %v2885
    %v2894 = vadd.f32 %v2807, %v2887
    %v2895 = vxor.u32 %v2891, 2147483648
    %v2896 = vmul.f32 %v2895, 1.442695
    %v2897 = vpow.pop %v2896
    %v2898 = vadd.f32 %v2897, 1.0
    %v2899 = vrcp.pop %v2898
    %v2900 = vmul.f32 1.0, %v2899
    %v2901 = vxor.u32 %v2892, 2147483648
    %v2902 = vmul.f32 %v2901, 1.442695
    %v2903 = vpow.pop %v2902
    %v2904 = vadd.f32 %v2903, 1.0
    %v2905 = vrcp.pop %v2904
    %v2906 = vmul.f32 1.0, %v2905
    %v2907 = vtanh.pop %v2893
    %v2908 = vxor.u32 %v2894, 2147483648
    %v2909 = vmul.f32 %v2908, 1.442695
    %v2910 = vpow.pop %v2909
    %v2911 = vadd.f32 %v2910, 1.0
    %v2912 = vrcp.pop %v2911
    %v2913 = vmul.f32 1.0, %v2912
    %v2914 = vmul.f32 %v2906, %v2800
    %v2915 = vmul.f32 %v2900, %v2907
    %v2916 = vadd.f32 %v2914, %v2915
    %v2917 = vtanh.pop %v2916
    %v2918 = vmul.f32 %v2913, %v2917
    %2919 = vst [vmem:[%s1359] sm:$0xff] %v2918
    %v2920 = vld [vmem:[%s1361] sm:$0xff]
    %v2921 = vld [vmem:[%s1361 + $0x8] sm:$0xff]
    %v2922 = vld [vmem:[%s1361 + $0x10] sm:$0xff]
    %v2923 = vld [vmem:[%s1361 + $0x18] sm:$0xff]
    %v2924 = vpack.c.bf16 %v2918, %v2918
    %2925 = vmatprep.subr.bf16.mxu0 %v2166
    %2926 = vmatpush1.bf16.msra.mxu0 %v2165
    %2927 = vmatprep.subr.bf16.mxu0 %v2170
    %2928 = vmatpush1.bf16.msra.mxu0 %v2169
    %2929 = vmatprep.subr.bf16.mxu0 %v2174
    %2930 = vmatpush1.bf16.msra.mxu0 %v2173
    %2931 = vmatprep.subr.bf16.mxu0 %v2178
    %2932 = vmatpush1.bf16.msra.mxu0 %v2177
    %2933 = vmatprep.subr.bf16.mxu0 %v2182
    %2934 = vmatpush1.bf16.msra.mxu0 %v2181
    %2935 = vmatprep.subr.bf16.mxu0 %v2186
    %2936 = vmatpush1.bf16.msra.mxu0 %v2185
    %2937 = vmatprep.subr.bf16.mxu0 %v2190
    %2938 = vmatpush1.bf16.msra.mxu0 %v2189
    %2939 = vmatprep.subr.bf16.mxu0 %v2194
    %2940 = vmatpush1.bf16.msra.mxu0 %v2193
    %2941 = vmatprep.subr.bf16.mxu0 0
    %2942 = vmatpush1.bf16.msra.mxu0 0
    %2943 = vmatprep.subr.bf16.mxu0 0
    %2944 = vmatpush1.bf16.msra.mxu0 0
    %2945 = vmatprep.subr.bf16.mxu0 0
    %2946 = vmatpush1.bf16.msra.mxu0 0
    %2947 = vmatprep.subr.bf16.mxu0 0
    %2948 = vmatpush1.bf16.msra.mxu0 0
    %2949 = vmatprep.subr.bf16.mxu0 0
    %2950 = vmatpush1.bf16.msra.mxu0 0
    %2951 = vmatprep.subr.bf16.mxu0 0
    %2952 = vmatpush1.bf16.msra.mxu0 0
    %2953 = vmatprep.subr.bf16.mxu0 0
    %2954 = vmatpush1.bf16.msra.mxu0 0
    %2955 = vmatprep.subr.bf16.mxu0 0
    %2956 = vmatpush1.bf16.msra.mxu0 0
    %2957 = vmatprep.mubr.bf16.mxu0 0
    %2958 = vmatmul.mubr.bf16.gmra.mrb[0].mxu0 %v2924
    %v2959 = vpop.f32.mrb[0].mxu0
    %v2960 = vadd.f32 0.0, %v2959
    %v2961 = vpop.f32.mrb[0].mxu0
    %v2962 = vadd.f32 0.0, %v2961
    %v2963 = vpop.f32.mrb[0].mxu0
    %v2964 = vpop.f32.mrb[0].mxu0
    %2965 = vdwg.mxu0
    %2966 = vmatprep.subr.bf16.mxu0 %v2168
    %2967 = vmatpush1.bf16.msra.mxu0 %v2167
    %2968 = vmatprep.subr.bf16.mxu0 %v2172
    %2969 = vmatpush1.bf16.msra.mxu0 %v2171
    %2970 = vmatprep.subr.bf16.mxu0 %v2176
    %2971 = vmatpush1.bf16.msra.mxu0 %v2175
    %2972 = vmatprep.subr.bf16.mxu0 %v2180
    %2973 = vmatpush1.bf16.msra.mxu0 %v2179
    %2974 = vmatprep.subr.bf16.mxu0 %v2184
    %2975 = vmatpush1.bf16.msra.mxu0 %v2183
    %2976 = vmatprep.subr.bf16.mxu0 %v2188
    %2977 = vmatpush1.bf16.msra.mxu0 %v2187
    %2978 = vmatprep.subr.bf16.mxu0 %v2192
    %2979 = vmatpush1.bf16.msra.mxu0 %v2191
    %2980 = vmatprep.subr.bf16.mxu0 %v2196
    %2981 = vmatpush1.bf16.msra.mxu0 %v2195
    %2982 = vmatprep.subr.bf16.mxu0 0
    %2983 = vmatpush1.bf16.msra.mxu0 0
    %2984 = vmatprep.subr.bf16.mxu0 0
    %2985 = vmatpush1.bf16.msra.mxu0 0
    %2986 = vmatprep.subr.bf16.mxu0 0
    %2987 = vmatpush1.bf16.msra.mxu0 0
    %2988 = vmatprep.subr.bf16.mxu0 0
    %2989 = vmatpush1.bf16.msra.mxu0 0
    %2990 = vmatprep.subr.bf16.mxu0 0
    %2991 = vmatpush1.bf16.msra.mxu0 0
    %2992 = vmatprep.subr.bf16.mxu0 0
    %2993 = vmatpush1.bf16.msra.mxu0 0
    %2994 = vmatprep.subr.bf16.mxu0 0
    %2995 = vmatpush1.bf16.msra.mxu0 0
    %2996 = vmatprep.subr.bf16.mxu0 0
    %2997 = vmatpush1.bf16.msra.mxu0 0
    %2998 = vmatprep.mubr.bf16.mxu0 0
    %2999 = vmatmul.mubr.bf16.gmra.mrb[0].mxu0 %v2924
    %v3000 = vpop.f32.mrb[0].mxu0
    %v3001 = vadd.f32 0.0, %v3000
    %v3002 = vpop.f32.mrb[0].mxu0
    %v3003 = vadd.f32 0.0, %v3002
    %v3004 = vpop.f32.mrb[0].mxu0
    %v3005 = vpop.f32.mrb[0].mxu0
    %3006 = vdwg.mxu0
    %v3007 = vadd.f32 %v2920, %v2960
    %v3008 = vadd.f32 %v2921, %v2962
    %v3009 = vadd.f32 %v2922, %v3001
    %v3010 = vadd.f32 %v2923, %v3003
    %v3011 = vxor.u32 %v3007, 2147483648
    %v3012 = vmul.f32 %v3011, 1.442695
    %v3013 = vpow.pop %v3012
    %v3014 = vadd.f32 %v3013, 1.0
    %v3015 = vrcp.pop %v3014
    %v3016 = vmul.f32 1.0, %v3015
    %v3017 = vxor.u32 %v3008, 2147483648
    %v3018 = vmul.f32 %v3017, 1.442695
    %v3019 = vpow.pop %v3018
    %v3020 = vadd.f32 %v3019, 1.0
    %v3021 = vrcp.pop %v3020
    %v3022 = vmul.f32 1.0, %v3021
    %v3023 = vtanh.pop %v3009
    %v3024 = vxor.u32 %v3010, 2147483648
    %v3025 = vmul.f32 %v3024, 1.442695
    %v3026 = vpow.pop %v3025
    %v3027 = vadd.f32 %v3026, 1.0
    %v3028 = vrcp.pop %v3027
    %v3029 = vmul.f32 1.0, %v3028
    %v3030 = vmul.f32 %v3022, %v2916
    %v3031 = vmul.f32 %v3016, %v3023
    %v3032 = vadd.f32 %v3030, %v3031
    %v3033 = vtanh.pop %v3032
    %v3034 = vmul.f32 %v3029, %v3033
    %3035 = vst [vmem:[%s1477] sm:$0xff] %v3034
    %v3036 = vld [vmem:[%s1479] sm:$0xff]
    %v3037 = vld [vmem:[%s1479 + $0x8] sm:$0xff]
    %v3038 = vld [vmem:[%s1479 + $0x10] sm:$0xff]
    %v3039 = vld [vmem:[%s1479 + $0x18] sm:$0xff]
    %v3040 = vpack.c.bf16 %v3034, %v3034
    %3041 = vmatprep.subr.bf16.mxu0 %v2166
    %3042 = vmatpush1.bf16.msra.mxu0 %v2165
    %3043 = vmatprep.subr.bf16.mxu0 %v2170
    %3044 = vmatpush1.bf16.msra.mxu0 %v2169
    %3045 = vmatprep.subr.bf16.mxu0 %v2174
    %3046 = vmatpush1.bf16.msra.mxu0 %v2173
    %3047 = vmatprep.subr.bf16.mxu0 %v2178
    %3048 = vmatpush1.bf16.msra.mxu0 %v2177
    %3049 = vmatprep.subr.bf16.mxu0 %v2182
    %3050 = vmatpush1.bf16.msra.mxu0 %v2181
    %3051 = vmatprep.subr.bf16.mxu0 %v2186
    %3052 = vmatpush1.bf16.msra.mxu0 %v2185
    %3053 = vmatprep.subr.bf16.mxu0 %v2190
    %3054 = vmatpush1.bf16.msra.mxu0 %v2189
    %3055 = vmatprep.subr.bf16.mxu0 %v2194
    %3056 = vmatpush1.bf16.msra.mxu0 %v2193
    %3057 = vmatprep.subr.bf16.mxu0 0
    %3058 = vmatpush1.bf16.msra.mxu0 0
    %3059 = vmatprep.subr.bf16.mxu0 0
    %3060 = vmatpush1.bf16.msra.mxu0 0
    %3061 = vmatprep.subr.bf16.mxu0 0
    %3062 = vmatpush1.bf16.msra.mxu0 0
    %3063 = vmatprep.subr.bf16.mxu0 0
    %3064 = vmatpush1.bf16.msra.mxu0 0
    %3065 = vmatprep.subr.bf16.mxu0 0
    %3066 = vmatpush1.bf16.msra.mxu0 0
    %3067 = vmatprep.subr.bf16.mxu0 0
    %3068 = vmatpush1.bf16.msra.mxu0 0
    %3069 = vmatprep.subr.bf16.mxu0 0
    %3070 = vmatpush1.bf16.msra.mxu0 0
    %3071 = vmatprep.subr.bf16.mxu0 0
    %3072 = vmatpush1.bf16.msra.mxu0 0
    %3073 = vmatprep.mubr.bf16.mxu0 0
    %3074 = vmatmul.mubr.bf16.gmra.mrb[0].mxu0 %v3040
    %v3075 = vpop.f32.mrb[0].mxu0
    %v3076 = vadd.f32 0.0, %v3075
    %v3077 = vpop.f32.mrb[0].mxu0
    %v3078 = vadd.f32 0.0, %v3077
    %v3079 = vpop.f32.mrb[0].mxu0
    %v3080 = vpop.f32.mrb[0].mxu0
    %3081 = vdwg.mxu0
    %3082 = vmatprep.subr.bf16.mxu0 %v2168
    %3083 = vmatpush1.bf16.msra.mxu0 %v2167
    %3084 = vmatprep.subr.bf16.mxu0 %v2172
    %3085 = vmatpush1.bf16.msra.mxu0 %v2171
    %3086 = vmatprep.subr.bf16.mxu0 %v2176
    %3087 = vmatpush1.bf16.msra.mxu0 %v2175
    %3088 = vmatprep.subr.bf16.mxu0 %v2180
    %3089 = vmatpush1.bf16.msra.mxu0 %v2179
    %3090 = vmatprep.subr.bf16.mxu0 %v2184
    %3091 = vmatpush1.bf16.msra.mxu0 %v2183
    %3092 = vmatprep.subr.bf16.mxu0 %v2188
    %3093 = vmatpush1.bf16.msra.mxu0 %v2187
    %3094 = vmatprep.subr.bf16.mxu0 %v2192
    %3095 = vmatpush1.bf16.msra.mxu0 %v2191
    %3096 = vmatprep.subr.bf16.mxu0 %v2196
    %3097 = vmatpush1.bf16.msra.mxu0 %v2195
    %3098 = vmatprep.subr.bf16.mxu0 0
    %3099 = vmatpush1.bf16.msra.mxu0 0
    %3100 = vmatprep.subr.bf16.mxu0 0
    %3101 = vmatpush1.bf16.msra.mxu0 0
    %3102 = vmatprep.subr.bf16.mxu0 0
    %3103 = vmatpush1.bf16.msra.mxu0 0
    %3104 = vmatprep.subr.bf16.mxu0 0
    %3105 = vmatpush1.bf16.msra.mxu0 0
    %3106 = vmatprep.subr.bf16.mxu0 0
    %3107 = vmatpush1.bf16.msra.mxu0 0
    %3108 = vmatprep.subr.bf16.mxu0 0
    %3109 = vmatpush1.bf16.msra.mxu0 0
    %3110 = vmatprep.subr.bf16.mxu0 0
    %3111 = vmatpush1.bf16.msra.mxu0 0
    %3112 = vmatprep.subr.bf16.mxu0 0
    %3113 = vmatpush1.bf16.msra.mxu0 0
    %3114 = vmatprep.mubr.bf16.mxu0 0
    %3115 = vmatmul.mubr.bf16.gmra.mrb[0].mxu0 %v3040
    %v3116 = vpop.f32.mrb[0].mxu0
    %v3117 = vadd.f32 0.0, %v3116
    %v3118 = vpop.f32.mrb[0].mxu0
    %v3119 = vadd.f32 0.0, %v3118
    %v3120 = vpop.f32.mrb[0].mxu0
    %v3121 = vpop.f32.mrb[0].mxu0
    %3122 = vdwg.mxu0
    %v3123 = vadd.f32 %v3036, %v3076
    %v3124 = vadd.f32 %v3037, %v3078
    %v3125 = vadd.f32 %v3038, %v3117
    %v3126 = vadd.f32 %v3039, %v3119
    %v3127 = vxor.u32 %v3123, 2147483648
    %v3128 = vmul.f32 %v3127, 1.442695
    %v3129 = vpow.pop %v3128
    %v3130 = vadd.f32 %v3129, 1.0
    %v3131 = vrcp.pop %v3130
    %v3132 = vmul.f32 1.0, %v3131
    %v3133 = vxor.u32 %v3124, 2147483648
    %v3134 = vmul.f32 %v3133, 1.442695
    %v3135 = vpow.pop %v3134
    %v3136 = vadd.f32 %v3135, 1.0
    %v3137 = vrcp.pop %v3136
    %v3138 = vmul.f32 1.0, %v3137
    %v3139 = vtanh.pop %v3125
    %v3140 = vxor.u32 %v3126, 2147483648
    %v3141 = vmul.f32 %v3140, 1.442695
    %v3142 = vpow.pop %v3141
    %v3143 = vadd.f32 %v3142, 1.0
    %v3144 = vrcp.pop %v3143
    %v3145 = vmul.f32 1.0, %v3144
    %v3146 = vmul.f32 %v3138, %v3032
    %v3147 = vmul.f32 %v3132, %v3139
    %v3148 = vadd.f32 %v3146, %v3147
    %v3149 = vtanh.pop %v3148
    %v3150 = vmul.f32 %v3145, %v3149
    %3151 = vst [vmem:[%s1595] sm:$0xff] %v3150
    %3152 = vst [vmem:[#allocation5] sm:$0xff] %v3150
    %3153 = vst [vmem:[#allocation7] sm:$0xff] %v3148
    // Predicated region
    $region26: #{lstm_forward.1} parent=1 // pred_check
      _
    $region27: #{lstm_forward.1} parent=1 // pred_check_branch
      %3155 = sbr.rel (0) target = $region29
    $region28: #{lstm_forward.1} parent=1 // pred_region
      %s3157 = ssub.s32 1024, 1024
      %3158 = vsyncadd [#allocation4], %s3157
      %s3159 = sshll.u32 [#allocation3], 4
      %s3160 = int_to_ptr.vmem [resolvable:$true] %s3159
      %3165 = dma.vmem_to_hbm [thread:$0]  %s3160, 1024, %s6, [#allocation4], 128, 128, 8
    $region29: #{lstm_forward.1} parent=1 // pred_fallthru
      _
    // Predicated region
    $region30: #{lstm_forward.1} parent=1 // pred_check
      _
    $region31: #{lstm_forward.1} parent=1 // pred_check_branch
      %3167 = sbr.rel (0) target = $region33
    $region32: #{lstm_forward.1} parent=1 // pred_region
      %s3169 = ssub.s32 128, 128
      %3170 = vsyncadd [#allocation6], %s3169
      %s3172 = sshll.u32 [#allocation5], 4
      %s3173 = int_to_ptr.vmem [resolvable:$true] %s3172
      %3175 = dma.vmem_to_hbm [thread:$0]  %s3173, 128, %s7, [#allocation6]
    $region33: #{lstm_forward.1} parent=1 // pred_fallthru
      _
    // Predicated region
    $region34: #{lstm_forward.1} parent=1 // pred_check
      _
    $region35: #{lstm_forward.1} parent=1 // pred_check_branch
      %3177 = sbr.rel (0) target = $region37
    $region36: #{lstm_forward.1} parent=1 // pred_region
      %s3179 = ssub.s32 128, 128
      %3180 = vsyncadd [#allocation6], %s3179
      %s3182 = sshll.u32 [#allocation7], 4
      %s3183 = int_to_ptr.vmem [resolvable:$true] %s3182
      %3185 = dma.vmem_to_hbm [thread:$0]  %s3183, 128, %s8, [#allocation6]
    $region37: #{lstm_forward.1} parent=1 // pred_fallthru
      _
    // Predicated region
    $region38: #{lstm_forward.1} parent=1 // pred_check
      _
    $region39: #{lstm_forward.1} parent=1 // pred_check_branch
      %3187 = sbr.rel (0) target = $region41
    $region40: #{lstm_forward.1} parent=1 // pred_region
      %3188 = dma.done [#allocation4], 1024
    $region41: #{lstm_forward.1} parent=1 // pred_fallthru
      _
    // Predicated region
    $region42: #{lstm_forward.1} parent=1 // pred_check
      _
    $region43: #{lstm_forward.1} parent=1 // pred_check_branch
      %3190 = sbr.rel (0) target = $region45
    $region44: #{lstm_forward.1} parent=1 // pred_region
      %3191 = dma.done [#allocation6], 128
    $region45: #{lstm_forward.1} parent=1 // pred_fallthru
      _
    // Predicated region
    $region46: #{lstm_forward.1} parent=1 // pred_check
      _
    $region47: #{lstm_forward.1} parent=1 // pred_check_branch
      %3193 = sbr.rel (0) target = $region49
    $region48: #{lstm_forward.1} parent=1 // pred_region
      %3194 = dma.done [#allocation6], 128
    $region49: #{lstm_forward.1} parent=1 // pred_fallthru
      _
    %3195 = vsyncpa [#allocation4], 1
    %3196 = vsyncpa [#allocation6], 1

</llo_original>
